<compile_context>
chip_gen: v6e
topology: v6e:2x2x1
jax: 0.10.0
libtpu: 0.0.40
codegen_flags: <defaults>
</compile_context>

<pallas_src>
import jax
import jax.numpy as jnp
from jax import lax
from jax.experimental import pallas as pl
from jax.experimental.pallas import tpu as pltpu

IN_DIM = 2048
HID = 1024
OUT_DIM = 6
OUT_PAD = 128            # lane-padded logits width (sliced back to 6 outside)
N_SPLIT = 2              # grid steps: w1 column halves / w3 K halves
HID_HALF = HID // N_SPLIT
BN_EPS = 1e-5
VMEM_LIMIT = 32 << 20    # fits v5e/v6e/v7x (v7x has only 64 MiB VMEM per TC)


def _bn_relu_folded(h, gamma, beta):
    """Training-mode BatchNorm1d + ReLU with affine folded to scale/shift rows."""
    mean = jnp.mean(h, axis=0, keepdims=True)
    var = jnp.mean(jnp.square(h - mean), axis=0, keepdims=True)
    scale = gamma * lax.rsqrt(var + BN_EPS)       # (1, F)
    shift = beta - mean * scale                   # (1, F)
    return jnp.maximum(h * scale + shift, 0.0)


def _disc_kernel(x_ref, w1_ref, g1_ref, be1_ref, w3_ref,
                 g3_ref, be3_ref, w4_ref, b4_ref, out_ref, acc_ref):
    """Grid step c: fc1 columns [c*512,(c+1)*512) + BN1 + ReLU, then the
    matching K-slice of fc3 accumulated into acc_ref; last step does
    BN3 + ReLU + fc4 (lane-padded to 128 outputs)."""
    c = pl.program_id(0)
    xb = x_ref[...].astype(jnp.bfloat16)

    # fc1_1 (bias omitted: exactly cancelled by BN1's batch-mean subtraction).
    h1 = jnp.dot(xb, w1_ref[...], preferred_element_type=jnp.float32)
    h1 = _bn_relu_folded(h1, g1_ref[...], be1_ref[...])

    # fc3 partial sum over this half of the contraction dim (bias cancelled by BN3).
    p3 = jnp.dot(h1.astype(jnp.bfloat16), w3_ref[...],
                 preferred_element_type=jnp.float32)

    @pl.when(c == 0)
    def _():
        acc_ref[...] = p3

    @pl.when(c > 0)
    def _():
        acc_ref[...] += p3

    @pl.when(c == pl.num_programs(0) - 1)
    def _():
        h3 = _bn_relu_folded(acc_ref[...], g3_ref[...], be3_ref[...])
        out = jnp.dot(h3.astype(jnp.bfloat16), w4_ref[...],
                      preferred_element_type=jnp.float32) + b4_ref[...]
        out_ref[...] = out.astype(out_ref.dtype)


def _nbytes(*arrays):
    return int(sum(a.size * a.dtype.itemsize for a in arrays))


def discriminator_forward(x, params):
    """x: (B, 2048) or any (B, ...) flattening to 2048 features."""
    x = x.reshape(x.shape[0], -1)
    B = x.shape[0]
    # b1 / b3 are intentionally unused inside the kernel (cancelled by BN).
    w1, b1, g1, be1, w3, b3, g3, be3, w4p, b4p = params

    cost = pl.CostEstimate(
        flops=2 * B * IN_DIM * HID + 2 * B * HID * HID + 2 * B * HID * OUT_PAD,
        transcendentals=2 * HID,
        bytes_accessed=_nbytes(x, w1, g1, be1, w3, g3, be3, w4p, b4p)
        + B * OUT_PAD * 4,
    )

    out_pad = pl.pallas_call(
        _disc_kernel,
        out_shape=jax.ShapeDtypeStruct((B, OUT_PAD), jnp.float32),
        grid=(N_SPLIT,),
        in_specs=[
            pl.BlockSpec((B, IN_DIM), lambda c: (0, 0)),          # x (shared)
            pl.BlockSpec((IN_DIM, HID_HALF), lambda c: (0, c)),   # w1 column half
            pl.BlockSpec((1, HID_HALF), lambda c: (0, c)),        # gamma1 half
            pl.BlockSpec((1, HID_HALF), lambda c: (0, c)),        # beta1 half
            pl.BlockSpec((HID_HALF, HID), lambda c: (c, 0)),      # w3 row half (K split)
            pl.BlockSpec((1, HID), lambda c: (0, 0)),             # gamma3
            pl.BlockSpec((1, HID), lambda c: (0, 0)),             # beta3
            pl.BlockSpec((HID, OUT_PAD), lambda c: (0, 0)),       # w4 (lane-padded)
            pl.BlockSpec((1, OUT_PAD), lambda c: (0, 0)),         # b4 (lane-padded)
        ],
        out_specs=pl.BlockSpec((B, OUT_PAD), lambda c: (0, 0)),
        scratch_shapes=[pltpu.VMEM((B, HID), jnp.float32)],       # fc3 accumulator
        compiler_params=pltpu.CompilerParams(
            dimension_semantics=("arbitrary",),
            vmem_limit_bytes=VMEM_LIMIT,
        ),
        cost_estimate=cost,
    )(x, w1, g1, be1, w3, g3, be3, w4p, b4p)

    return out_pad[:, :OUT_DIM]


def init_params(key):
    """Deterministic synthetic init (shapes match the PyTorch module)."""
    k1, k2, k3, k4, k5, k6 = jax.random.split(key, 6)
    # Linear weights stored transposed vs. PyTorch, i.e. (in, out); bf16.
    w1 = (jax.random.normal(k1, (IN_DIM, HID), jnp.float32)
          / jnp.sqrt(IN_DIM)).astype(jnp.bfloat16)
    b1 = jax.random.normal(k2, (1, HID), jnp.float32) * 0.01
    w3 = (jax.random.normal(k3, (HID, HID), jnp.float32)
          / jnp.sqrt(HID)).astype(jnp.bfloat16)
    b3 = jax.random.normal(k4, (1, HID), jnp.float32) * 0.01
    w4 = jax.random.normal(k5, (HID, OUT_DIM), jnp.float32) / jnp.sqrt(HID)
    b4 = jax.random.normal(k6, (1, OUT_DIM), jnp.float32) * 0.01
    # Lane-pad the 6-wide head to 128 so the last matmul/store is unmasked.
    w4p = jnp.zeros((HID, OUT_PAD), jnp.float32).at[:, :OUT_DIM].set(w4)
    w4p = w4p.astype(jnp.bfloat16)
    b4p = jnp.zeros((1, OUT_PAD), jnp.float32).at[:, :OUT_DIM].set(b4)
    # BatchNorm1d affine params at PyTorch defaults (weight=1, bias=0).
    g1 = jnp.ones((1, HID), jnp.float32)
    be1 = jnp.zeros((1, HID), jnp.float32)
    g3 = jnp.ones((1, HID), jnp.float32)
    be3 = jnp.zeros((1, HID), jnp.float32)
    return (w1, b1, g1, be1, w3, b3, g3, be3, w4p, b4p)


def reference_forward(x, params):
    """Pure-JAX reference of the PyTorch training-mode forward (same bf16
    weights; keeps the linear biases, which BN cancels exactly)."""
    # TODO(synk): BatchNorm1d running_mean/running_var momentum updates are not
    # modeled (forward numerics only).
    w1, b1, g1, be1, w3, b3, g3, be3, w4p, b4p = params
    x = x.reshape(x.shape[0], -1)

    def bn_relu(h, g, b):
        m = jnp.mean(h, axis=0, keepdims=True)
        v = jnp.mean((h - m) ** 2, axis=0, keepdims=True)
        return jnp.maximum((h - m) * lax.rsqrt(v + BN_EPS) * g + b, 0.0)

    h = jnp.dot(x.astype(jnp.bfloat16), w1,
                preferred_element_type=jnp.float32) + b1
    h = bn_relu(h, g1, be1)
    h = jnp.dot(h.astype(jnp.bfloat16), w3,
                preferred_element_type=jnp.float32) + b3
    h = bn_relu(h, g3, be3)
    out = jnp.dot(h.astype(jnp.bfloat16), w4p,
                  preferred_element_type=jnp.float32) + b4p
    return out[:, :OUT_DIM]


if __name__ == "__main__":
    key = jax.random.PRNGKey(0)
    kp, kx = jax.random.split(key)
    params = init_params(kp)

    B = 8
    # The module flattens input.view(B, -1); 2*32*32 = 2048 features.
    x = jax.random.normal(kx, (B, 2, 32, 32), jnp.float32)

    out = jax.block_until_ready(discriminator_forward(x, params))
    ref = reference_forward(x, params)

    assert out.shape == (B, OUT_DIM), out.shape
    max_err = float(jnp.max(jnp.abs(out - ref)))
    assert jnp.allclose(out, ref, atol=1e-2, rtol=1e-2), max_err
    print("KERNEL_OK")
</pallas_src>

<mosaic_0001>
module attributes {stable_mosaic.version = 11 : i64} {
  func.func @_disc_kernel(%arg0: i32, %arg1: memref<8x2048xf32, #tpu.memory_space<vmem>>, %arg2: memref<2048x512xbf16, #tpu.memory_space<vmem>>, %arg3: memref<1x512xf32, #tpu.memory_space<vmem>>, %arg4: memref<1x512xf32, #tpu.memory_space<vmem>>, %arg5: memref<512x1024xbf16, #tpu.memory_space<vmem>>, %arg6: memref<1x1024xf32, #tpu.memory_space<vmem>>, %arg7: memref<1x1024xf32, #tpu.memory_space<vmem>>, %arg8: memref<1024x128xbf16, #tpu.memory_space<vmem>>, %arg9: memref<1x128xf32, #tpu.memory_space<vmem>>, %arg10: memref<8x128xf32, #tpu.memory_space<vmem>>, %arg11: memref<8x1024xf32, #tpu.memory_space<vmem>>) attributes {dimension_semantics = [#tpu.dimension_semantics<arbitrary>], iteration_bounds = array<i64: 2>, scalar_prefetch = 0 : i64, scratch_operands = 1 : i64, tpu.core_type = #tpu.core_type<tc>, window_params = [{pipeline_mode = #tpu.pipeline_mode<synchronous>, transform_indices = @transform_0, window_bounds = array<i64: 8, 2048>}, {transform_indices = @transform_1, window_bounds = array<i64: 2048, 512>}, {transform_indices = @transform_2, window_bounds = array<i64: 1, 512>}, {transform_indices = @transform_3, window_bounds = array<i64: 1, 512>}, {transform_indices = @transform_4, window_bounds = array<i64: 512, 1024>}, {pipeline_mode = #tpu.pipeline_mode<synchronous>, transform_indices = @transform_5, window_bounds = array<i64: 1, 1024>}, {pipeline_mode = #tpu.pipeline_mode<synchronous>, transform_indices = @transform_6, window_bounds = array<i64: 1, 1024>}, {pipeline_mode = #tpu.pipeline_mode<synchronous>, transform_indices = @transform_7, window_bounds = array<i64: 1024, 128>}, {pipeline_mode = #tpu.pipeline_mode<synchronous>, transform_indices = @transform_8, window_bounds = array<i64: 1, 128>}, {pipeline_mode = #tpu.pipeline_mode<synchronous>, transform_indices = @transform_9, window_bounds = array<i64: 8, 128>}]} {
    %c0 = arith.constant 0 : index
    %c0_0 = arith.constant 0 : index
    %0 = vector.load %arg1[%c0, %c0_0] : memref<8x2048xf32, #tpu.memory_space<vmem>>, vector<8x2048xf32>
    %1 = arith.truncf %0 : vector<8x2048xf32> to vector<8x2048xbf16>
    %c0_1 = arith.constant 0 : index
    %c0_2 = arith.constant 0 : index
    %2 = vector.load %arg2[%c0_1, %c0_2] : memref<2048x512xbf16, #tpu.memory_space<vmem>>, vector<2048x512xbf16>
    %cst = arith.constant dense<0.000000e+00> : vector<8x512xf32>
    %3 = tpu.matmul %1, %2, %cst {dimension_numbers = #tpu.dot_dimension_numbers<[1], [0], [0], [1], [0, 0, 1, 1], [], []>} : vector<8x2048xbf16>, vector<2048x512xbf16>, vector<8x512xf32> -> vector<8x512xf32>
    %c0_3 = arith.constant 0 : index
    %c0_4 = arith.constant 0 : index
    %4 = vector.load %arg3[%c0_3, %c0_4] : memref<1x512xf32, #tpu.memory_space<vmem>>, vector<1x512xf32>
    %c0_5 = arith.constant 0 : index
    %c0_6 = arith.constant 0 : index
    %5 = vector.load %arg4[%c0_5, %c0_6] : memref<1x512xf32, #tpu.memory_space<vmem>>, vector<1x512xf32>
    %cst_7 = arith.constant dense<0.000000e+00> : vector<512xf32>
    %6 = vector.multi_reduction <add>, %3, %cst_7 [0] : vector<8x512xf32> to vector<512xf32>
    %7 = vector.shape_cast %6 : vector<512xf32> to vector<1x512xf32>
    %cst_8 = arith.constant 8.000000e+00 : f32
    %8 = vector.broadcast %cst_8 : f32 to vector<1x512xf32>
    %9 = arith.divf %7, %8 : vector<1x512xf32>
    %10 = vector.broadcast %9 : vector<1x512xf32> to vector<8x512xf32>
    %11 = arith.subf %3, %10 : vector<8x512xf32>
    %12 = arith.mulf %11, %11 : vector<8x512xf32>
    %cst_9 = arith.constant dense<0.000000e+00> : vector<512xf32>
    %13 = vector.multi_reduction <add>, %12, %cst_9 [0] : vector<8x512xf32> to vector<512xf32>
    %14 = vector.shape_cast %13 : vector<512xf32> to vector<1x512xf32>
    %cst_10 = arith.constant 8.000000e+00 : f32
    %15 = vector.broadcast %cst_10 : f32 to vector<1x512xf32>
    %16 = arith.divf %14, %15 : vector<1x512xf32>
    %cst_11 = arith.constant 9.99999974E-6 : f32
    %17 = vector.broadcast %cst_11 : f32 to vector<1x512xf32>
    %18 = arith.addf %16, %17 : vector<1x512xf32>
    %19 = math.rsqrt %18 : vector<1x512xf32>
    %20 = arith.mulf %4, %19 : vector<1x512xf32>
    %21 = arith.mulf %9, %20 : vector<1x512xf32>
    %22 = arith.subf %5, %21 : vector<1x512xf32>
    %23 = vector.broadcast %20 : vector<1x512xf32> to vector<8x512xf32>
    %24 = arith.mulf %3, %23 : vector<8x512xf32>
    %25 = vector.broadcast %22 : vector<1x512xf32> to vector<8x512xf32>
    %26 = arith.addf %24, %25 : vector<8x512xf32>
    %cst_12 = arith.constant 0.000000e+00 : f32
    %27 = vector.broadcast %cst_12 : f32 to vector<8x512xf32>
    %28 = arith.maximumf %26, %27 : vector<8x512xf32>
    %29 = arith.truncf %28 : vector<8x512xf32> to vector<8x512xbf16>
    %c0_13 = arith.constant 0 : index
    %c0_14 = arith.constant 0 : index
    %30 = vector.load %arg5[%c0_13, %c0_14] : memref<512x1024xbf16, #tpu.memory_space<vmem>>, vector<512x1024xbf16>
    %cst_15 = arith.constant dense<0.000000e+00> : vector<8x1024xf32>
    %31 = tpu.matmul %29, %30, %cst_15 {dimension_numbers = #tpu.dot_dimension_numbers<[1], [0], [0], [1], [0, 0, 1, 1], [], []>} : vector<8x512xbf16>, vector<512x1024xbf16>, vector<8x1024xf32> -> vector<8x1024xf32>
    %c0_i32 = arith.constant 0 : i32
    %32 = arith.cmpi eq, %arg0, %c0_i32 : i32
    %33 = arith.extui %32 : i1 to i32
    %c0_i32_16 = arith.constant 0 : i32
    %34 = arith.cmpi ne, %33, %c0_i32_16 : i32
    scf.if %34 {
      %c0_20 = arith.constant 0 : index
      %c0_21 = arith.constant 0 : index
      %41 = vector.load %arg11[%c0_20, %c0_21] : memref<8x1024xf32, #tpu.memory_space<vmem>>, vector<8x1024xf32>
      tpu.vector_store %arg11[%c0_20, %c0_21], %31 {strides = array<i32>} : memref<8x1024xf32, #tpu.memory_space<vmem>>, vector<8x1024xf32>,
    } else {
    }
    %c0_i32_17 = arith.constant 0 : i32
    %35 = arith.cmpi sgt, %arg0, %c0_i32_17 : i32
    %36 = arith.extui %35 : i1 to i32
    %c0_i32_18 = arith.constant 0 : i32
    %37 = arith.cmpi ne, %36, %c0_i32_18 : i32
    scf.if %37 {
      %c0_20 = arith.constant 0 : index
      %c0_21 = arith.constant 0 : index
      %41 = vector.load %arg11[%c0_20, %c0_21] : memref<8x1024xf32, #tpu.memory_space<vmem>>, vector<8x1024xf32>
      %42 = arith.addf %41, %31 : vector<8x1024xf32>
      %c0_22 = arith.constant 0 : index
      %c0_23 = arith.constant 0 : index
      %43 = vector.load %arg11[%c0_22, %c0_23] : memref<8x1024xf32, #tpu.memory_space<vmem>>, vector<8x1024xf32>
      tpu.vector_store %arg11[%c0_22, %c0_23], %42 {strides = array<i32>} : memref<8x1024xf32, #tpu.memory_space<vmem>>, vector<8x1024xf32>,
    } else {
    }
    %c1_i32 = arith.constant 1 : i32
    %38 = arith.cmpi eq, %arg0, %c1_i32 : i32
    %39 = arith.extui %38 : i1 to i32
    %c0_i32_19 = arith.constant 0 : i32
    %40 = arith.cmpi ne, %39, %c0_i32_19 : i32
    scf.if %40 {
      %c0_20 = arith.constant 0 : index
      %c0_21 = arith.constant 0 : index
      %41 = vector.load %arg11[%c0_20, %c0_21] : memref<8x1024xf32, #tpu.memory_space<vmem>>, vector<8x1024xf32>
      %c0_22 = arith.constant 0 : index
      %c0_23 = arith.constant 0 : index
      %42 = vector.load %arg6[%c0_22, %c0_23] : memref<1x1024xf32, #tpu.memory_space<vmem>>, vector<1x1024xf32>
      %c0_24 = arith.constant 0 : index
      %c0_25 = arith.constant 0 : index
      %43 = vector.load %arg7[%c0_24, %c0_25] : memref<1x1024xf32, #tpu.memory_space<vmem>>, vector<1x1024xf32>
      %cst_26 = arith.constant dense<0.000000e+00> : vector<1024xf32>
      %44 = vector.multi_reduction <add>, %41, %cst_26 [0] : vector<8x1024xf32> to vector<1024xf32>
      %45 = vector.shape_cast %44 : vector<1024xf32> to vector<1x1024xf32>
      %cst_27 = arith.constant 8.000000e+00 : f32
      %46 = vector.broadcast %cst_27 : f32 to vector<1x1024xf32>
      %47 = arith.divf %45, %46 : vector<1x1024xf32>
      %48 = vector.broadcast %47 : vector<1x1024xf32> to vector<8x1024xf32>
      %49 = arith.subf %41, %48 : vector<8x1024xf32>
      %50 = arith.mulf %49, %49 : vector<8x1024xf32>
      %cst_28 = arith.constant dense<0.000000e+00> : vector<1024xf32>
      %51 = vector.multi_reduction <add>, %50, %cst_28 [0] : vector<8x1024xf32> to vector<1024xf32>
      %52 = vector.shape_cast %51 : vector<1024xf32> to vector<1x1024xf32>
      %cst_29 = arith.constant 8.000000e+00 : f32
      %53 = vector.broadcast %cst_29 : f32 to vector<1x1024xf32>
      %54 = arith.divf %52, %53 : vector<1x1024xf32>
      %cst_30 = arith.constant 9.99999974E-6 : f32
      %55 = vector.broadcast %cst_30 : f32 to vector<1x1024xf32>
      %56 = arith.addf %54, %55 : vector<1x1024xf32>
      %57 = math.rsqrt %56 : vector<1x1024xf32>
      %58 = arith.mulf %42, %57 : vector<1x1024xf32>
      %59 = arith.mulf %47, %58 : vector<1x1024xf32>
      %60 = arith.subf %43, %59 : vector<1x1024xf32>
      %61 = vector.broadcast %58 : vector<1x1024xf32> to vector<8x1024xf32>
      %62 = arith.mulf %41, %61 : vector<8x1024xf32>
      %63 = vector.broadcast %60 : vector<1x1024xf32> to vector<8x1024xf32>
      %64 = arith.addf %62, %63 : vector<8x1024xf32>
      %cst_31 = arith.constant 0.000000e+00 : f32
      %65 = vector.broadcast %cst_31 : f32 to vector<8x1024xf32>
      %66 = arith.maximumf %64, %65 : vector<8x1024xf32>
      %67 = arith.truncf %66 : vector<8x1024xf32> to vector<8x1024xbf16>
      %c0_32 = arith.constant 0 : index
      %c0_33 = arith.constant 0 : index
      %68 = vector.load %arg8[%c0_32, %c0_33] : memref<1024x128xbf16, #tpu.memory_space<vmem>>, vector<1024x128xbf16>
      %cst_34 = arith.constant dense<0.000000e+00> : vector<8x128xf32>
      %69 = tpu.matmul %67, %68, %cst_34 {dimension_numbers = #tpu.dot_dimension_numbers<[1], [0], [0], [1], [0, 0, 1, 1], [], []>} : vector<8x1024xbf16>, vector<1024x128xbf16>, vector<8x128xf32> -> vector<8x128xf32>
      %c0_35 = arith.constant 0 : index
      %c0_36 = arith.constant 0 : index
      %70 = vector.load %arg9[%c0_35, %c0_36] : memref<1x128xf32, #tpu.memory_space<vmem>>, vector<1x128xf32>
      %71 = vector.broadcast %70 : vector<1x128xf32> to vector<8x128xf32>
      %72 = arith.addf %69, %71 : vector<8x128xf32>
      %c0_37 = arith.constant 0 : index
      %c0_38 = arith.constant 0 : index
      %73 = vector.load %arg10[%c0_37, %c0_38] : memref<8x128xf32, #tpu.memory_space<vmem>>, vector<8x128xf32>
      tpu.vector_store %arg10[%c0_37, %c0_38], %72 {strides = array<i32>} : memref<8x128xf32, #tpu.memory_space<vmem>>, vector<8x128xf32>,
    } else {
    }
    return
  }
  func.func @transform_0(%arg0: i32) -> (i32, i32) {
    %c0_i32 = arith.constant 0 : i32
    %c0_i32_0 = arith.constant 0 : i32
    %c0_i32_1 = arith.constant 0 : i32
    return %c0_i32, %c0_i32_0 : i32, i32
  }
  func.func @transform_1(%arg0: i32) -> (i32, i32) {
    %c0_i32 = arith.constant 0 : i32
    %c0_i32_0 = arith.constant 0 : i32
    return %c0_i32, %arg0 : i32, i32
  }
  func.func @transform_2(%arg0: i32) -> (i32, i32) {
    %c0_i32 = arith.constant 0 : i32
    %c0_i32_0 = arith.constant 0 : i32
    return %c0_i32, %arg0 : i32, i32
  }
  func.func @transform_3(%arg0: i32) -> (i32, i32) {
    %c0_i32 = arith.constant 0 : i32
    %c0_i32_0 = arith.constant 0 : i32
    return %c0_i32, %arg0 : i32, i32
  }
  func.func @transform_4(%arg0: i32) -> (i32, i32) {
    %c0_i32 = arith.constant 0 : i32
    %c0_i32_0 = arith.constant 0 : i32
    return %arg0, %c0_i32 : i32, i32
  }
  func.func @transform_5(%arg0: i32) -> (i32, i32) {
    %c0_i32 = arith.constant 0 : i32
    %c0_i32_0 = arith.constant 0 : i32
    %c0_i32_1 = arith.constant 0 : i32
    return %c0_i32, %c0_i32_0 : i32, i32
  }
  func.func @transform_6(%arg0: i32) -> (i32, i32) {
    %c0_i32 = arith.constant 0 : i32
    %c0_i32_0 = arith.constant 0 : i32
    %c0_i32_1 = arith.constant 0 : i32
    return %c0_i32, %c0_i32_0 : i32, i32
  }
  func.func @transform_7(%arg0: i32) -> (i32, i32) {
    %c0_i32 = arith.constant 0 : i32
    %c0_i32_0 = arith.constant 0 : i32
    %c0_i32_1 = arith.constant 0 : i32
    return %c0_i32, %c0_i32_0 : i32, i32
  }
  func.func @transform_8(%arg0: i32) -> (i32, i32) {
    %c0_i32 = arith.constant 0 : i32
    %c0_i32_0 = arith.constant 0 : i32
    %c0_i32_1 = arith.constant 0 : i32
    return %c0_i32, %c0_i32_0 : i32, i32
  }
  func.func @transform_9(%arg0: i32) -> (i32, i32) {
    %c0_i32 = arith.constant 0 : i32
    %c0_i32_0 = arith.constant 0 : i32
    %c0_i32_1 = arith.constant 0 : i32
    return %c0_i32, %c0_i32_0 : i32, i32
  }
}

</mosaic_0001>

<llo_original>
// kernel: tpu_custom_call.1
$region0: #{tpu_custom_call.1}
  #allocation0 [shape = 'u32[]', space=smem, size = 0x4, offset = 0x4, fixed_abs, tag = 'smem constant byte address 0x4 - core index']
  #allocation1 [shape = 'u32[144,128]{1,0:T(1,128)}', space=vmem, size = 0x12000, scoped, tag = 'internal scratch']
  #allocation2 [shape = 'f32[8,1024]{1,0:T(8,128)}', space=vmem, size = 0x8000, scoped, tag = 'scratch operand']
  %s0 = inlined_call_operand.hbm [shape: f32[8,2048], index: 0, kind: input, shape index: {}]
  %s1 = inlined_call_operand.hbm [shape: bf16[2048,1024], index: 1, kind: input, shape index: {}]
  %s2 = inlined_call_operand.hbm [shape: f32[1,1024], index: 2, kind: input, shape index: {}]
  %s3 = inlined_call_operand.hbm [shape: f32[1,1024], index: 3, kind: input, shape index: {}]
  %s4 = inlined_call_operand.hbm [shape: bf16[1024,1024], index: 4, kind: input, shape index: {}]
  %s5 = inlined_call_operand.hbm [shape: f32[1,1024], index: 5, kind: input, shape index: {}]
  %s6 = inlined_call_operand.hbm [shape: f32[1,1024], index: 6, kind: input, shape index: {}]
  %s7 = inlined_call_operand.hbm [shape: bf16[1024,128], index: 7, kind: input, shape index: {}]
  %s8 = inlined_call_operand.hbm [shape: f32[1,128], index: 8, kind: input, shape index: {}]
  %s9 = inlined_call_operand.hbm [shape: f32[8,128], index: 9, kind: output, shape index: {}]
  %s10 = sld [smem:[#allocation0]]
  $region117: #{tpu_custom_call.1} parent=0
    _
  %s12 = ssub.s32 1, %s10
  %s13 = scalar_select 0, %s12, %s10
  $region1: #{tpu_custom_call.1} parent=0
    #allocation3 [shape = 'u8[65536]{0}', space=vmem, size = 0x10000, scoped, tag = 'input window, operand 0, single buffered']
    #allocation4 [shape = 's32[2]{0}', space=sflag, size = 0x8, scoped, tag = 'scoped memory for tpu_custom_call.1']
    #allocation5 [shape = 's32[2]{0}', space=sflag, size = 0x8, scoped, tag = 'scoped memory for tpu_custom_call.1']
    #allocation6 [shape = 'u8[4194304]{0}', space=vmem, size = 0x400000, scoped, tag = 'input window, operand 1']
    #allocation7 [shape = 's32[2]{0}', space=sflag, size = 0x8, scoped, tag = 'scoped memory for tpu_custom_call.1']
    #allocation8 [shape = 'u8[4096]{0}', space=vmem, size = 0x1000, scoped, tag = 'input window, operand 2']
    #allocation9 [shape = 'u8[4096]{0}', space=vmem, size = 0x1000, scoped, tag = 'input window, operand 3']
    #allocation10 [shape = 's32[2]{0}', space=sflag, size = 0x8, scoped, tag = 'scoped memory for tpu_custom_call.1']
    #allocation11 [shape = 'u8[2097152]{0}', space=vmem, size = 0x200000, scoped, tag = 'input window, operand 4']
    #allocation12 [shape = 'u8[4096]{0}', space=vmem, size = 0x1000, scoped, tag = 'input window, operand 5, single buffered']
    #allocation13 [shape = 's32[1]{0}', space=sflag, size = 0x4, scoped, tag = 'scoped memory for tpu_custom_call.1']
    #allocation14 [shape = 'u8[4096]{0}', space=vmem, size = 0x1000, scoped, tag = 'input window, operand 6, single buffered']
    #allocation15 [shape = 'u8[262144]{0}', space=vmem, size = 0x40000, scoped, tag = 'input window, operand 7, single buffered']
    #allocation16 [shape = 's32[1]{0}', space=sflag, size = 0x4, scoped, tag = 'scoped memory for tpu_custom_call.1']
    #allocation17 [shape = 'u8[512]{0}', space=vmem, size = 0x400, scoped, tag = 'input window, operand 8, single buffered']
    #allocation18 [shape = 'u8[4096]{0}', space=vmem, size = 0x1000, scoped, tag = 'output window, operand 0, single buffered']
    %14 = vsyncpa [#allocation4], 0
    %15 = vsyncpa [#allocation7], 0
    %s16 = scalar_lea.sflag [#allocation7], 1
    %17 = vsyncpa %s16, 0
    %18 = vsyncpa [#allocation10], 0
    %s19 = scalar_lea.sflag [#allocation10], 1
    %20 = vsyncpa %s19, 0
    %21 = vsyncpa [#allocation13], 0
    %22 = vsyncpa [#allocation16], 0
    %23 = vsyncpa [#allocation5], 0
    loop: start=0, step=1, limit=4
    $region2: #{tpu_custom_call.1} parent=1 // loop_pre_header
      _
    $region3: #{tpu_custom_call.1} parent=1 // loop_header
      %s25 = sphi 0, %s29
      %p26 = scmp.ge.s32.totalorder %s25, 4
      %s33 = sphi 0, %s33
      %s35 = sphi 0, %s33
      %s36 = sphi 0, %s35
      %s50 = sphi 0, %s36
      %s56 = sphi 0, %s58
      %s59 = sphi 0, %s56
      %s60 = sphi 0, %s59
      %s76 = sphi 0, %s60
      %s82 = sphi 0, %s84
      %s85 = sphi 0, %s82
      %s86 = sphi 0, %s85
      %s102 = sphi 0, %s86
      %s108 = sphi 0, %s110
      %s111 = sphi 0, %s108
      %s112 = sphi 0, %s111
      %s128 = sphi 0, %s112
      %s134 = sphi 0, %s136
      %s137 = sphi 0, %s134
      %s138 = sphi 0, %s137
      %s154 = sphi 0, %s138
      %s158 = sphi 0, %s158
      %s160 = sphi 0, %s158
      %s161 = sphi 0, %s160
      %s175 = sphi 0, %s161
      %s179 = sphi 0, %s179
      %s181 = sphi 0, %s179
      %s182 = sphi 0, %s181
      %s196 = sphi 0, %s182
      %s200 = sphi 0, %s200
      %s202 = sphi 0, %s200
      %s203 = sphi 0, %s202
      %s217 = sphi 0, %s203
      %s221 = sphi 0, %s221
      %s223 = sphi 0, %s221
      %s224 = sphi 0, %s223
      %s238 = sphi 0, %s224
      %s242 = sphi 0, %s242
      %s244 = sphi 0, %s242
      %s245 = sphi 0, %s244
      %s259 = sphi 0, %s245
    $region4: #{tpu_custom_call.1} parent=1 // loop_header_branch
      %28 = sbr.rel (%p26) target = $region8
    $region5: #{tpu_custom_call.1} parent=1 // loop_body
      %s30 = ssub.s32 %s25, 1
      %s31 = ssub.s32 %s25, 2
      %s32 = sadd.s32 %s25, 1
      %s34 = sadd.s32 %s33, 1
      %p37 = scmp.eq.s32.totalorder %s25, 1
      %p38 = scmp.ne.s32.totalorder %s33, %s35
      %p39 = scmp.eq.s32.totalorder %s25, 0
      %p40 = por %p38, %p39
      %p41 = scmp.ne.s32.totalorder %s33, %s35
      %p42 = scmp.eq.s32.totalorder %s30, 1
      %p43 = por %p41, %p42
      %p44 = scmp.ne.s32.totalorder %s35, %s36
      %p45 = scmp.eq.s32.totalorder %s30, 0
      %p46 = por %p44, %p45
      %p47 = scmp.ne.s32.totalorder %s35, %s36
      %p48 = scmp.eq.s32.totalorder %s31, 1
      %p49 = por %p47, %p48
      %p51 = scmp.ne.s32.totalorder %s36, %s50
      %p52 = scmp.eq.s32.totalorder %s31, 0
      %p53 = por %p51, %p52
      %s54 = ssub.s32 %s25, %s32
      %p55 = scmp.eq.s32.totalorder %s54, 0
      %s57 = sadd.s32 %s56, 1
      %s58 = scalar_select %p55, %s56, %s57
      %p61 = pneg %p55
      %p62 = scmp.eq.s32.totalorder %s25, 1
      %p63 = por %p61, %p62
      %p64 = scmp.ne.s32.totalorder %s56, %s59
      %p65 = scmp.eq.s32.totalorder %s25, 0
      %p66 = por %p64, %p65
      %p67 = scmp.ne.s32.totalorder %s56, %s59
      %p68 = scmp.eq.s32.totalorder %s30, 1
      %p69 = por %p67, %p68
      %p70 = scmp.ne.s32.totalorder %s59, %s60
      %p71 = scmp.eq.s32.totalorder %s30, 0
      %p72 = por %p70, %p71
      %p73 = scmp.ne.s32.totalorder %s59, %s60
      %p74 = scmp.eq.s32.totalorder %s31, 1
      %p75 = por %p73, %p74
      %p77 = scmp.ne.s32.totalorder %s60, %s76
      %p78 = scmp.eq.s32.totalorder %s31, 0
      %p79 = por %p77, %p78
      %s80 = ssub.s32 %s25, %s32
      %p81 = scmp.eq.s32.totalorder %s80, 0
      %s83 = sadd.s32 %s82, 1
      %s84 = scalar_select %p81, %s82, %s83
      %p87 = pneg %p81
      %p88 = scmp.eq.s32.totalorder %s25, 1
      %p89 = por %p87, %p88
      %p90 = scmp.ne.s32.totalorder %s82, %s85
      %p91 = scmp.eq.s32.totalorder %s25, 0
      %p92 = por %p90, %p91
      %p93 = scmp.ne.s32.totalorder %s82, %s85
      %p94 = scmp.eq.s32.totalorder %s30, 1
      %p95 = por %p93, %p94
      %p96 = scmp.ne.s32.totalorder %s85, %s86
      %p97 = scmp.eq.s32.totalorder %s30, 0
      %p98 = por %p96, %p97
      %p99 = scmp.ne.s32.totalorder %s85, %s86
      %p100 = scmp.eq.s32.totalorder %s31, 1
      %p101 = por %p99, %p100
      %p103 = scmp.ne.s32.totalorder %s86, %s102
      %p104 = scmp.eq.s32.totalorder %s31, 0
      %p105 = por %p103, %p104
      %s106 = ssub.s32 %s25, %s32
      %p107 = scmp.eq.s32.totalorder %s106, 0
      %s109 = sadd.s32 %s108, 1
      %s110 = scalar_select %p107, %s108, %s109
      %p113 = pneg %p107
      %p114 = scmp.eq.s32.totalorder %s25, 1
      %p115 = por %p113, %p114
      %p116 = scmp.ne.s32.totalorder %s108, %s111
      %p117 = scmp.eq.s32.totalorder %s25, 0
      %p118 = por %p116, %p117
      %p119 = scmp.ne.s32.totalorder %s108, %s111
      %p120 = scmp.eq.s32.totalorder %s30, 1
      %p121 = por %p119, %p120
      %p122 = scmp.ne.s32.totalorder %s111, %s112
      %p123 = scmp.eq.s32.totalorder %s30, 0
      %p124 = por %p122, %p123
      %p125 = scmp.ne.s32.totalorder %s111, %s112
      %p126 = scmp.eq.s32.totalorder %s31, 1
      %p127 = por %p125, %p126
      %p129 = scmp.ne.s32.totalorder %s112, %s128
      %p130 = scmp.eq.s32.totalorder %s31, 0
      %p131 = por %p129, %p130
      %s132 = ssub.s32 %s25, %s32
      %p133 = scmp.eq.s32.totalorder %s132, 0
      %s135 = sadd.s32 %s134, 1
      %s136 = scalar_select %p133, %s134, %s135
      %p139 = pneg %p133
      %p140 = scmp.eq.s32.totalorder %s25, 1
      %p141 = por %p139, %p140
      %p142 = scmp.ne.s32.totalorder %s134, %s137
      %p143 = scmp.eq.s32.totalorder %s25, 0
      %p144 = por %p142, %p143
      %p145 = scmp.ne.s32.totalorder %s134, %s137
      %p146 = scmp.eq.s32.totalorder %s30, 1
      %p147 = por %p145, %p146
      %p148 = scmp.ne.s32.totalorder %s137, %s138
      %p149 = scmp.eq.s32.totalorder %s30, 0
      %p150 = por %p148, %p149
      %p151 = scmp.ne.s32.totalorder %s137, %s138
      %p152 = scmp.eq.s32.totalorder %s31, 1
      %p153 = por %p151, %p152
      %p155 = scmp.ne.s32.totalorder %s138, %s154
      %p156 = scmp.eq.s32.totalorder %s31, 0
      %p157 = por %p155, %p156
      %s159 = sadd.s32 %s158, 1
      %p162 = scmp.eq.s32.totalorder %s25, 1
      %p163 = scmp.ne.s32.totalorder %s158, %s160
      %p164 = scmp.eq.s32.totalorder %s25, 0
      %p165 = por %p163, %p164
      %p166 = scmp.ne.s32.totalorder %s158, %s160
      %p167 = scmp.eq.s32.totalorder %s30, 1
      %p168 = por %p166, %p167
      %p169 = scmp.ne.s32.totalorder %s160, %s161
      %p170 = scmp.eq.s32.totalorder %s30, 0
      %p171 = por %p169, %p170
      %p172 = scmp.ne.s32.totalorder %s160, %s161
      %p173 = scmp.eq.s32.totalorder %s31, 1
      %p174 = por %p172, %p173
      %p176 = scmp.ne.s32.totalorder %s161, %s175
      %p177 = scmp.eq.s32.totalorder %s31, 0
      %p178 = por %p176, %p177
      %s180 = sadd.s32 %s179, 1
      %p183 = scmp.eq.s32.totalorder %s25, 1
      %p184 = scmp.ne.s32.totalorder %s179, %s181
      %p185 = scmp.eq.s32.totalorder %s25, 0
      %p186 = por %p184, %p185
      %p187 = scmp.ne.s32.totalorder %s179, %s181
      %p188 = scmp.eq.s32.totalorder %s30, 1
      %p189 = por %p187, %p188
      %p190 = scmp.ne.s32.totalorder %s181, %s182
      %p191 = scmp.eq.s32.totalorder %s30, 0
      %p192 = por %p190, %p191
      %p193 = scmp.ne.s32.totalorder %s181, %s182
      %p194 = scmp.eq.s32.totalorder %s31, 1
      %p195 = por %p193, %p194
      %p197 = scmp.ne.s32.totalorder %s182, %s196
      %p198 = scmp.eq.s32.totalorder %s31, 0
      %p199 = por %p197, %p198
      %s201 = sadd.s32 %s200, 1
      %p204 = scmp.eq.s32.totalorder %s25, 1
      %p205 = scmp.ne.s32.totalorder %s200, %s202
      %p206 = scmp.eq.s32.totalorder %s25, 0
      %p207 = por %p205, %p206
      %p208 = scmp.ne.s32.totalorder %s200, %s202
      %p209 = scmp.eq.s32.totalorder %s30, 1
      %p210 = por %p208, %p209
      %p211 = scmp.ne.s32.totalorder %s202, %s203
      %p212 = scmp.eq.s32.totalorder %s30, 0
      %p213 = por %p211, %p212
      %p214 = scmp.ne.s32.totalorder %s202, %s203
      %p215 = scmp.eq.s32.totalorder %s31, 1
      %p216 = por %p214, %p215
      %p218 = scmp.ne.s32.totalorder %s203, %s217
      %p219 = scmp.eq.s32.totalorder %s31, 0
      %p220 = por %p218, %p219
      %s222 = sadd.s32 %s221, 1
      %p225 = scmp.eq.s32.totalorder %s25, 1
      %p226 = scmp.ne.s32.totalorder %s221, %s223
      %p227 = scmp.eq.s32.totalorder %s25, 0
      %p228 = por %p226, %p227
      %p229 = scmp.ne.s32.totalorder %s221, %s223
      %p230 = scmp.eq.s32.totalorder %s30, 1
      %p231 = por %p229, %p230
      %p232 = scmp.ne.s32.totalorder %s223, %s224
      %p233 = scmp.eq.s32.totalorder %s30, 0
      %p234 = por %p232, %p233
      %p235 = scmp.ne.s32.totalorder %s223, %s224
      %p236 = scmp.eq.s32.totalorder %s31, 1
      %p237 = por %p235, %p236
      %p239 = scmp.ne.s32.totalorder %s224, %s238
      %p240 = scmp.eq.s32.totalorder %s31, 0
      %p241 = por %p239, %p240
      %s243 = sadd.s32 %s242, 1
      %p246 = scmp.eq.s32.totalorder %s25, 1
      %p247 = scmp.ne.s32.totalorder %s242, %s244
      %p248 = scmp.eq.s32.totalorder %s25, 0
      %p249 = por %p247, %p248
      %p250 = scmp.ne.s32.totalorder %s242, %s244
      %p251 = scmp.eq.s32.totalorder %s30, 1
      %p252 = por %p250, %p251
      %p253 = scmp.ne.s32.totalorder %s244, %s245
      %p254 = scmp.eq.s32.totalorder %s30, 0
      %p255 = por %p253, %p254
      %p256 = scmp.ne.s32.totalorder %s244, %s245
      %p257 = scmp.eq.s32.totalorder %s31, 1
      %p258 = por %p256, %p257
      %p260 = scmp.ne.s32.totalorder %s245, %s259
      %p261 = scmp.eq.s32.totalorder %s31, 0
      %p262 = por %p260, %p261
      %p263 = scmp.le.s32.totalorder 1, %s25
      %p264 = scmp.lt.s32.totalorder %s25, 3
      %p265 = pnand %p263, %p264
      %p266 = pneg %p265
      // Predicated region
      $region9: #{tpu_custom_call.1} parent=5 // pred_check
        _
      $region10: #{tpu_custom_call.1} parent=5 // pred_check_branch
        %268 = sbr.rel (%p265) target = $region12
      $region11: #{tpu_custom_call.1} parent=5 // pred_region
        %s269 = ssub.s32 %s25, 1
        // Predicated region
        $region13: #{tpu_custom_call.1} parent=11 // pred_check
          %p270 = pneg %p46
        $region14: #{tpu_custom_call.1} parent=11 // pred_check_branch
          %272 = sbr.rel (%p270) target = $region16
        $region15: #{tpu_custom_call.1} parent=11 // pred_region
          %s274 = ssub.s32 2048, 2048
          %275 = vsyncadd [#allocation4], %s274
          %s277 = sshll.u32 [#allocation3], 4
          %s278 = int_to_ptr.vmem [resolvable:$true] %s277
          %280 = dma.hbm_to_vmem [thread:$0]  %s0, 2048, %s278, [#allocation4]
        $region16: #{tpu_custom_call.1} parent=11 // pred_fallthru
          _
        // Predicated region
        $region17: #{tpu_custom_call.1} parent=11 // pred_check
          %p281 = pneg %p171
        $region18: #{tpu_custom_call.1} parent=11 // pred_check_branch
          %283 = sbr.rel (%p281) target = $region20
        $region19: #{tpu_custom_call.1} parent=11 // pred_region
          %s285 = ssub.s32 128, 128
          %286 = vsyncadd [#allocation13], %s285
          %s288 = sshll.u32 [#allocation12], 4
          %s289 = int_to_ptr.vmem [resolvable:$true] %s288
          %291 = dma.hbm_to_vmem [thread:$0]  %s5, 128, %s289, [#allocation13]
        $region20: #{tpu_custom_call.1} parent=11 // pred_fallthru
          _
        // Predicated region
        $region21: #{tpu_custom_call.1} parent=11 // pred_check
          %p292 = pneg %p192
        $region22: #{tpu_custom_call.1} parent=11 // pred_check_branch
          %294 = sbr.rel (%p292) target = $region24
        $region23: #{tpu_custom_call.1} parent=11 // pred_region
          %s296 = ssub.s32 128, 128
          %297 = vsyncadd [#allocation13], %s296
          %s299 = sshll.u32 [#allocation14], 4
          %s300 = int_to_ptr.vmem [resolvable:$true] %s299
          %302 = dma.hbm_to_vmem [thread:$0]  %s6, 128, %s300, [#allocation13]
        $region24: #{tpu_custom_call.1} parent=11 // pred_fallthru
          _
        // Predicated region
        $region25: #{tpu_custom_call.1} parent=11 // pred_check
          %p303 = pneg %p213
        $region26: #{tpu_custom_call.1} parent=11 // pred_check_branch
          %305 = sbr.rel (%p303) target = $region28
        $region27: #{tpu_custom_call.1} parent=11 // pred_region
          %s307 = ssub.s32 8192, 8192
          %308 = vsyncadd [#allocation16], %s307
          %s309 = sshll.u32 [#allocation15], 4
          %s310 = int_to_ptr.vmem [resolvable:$true] %s309
          %315 = dma.hbm_to_vmem [thread:$0]  %s7, 8192, %s310, [#allocation16], 64, 64, 4
        $region28: #{tpu_custom_call.1} parent=11 // pred_fallthru
          _
        // Predicated region
        $region29: #{tpu_custom_call.1} parent=11 // pred_check
          %p316 = pneg %p234
        $region30: #{tpu_custom_call.1} parent=11 // pred_check_branch
          %318 = sbr.rel (%p316) target = $region32
        $region31: #{tpu_custom_call.1} parent=11 // pred_region
          %s320 = ssub.s32 16, 16
          %321 = vsyncadd [#allocation16], %s320
          %s323 = sshll.u32 [#allocation17], 4
          %s324 = int_to_ptr.vmem [resolvable:$true] %s323
          %326 = dma.hbm_to_vmem [thread:$0]  %s8, 16, %s324, [#allocation16]
        $region32: #{tpu_custom_call.1} parent=11 // pred_fallthru
          _
      $region12: #{tpu_custom_call.1} parent=5 // pred_fallthru
        _
      %p327 = scmp.lt.s32.totalorder %s25, 2
      // Predicated region
      $region33: #{tpu_custom_call.1} parent=5 // pred_check
        %p328 = pneg %p327
      $region34: #{tpu_custom_call.1} parent=5 // pred_check_branch
        %330 = sbr.rel (%p328) target = $region36
      $region35: #{tpu_custom_call.1} parent=5 // pred_region
        // Predicated region
        $region37: #{tpu_custom_call.1} parent=35 // pred_check
          %p331 = pneg %p66
        $region38: #{tpu_custom_call.1} parent=35 // pred_check_branch
          %333 = sbr.rel (%p331) target = $region40
        $region39: #{tpu_custom_call.1} parent=35 // pred_region
          %s334 = sand.u32 %s25, 1
          %s335 = scalar_lea.sflag [#allocation7], %s334
          %s336 = sand.u32 %s56, 1
          %s337 = smul.addr %s336, 4096
          %s338 = scalar_lea.vmem [#allocation6], %s337
          %s339 = smul.u32 4, %s25
          %s341 = ssub.s32 65536, 65536
          %342 = vsyncadd %s335, %s341
          %s343 = smul.addr %s339, 64
          %s344 = scalar_lea.hbm %s1, %s343
          %s345 = sshll.u32 %s338, 4
          %s346 = int_to_ptr.vmem [resolvable:$true] %s345
          %351 = dma.hbm_to_vmem [thread:$0]  %s344, 65536, %s346, %s335, 512, 256, 16
        $region40: #{tpu_custom_call.1} parent=35 // pred_fallthru
          _
        // Predicated region
        $region41: #{tpu_custom_call.1} parent=35 // pred_check
          %p352 = pneg %p92
        $region42: #{tpu_custom_call.1} parent=35 // pred_check_branch
          %354 = sbr.rel (%p352) target = $region44
        $region43: #{tpu_custom_call.1} parent=35 // pred_region
          %s355 = sand.u32 %s25, 1
          %s356 = scalar_lea.sflag [#allocation7], %s355
          %s357 = sand.u32 %s82, 1
          %s358 = smul.addr %s357, 4
          %s359 = scalar_lea.vmem [#allocation8], %s358
          %s360 = smul.u32 4, %s25
          %s362 = ssub.s32 64, 64
          %363 = vsyncadd %s356, %s362
          %s364 = smul.addr %s360, 16
          %s365 = scalar_lea.hbm %s2, %s364
          %s367 = sshll.u32 %s359, 4
          %s368 = int_to_ptr.vmem [resolvable:$true] %s367
          %370 = dma.hbm_to_vmem [thread:$0]  %s365, 64, %s368, %s356
        $region44: #{tpu_custom_call.1} parent=35 // pred_fallthru
          _
        // Predicated region
        $region45: #{tpu_custom_call.1} parent=35 // pred_check
          %p371 = pneg %p118
        $region46: #{tpu_custom_call.1} parent=35 // pred_check_branch
          %373 = sbr.rel (%p371) target = $region48
        $region47: #{tpu_custom_call.1} parent=35 // pred_region
          %s374 = sand.u32 %s25, 1
          %s375 = scalar_lea.sflag [#allocation10], %s374
          %s376 = sand.u32 %s108, 1
          %s377 = smul.addr %s376, 4
          %s378 = scalar_lea.vmem [#allocation9], %s377
          %s379 = smul.u32 4, %s25
          %s381 = ssub.s32 64, 64
          %382 = vsyncadd %s375, %s381
          %s383 = smul.addr %s379, 16
          %s384 = scalar_lea.hbm %s3, %s383
          %s386 = sshll.u32 %s378, 4
          %s387 = int_to_ptr.vmem [resolvable:$true] %s386
          %389 = dma.hbm_to_vmem [thread:$0]  %s384, 64, %s387, %s375
        $region48: #{tpu_custom_call.1} parent=35 // pred_fallthru
          _
        // Predicated region
        $region49: #{tpu_custom_call.1} parent=35 // pred_check
          %p390 = pneg %p144
        $region50: #{tpu_custom_call.1} parent=35 // pred_check_branch
          %392 = sbr.rel (%p390) target = $region52
        $region51: #{tpu_custom_call.1} parent=35 // pred_region
          %s393 = sand.u32 %s25, 1
          %s394 = scalar_lea.sflag [#allocation10], %s393
          %s395 = sand.u32 %s134, 1
          %s396 = smul.addr %s395, 2048
          %s397 = scalar_lea.vmem [#allocation11], %s396
          %s398 = smul.u32 64, %s25
          %s400 = ssub.s32 32768, 32768
          %401 = vsyncadd %s394, %s400
          %s402 = smul.addr %s398, 8
          %s403 = smul.addr %s402, 64
          %s404 = scalar_lea.hbm %s4, %s403
          %s405 = sshll.u32 %s397, 4
          %s406 = int_to_ptr.vmem [resolvable:$true] %s405
          %411 = dma.hbm_to_vmem [thread:$0]  %s404, 32768, %s406, %s394, 512, 512, 32
        $region52: #{tpu_custom_call.1} parent=35 // pred_fallthru
          _
      $region36: #{tpu_custom_call.1} parent=5 // pred_fallthru
        _
      %p412 = scmp.le.s32.totalorder 1, %s25
      %p413 = scmp.lt.s32.totalorder %s25, 3
      %p414 = pnand %p412, %p413
      %p415 = pneg %p414
      // Predicated region
      $region53: #{tpu_custom_call.1} parent=5 // pred_check
        _
      $region54: #{tpu_custom_call.1} parent=5 // pred_check_branch
        %417 = sbr.rel (%p414) target = $region56
      $region55: #{tpu_custom_call.1} parent=5 // pred_region
        %s418 = ssub.s32 %s25, 1
        // Predicated region
        $region57: #{tpu_custom_call.1} parent=55 // pred_check
          %p419 = pneg %p46
        $region58: #{tpu_custom_call.1} parent=55 // pred_check_branch
          %421 = sbr.rel (%p419) target = $region60
        $region59: #{tpu_custom_call.1} parent=55 // pred_region
          %422 = dma.done [#allocation4], 2048
        $region60: #{tpu_custom_call.1} parent=55 // pred_fallthru
          _
        %s423 = sand.u32 %s30, 1
        %s424 = scalar_lea.sflag [#allocation7], %s423
        %s425 = sand.u32 %s59, 1
        %s426 = smul.addr %s425, 4096
        %s427 = scalar_lea.vmem [#allocation6], %s426
        // Predicated region
        $region61: #{tpu_custom_call.1} parent=55 // pred_check
          %p428 = pneg %p72
        $region62: #{tpu_custom_call.1} parent=55 // pred_check_branch
          %430 = sbr.rel (%p428) target = $region64
        $region63: #{tpu_custom_call.1} parent=55 // pred_region
          %431 = dma.done %s424, 65536
        $region64: #{tpu_custom_call.1} parent=55 // pred_fallthru
          _
        %s432 = sand.u32 %s30, 1
        %s433 = scalar_lea.sflag [#allocation7], %s432
        %s434 = sand.u32 %s85, 1
        %s435 = smul.addr %s434, 4
        %s436 = scalar_lea.vmem [#allocation8], %s435
        // Predicated region
        $region65: #{tpu_custom_call.1} parent=55 // pred_check
          %p437 = pneg %p98
        $region66: #{tpu_custom_call.1} parent=55 // pred_check_branch
          %439 = sbr.rel (%p437) target = $region68
        $region67: #{tpu_custom_call.1} parent=55 // pred_region
          %440 = dma.done %s433, 64
        $region68: #{tpu_custom_call.1} parent=55 // pred_fallthru
          _
        %s441 = sand.u32 %s30, 1
        %s442 = scalar_lea.sflag [#allocation10], %s441
        %s443 = sand.u32 %s111, 1
        %s444 = smul.addr %s443, 4
        %s445 = scalar_lea.vmem [#allocation9], %s444
        // Predicated region
        $region69: #{tpu_custom_call.1} parent=55 // pred_check
          %p446 = pneg %p124
        $region70: #{tpu_custom_call.1} parent=55 // pred_check_branch
          %448 = sbr.rel (%p446) target = $region72
        $region71: #{tpu_custom_call.1} parent=55 // pred_region
          %449 = dma.done %s442, 64
        $region72: #{tpu_custom_call.1} parent=55 // pred_fallthru
          _
        %s450 = sand.u32 %s30, 1
        %s451 = scalar_lea.sflag [#allocation10], %s450
        %s452 = sand.u32 %s137, 1
        %s453 = smul.addr %s452, 2048
        %s454 = scalar_lea.vmem [#allocation11], %s453
        // Predicated region
        $region73: #{tpu_custom_call.1} parent=55 // pred_check
          %p455 = pneg %p150
        $region74: #{tpu_custom_call.1} parent=55 // pred_check_branch
          %457 = sbr.rel (%p455) target = $region76
        $region75: #{tpu_custom_call.1} parent=55 // pred_region
          %458 = dma.done %s451, 32768
        $region76: #{tpu_custom_call.1} parent=55 // pred_fallthru
          _
        // Predicated region
        $region77: #{tpu_custom_call.1} parent=55 // pred_check
          %p459 = pneg %p171
        $region78: #{tpu_custom_call.1} parent=55 // pred_check_branch
          %461 = sbr.rel (%p459) target = $region80
        $region79: #{tpu_custom_call.1} parent=55 // pred_region
          %462 = dma.done [#allocation13], 128
        $region80: #{tpu_custom_call.1} parent=55 // pred_fallthru
          _
        // Predicated region
        $region81: #{tpu_custom_call.1} parent=55 // pred_check
          %p463 = pneg %p192
        $region82: #{tpu_custom_call.1} parent=55 // pred_check_branch
          %465 = sbr.rel (%p463) target = $region84
        $region83: #{tpu_custom_call.1} parent=55 // pred_region
          %466 = dma.done [#allocation13], 128
        $region84: #{tpu_custom_call.1} parent=55 // pred_fallthru
          _
        // Predicated region
        $region85: #{tpu_custom_call.1} parent=55 // pred_check
          %p467 = pneg %p213
        $region86: #{tpu_custom_call.1} parent=55 // pred_check_branch
          %469 = sbr.rel (%p467) target = $region88
        $region87: #{tpu_custom_call.1} parent=55 // pred_region
          %470 = dma.done [#allocation16], 8192
        $region88: #{tpu_custom_call.1} parent=55 // pred_fallthru
          _
        // Predicated region
        $region89: #{tpu_custom_call.1} parent=55 // pred_check
          %p471 = pneg %p234
        $region90: #{tpu_custom_call.1} parent=55 // pred_check_branch
          %473 = sbr.rel (%p471) target = $region92
        $region91: #{tpu_custom_call.1} parent=55 // pred_region
          %474 = dma.done [#allocation16], 16
        $region92: #{tpu_custom_call.1} parent=55 // pred_fallthru
          _
        %p475 = pneg %p46
        %p476 = pneg %p43
        %s477 = sand.u32 %s30, 1
        %s478 = scalar_lea.sflag [#allocation7], %s477
        %s479 = sand.u32 %s59, 1
        %s480 = smul.addr %s479, 4096
        %s481 = scalar_lea.vmem [#allocation6], %s480
        %p482 = pneg %p72
        %p483 = pneg %p69
        %s484 = sand.u32 %s30, 1
        %s485 = scalar_lea.sflag [#allocation7], %s484
        %s486 = sand.u32 %s85, 1
        %s487 = smul.addr %s486, 4
        %s488 = scalar_lea.vmem [#allocation8], %s487
        %p489 = pneg %p98
        %p490 = pneg %p95
        %s491 = sand.u32 %s30, 1
        %s492 = scalar_lea.sflag [#allocation10], %s491
        %s493 = sand.u32 %s111, 1
        %s494 = smul.addr %s493, 4
        %s495 = scalar_lea.vmem [#allocation9], %s494
        %p496 = pneg %p124
        %p497 = pneg %p121
        %s498 = sand.u32 %s30, 1
        %s499 = scalar_lea.sflag [#allocation10], %s498
        %s500 = sand.u32 %s137, 1
        %s501 = smul.addr %s500, 2048
        %s502 = scalar_lea.vmem [#allocation11], %s501
        %p503 = pneg %p150
        %p504 = pneg %p147
        %p505 = pneg %p171
        %p506 = pneg %p168
        %p507 = pneg %p192
        %p508 = pneg %p189
        %p509 = pneg %p213
        %p510 = pneg %p210
        %p511 = pneg %p234
        %p512 = pneg %p231
        %p513 = pneg %p255
        %p514 = pneg %p252
        %s515 = smul.u32 4, %s30
        %s516 = smul.u32 4, %s30
        %s517 = smul.u32 4, %s30
        %s518 = smul.u32 64, %s30
        %v520 = vld [vmem:[#allocation3] sm:$0xff]
        %v521 = vld [vmem:[#allocation3 + $0x8] sm:$0xff]
        %v522 = vld [vmem:[#allocation3 + $0x10] sm:$0xff]
        %v523 = vld [vmem:[#allocation3 + $0x18] sm:$0xff]
        %v524 = vld [vmem:[#allocation3 + $0x20] sm:$0xff]
        %v525 = vld [vmem:[#allocation3 + $0x28] sm:$0xff]
        %v526 = vld [vmem:[#allocation3 + $0x30] sm:$0xff]
        %v527 = vld [vmem:[#allocation3 + $0x38] sm:$0xff]
        %v528 = vld [vmem:[#allocation3 + $0x40] sm:$0xff]
        %v529 = vld [vmem:[#allocation3 + $0x48] sm:$0xff]
        %v530 = vld [vmem:[#allocation3 + $0x50] sm:$0xff]
        %v531 = vld [vmem:[#allocation3 + $0x58] sm:$0xff]
        %v532 = vld [vmem:[#allocation3 + $0x60] sm:$0xff]
        %v533 = vld [vmem:[#allocation3 + $0x68] sm:$0xff]
        %v534 = vld [vmem:[#allocation3 + $0x70] sm:$0xff]
        %v535 = vld [vmem:[#allocation3 + $0x78] sm:$0xff]
        %v536 = vpack.c.bf16 %v520, %v520
        %v537 = vpack.c.bf16 %v521, %v521
        %v538 = vpack.c.bf16 %v522, %v522
        %v539 = vpack.c.bf16 %v523, %v523
        %v540 = vpack.c.bf16 %v524, %v524
        %v541 = vpack.c.bf16 %v525, %v525
        %v542 = vpack.c.bf16 %v526, %v526
        %v543 = vpack.c.bf16 %v527, %v527
        %v544 = vpack.c.bf16 %v528, %v528
        %v545 = vpack.c.bf16 %v529, %v529
        %v546 = vpack.c.bf16 %v530, %v530
        %v547 = vpack.c.bf16 %v531, %v531
        %v548 = vpack.c.bf16 %v532, %v532
        %v549 = vpack.c.bf16 %v533, %v533
        %v550 = vpack.c.bf16 %v534, %v534
        %v551 = vpack.c.bf16 %v535, %v535
        %v552 = vld [vmem:[%s427] sm:$0xff]
        %v553 = vld [vmem:[%s427 + $0x8] sm:$0xff]
        %v554 = vld [vmem:[%s427 + $0x10] sm:$0xff]
        %v555 = vld [vmem:[%s427 + $0x18] sm:$0xff]
        %v556 = vld [vmem:[%s427 + $0x20] sm:$0xff]
        %v557 = vld [vmem:[%s427 + $0x28] sm:$0xff]
        %v558 = vld [vmem:[%s427 + $0x30] sm:$0xff]
        %v559 = vld [vmem:[%s427 + $0x38] sm:$0xff]
        %v560 = vld [vmem:[%s427 + $0x40] sm:$0xff]
        %v561 = vld [vmem:[%s427 + $0x48] sm:$0xff]
        %v562 = vld [vmem:[%s427 + $0x50] sm:$0xff]
        %v563 = vld [vmem:[%s427 + $0x58] sm:$0xff]
        %v564 = vld [vmem:[%s427 + $0x60] sm:$0xff]
        %v565 = vld [vmem:[%s427 + $0x68] sm:$0xff]
        %v566 = vld [vmem:[%s427 + $0x70] sm:$0xff]
        %v567 = vld [vmem:[%s427 + $0x78] sm:$0xff]
        %v568 = vld [vmem:[%s427 + $0x80] sm:$0xff]
        %v569 = vld [vmem:[%s427 + $0x88] sm:$0xff]
        %v570 = vld [vmem:[%s427 + $0x90] sm:$0xff]
        %v571 = vld [vmem:[%s427 + $0x98] sm:$0xff]
        %v572 = vld [vmem:[%s427 + $0xa0] sm:$0xff]
        %v573 = vld [vmem:[%s427 + $0xa8] sm:$0xff]
        %v574 = vld [vmem:[%s427 + $0xb0] sm:$0xff]
        %v575 = vld [vmem:[%s427 + $0xb8] sm:$0xff]
        %v576 = vld [vmem:[%s427 + $0xc0] sm:$0xff]
        %v577 = vld [vmem:[%s427 + $0xc8] sm:$0xff]
        %v578 = vld [vmem:[%s427 + $0xd0] sm:$0xff]
        %v579 = vld [vmem:[%s427 + $0xd8] sm:$0xff]
        %v580 = vld [vmem:[%s427 + $0xe0] sm:$0xff]
        %v581 = vld [vmem:[%s427 + $0xe8] sm:$0xff]
        %v582 = vld [vmem:[%s427 + $0xf0] sm:$0xff]
        %v583 = vld [vmem:[%s427 + $0xf8] sm:$0xff]
        %v584 = vld [vmem:[%s427 + $0x100] sm:$0xff]
        %v585 = vld [vmem:[%s427 + $0x108] sm:$0xff]
        %v586 = vld [vmem:[%s427 + $0x110] sm:$0xff]
        %v587 = vld [vmem:[%s427 + $0x118] sm:$0xff]
        %v588 = vld [vmem:[%s427 + $0x120] sm:$0xff]
        %v589 = vld [vmem:[%s427 + $0x128] sm:$0xff]
        %v590 = vld [vmem:[%s427 + $0x130] sm:$0xff]
        %v591 = vld [vmem:[%s427 + $0x138] sm:$0xff]
        %v592 = vld [vmem:[%s427 + $0x140] sm:$0xff]
        %v593 = vld [vmem:[%s427 + $0x148] sm:$0xff]
        %v594 = vld [vmem:[%s427 + $0x150] sm:$0xff]
        %v595 = vld [vmem:[%s427 + $0x158] sm:$0xff]
        %v596 = vld [vmem:[%s427 + $0x160] sm:$0xff]
        %v597 = vld [vmem:[%s427 + $0x168] sm:$0xff]
        %v598 = vld [vmem:[%s427 + $0x170] sm:$0xff]
        %v599 = vld [vmem:[%s427 + $0x178] sm:$0xff]
        %v600 = vld [vmem:[%s427 + $0x180] sm:$0xff]
        %v601 = vld [vmem:[%s427 + $0x188] sm:$0xff]
        %v602 = vld [vmem:[%s427 + $0x190] sm:$0xff]
        %v603 = vld [vmem:[%s427 + $0x198] sm:$0xff]
        %v604 = vld [vmem:[%s427 + $0x1a0] sm:$0xff]
        %v605 = vld [vmem:[%s427 + $0x1a8] sm:$0xff]
        %v606 = vld [vmem:[%s427 + $0x1b0] sm:$0xff]
        %v607 = vld [vmem:[%s427 + $0x1b8] sm:$0xff]
        %v608 = vld [vmem:[%s427 + $0x1c0] sm:$0xff]
        %v609 = vld [vmem:[%s427 + $0x1c8] sm:$0xff]
        %v610 = vld [vmem:[%s427 + $0x1d0] sm:$0xff]
        %v611 = vld [vmem:[%s427 + $0x1d8] sm:$0xff]
        %v612 = vld [vmem:[%s427 + $0x1e0] sm:$0xff]
        %v613 = vld [vmem:[%s427 + $0x1e8] sm:$0xff]
        %v614 = vld [vmem:[%s427 + $0x1f0] sm:$0xff]
        %v615 = vld [vmem:[%s427 + $0x1f8] sm:$0xff]
        %v616 = vld [vmem:[%s427 + $0x200] sm:$0xff]
        %v617 = vld [vmem:[%s427 + $0x208] sm:$0xff]
        %v618 = vld [vmem:[%s427 + $0x210] sm:$0xff]
        %v619 = vld [vmem:[%s427 + $0x218] sm:$0xff]
        %v620 = vld [vmem:[%s427 + $0x220] sm:$0xff]
        %v621 = vld [vmem:[%s427 + $0x228] sm:$0xff]
        %v622 = vld [vmem:[%s427 + $0x230] sm:$0xff]
        %v623 = vld [vmem:[%s427 + $0x238] sm:$0xff]
        %v624 = vld [vmem:[%s427 + $0x240] sm:$0xff]
        %v625 = vld [vmem:[%s427 + $0x248] sm:$0xff]
        %v626 = vld [vmem:[%s427 + $0x250] sm:$0xff]
        %v627 = vld [vmem:[%s427 + $0x258] sm:$0xff]
        %v628 = vld [vmem:[%s427 + $0x260] sm:$0xff]
        %v629 = vld [vmem:[%s427 + $0x268] sm:$0xff]
        %v630 = vld [vmem:[%s427 + $0x270] sm:$0xff]
        %v631 = vld [vmem:[%s427 + $0x278] sm:$0xff]
        %v632 = vld [vmem:[%s427 + $0x280] sm:$0xff]
        %v633 = vld [vmem:[%s427 + $0x288] sm:$0xff]
        %v634 = vld [vmem:[%s427 + $0x290] sm:$0xff]
        %v635 = vld [vmem:[%s427 + $0x298] sm:$0xff]
        %v636 = vld [vmem:[%s427 + $0x2a0] sm:$0xff]
        %v637 = vld [vmem:[%s427 + $0x2a8] sm:$0xff]
        %v638 = vld [vmem:[%s427 + $0x2b0] sm:$0xff]
        %v639 = vld [vmem:[%s427 + $0x2b8] sm:$0xff]
        %v640 = vld [vmem:[%s427 + $0x2c0] sm:$0xff]
        %v641 = vld [vmem:[%s427 + $0x2c8] sm:$0xff]
        %v642 = vld [vmem:[%s427 + $0x2d0] sm:$0xff]
        %v643 = vld [vmem:[%s427 + $0x2d8] sm:$0xff]
        %v644 = vld [vmem:[%s427 + $0x2e0] sm:$0xff]
        %v645 = vld [vmem:[%s427 + $0x2e8] sm:$0xff]
        %v646 = vld [vmem:[%s427 + $0x2f0] sm:$0xff]
        %v647 = vld [vmem:[%s427 + $0x2f8] sm:$0xff]
        %v648 = vld [vmem:[%s427 + $0x300] sm:$0xff]
        %v649 = vld [vmem:[%s427 + $0x308] sm:$0xff]
        %v650 = vld [vmem:[%s427 + $0x310] sm:$0xff]
        %v651 = vld [vmem:[%s427 + $0x318] sm:$0xff]
        %v652 = vld [vmem:[%s427 + $0x320] sm:$0xff]
        %v653 = vld [vmem:[%s427 + $0x328] sm:$0xff]
        %v654 = vld [vmem:[%s427 + $0x330] sm:$0xff]
        %v655 = vld [vmem:[%s427 + $0x338] sm:$0xff]
        %v656 = vld [vmem:[%s427 + $0x340] sm:$0xff]
        %v657 = vld [vmem:[%s427 + $0x348] sm:$0xff]
        %v658 = vld [vmem:[%s427 + $0x350] sm:$0xff]
        %v659 = vld [vmem:[%s427 + $0x358] sm:$0xff]
        %v660 = vld [vmem:[%s427 + $0x360] sm:$0xff]
        %v661 = vld [vmem:[%s427 + $0x368] sm:$0xff]
        %v662 = vld [vmem:[%s427 + $0x370] sm:$0xff]
        %v663 = vld [vmem:[%s427 + $0x378] sm:$0xff]
        %v664 = vld [vmem:[%s427 + $0x380] sm:$0xff]
        %v665 = vld [vmem:[%s427 + $0x388] sm:$0xff]
        %v666 = vld [vmem:[%s427 + $0x390] sm:$0xff]
        %v667 = vld [vmem:[%s427 + $0x398] sm:$0xff]
        %v668 = vld [vmem:[%s427 + $0x3a0] sm:$0xff]
        %v669 = vld [vmem:[%s427 + $0x3a8] sm:$0xff]
        %v670 = vld [vmem:[%s427 + $0x3b0] sm:$0xff]
        %v671 = vld [vmem:[%s427 + $0x3b8] sm:$0xff]
        %v672 = vld [vmem:[%s427 + $0x3c0] sm:$0xff]
        %v673 = vld [vmem:[%s427 + $0x3c8] sm:$0xff]
        %v674 = vld [vmem:[%s427 + $0x3d0] sm:$0xff]
        %v675 = vld [vmem:[%s427 + $0x3d8] sm:$0xff]
        %v676 = vld [vmem:[%s427 + $0x3e0] sm:$0xff]
        %v677 = vld [vmem:[%s427 + $0x3e8] sm:$0xff]
        %v678 = vld [vmem:[%s427 + $0x3f0] sm:$0xff]
        %v679 = vld [vmem:[%s427 + $0x3f8] sm:$0xff]
        %v680 = vld [vmem:[%s427 + $0x400] sm:$0xff]
        %v681 = vld [vmem:[%s427 + $0x408] sm:$0xff]
        %v682 = vld [vmem:[%s427 + $0x410] sm:$0xff]
        %v683 = vld [vmem:[%s427 + $0x418] sm:$0xff]
        %v684 = vld [vmem:[%s427 + $0x420] sm:$0xff]
        %v685 = vld [vmem:[%s427 + $0x428] sm:$0xff]
        %v686 = vld [vmem:[%s427 + $0x430] sm:$0xff]
        %v687 = vld [vmem:[%s427 + $0x438] sm:$0xff]
        %v688 = vld [vmem:[%s427 + $0x440] sm:$0xff]
        %v689 = vld [vmem:[%s427 + $0x448] sm:$0xff]
        %v690 = vld [vmem:[%s427 + $0x450] sm:$0xff]
        %v691 = vld [vmem:[%s427 + $0x458] sm:$0xff]
        %v692 = vld [vmem:[%s427 + $0x460] sm:$0xff]
        %v693 = vld [vmem:[%s427 + $0x468] sm:$0xff]
        %v694 = vld [vmem:[%s427 + $0x470] sm:$0xff]
        %v695 = vld [vmem:[%s427 + $0x478] sm:$0xff]
        %v696 = vld [vmem:[%s427 + $0x480] sm:$0xff]
        %v697 = vld [vmem:[%s427 + $0x488] sm:$0xff]
        %v698 = vld [vmem:[%s427 + $0x490] sm:$0xff]
        %v699 = vld [vmem:[%s427 + $0x498] sm:$0xff]
        %v700 = vld [vmem:[%s427 + $0x4a0] sm:$0xff]
        %v701 = vld [vmem:[%s427 + $0x4a8] sm:$0xff]
        %v702 = vld [vmem:[%s427 + $0x4b0] sm:$0xff]
        %v703 = vld [vmem:[%s427 + $0x4b8] sm:$0xff]
        %v704 = vld [vmem:[%s427 + $0x4c0] sm:$0xff]
        %v705 = vld [vmem:[%s427 + $0x4c8] sm:$0xff]
        %v706 = vld [vmem:[%s427 + $0x4d0] sm:$0xff]
        %v707 = vld [vmem:[%s427 + $0x4d8] sm:$0xff]
        %v708 = vld [vmem:[%s427 + $0x4e0] sm:$0xff]
        %v709 = vld [vmem:[%s427 + $0x4e8] sm:$0xff]
        %v710 = vld [vmem:[%s427 + $0x4f0] sm:$0xff]
        %v711 = vld [vmem:[%s427 + $0x4f8] sm:$0xff]
        %v712 = vld [vmem:[%s427 + $0x500] sm:$0xff]
        %v713 = vld [vmem:[%s427 + $0x508] sm:$0xff]
        %v714 = vld [vmem:[%s427 + $0x510] sm:$0xff]
        %v715 = vld [vmem:[%s427 + $0x518] sm:$0xff]
        %v716 = vld [vmem:[%s427 + $0x520] sm:$0xff]
        %v717 = vld [vmem:[%s427 + $0x528] sm:$0xff]
        %v718 = vld [vmem:[%s427 + $0x530] sm:$0xff]
        %v719 = vld [vmem:[%s427 + $0x538] sm:$0xff]
        %v720 = vld [vmem:[%s427 + $0x540] sm:$0xff]
        %v721 = vld [vmem:[%s427 + $0x548] sm:$0xff]
        %v722 = vld [vmem:[%s427 + $0x550] sm:$0xff]
        %v723 = vld [vmem:[%s427 + $0x558] sm:$0xff]
        %v724 = vld [vmem:[%s427 + $0x560] sm:$0xff]
        %v725 = vld [vmem:[%s427 + $0x568] sm:$0xff]
        %v726 = vld [vmem:[%s427 + $0x570] sm:$0xff]
        %v727 = vld [vmem:[%s427 + $0x578] sm:$0xff]
        %v728 = vld [vmem:[%s427 + $0x580] sm:$0xff]
        %v729 = vld [vmem:[%s427 + $0x588] sm:$0xff]
        %v730 = vld [vmem:[%s427 + $0x590] sm:$0xff]
        %v731 = vld [vmem:[%s427 + $0x598] sm:$0xff]
        %v732 = vld [vmem:[%s427 + $0x5a0] sm:$0xff]
        %v733 = vld [vmem:[%s427 + $0x5a8] sm:$0xff]
        %v734 = vld [vmem:[%s427 + $0x5b0] sm:$0xff]
        %v735 = vld [vmem:[%s427 + $0x5b8] sm:$0xff]
        %v736 = vld [vmem:[%s427 + $0x5c0] sm:$0xff]
        %v737 = vld [vmem:[%s427 + $0x5c8] sm:$0xff]
        %v738 = vld [vmem:[%s427 + $0x5d0] sm:$0xff]
        %v739 = vld [vmem:[%s427 + $0x5d8] sm:$0xff]
        %v740 = vld [vmem:[%s427 + $0x5e0] sm:$0xff]
        %v741 = vld [vmem:[%s427 + $0x5e8] sm:$0xff]
        %v742 = vld [vmem:[%s427 + $0x5f0] sm:$0xff]
        %v743 = vld [vmem:[%s427 + $0x5f8] sm:$0xff]
        %v744 = vld [vmem:[%s427 + $0x600] sm:$0xff]
        %v745 = vld [vmem:[%s427 + $0x608] sm:$0xff]
        %v746 = vld [vmem:[%s427 + $0x610] sm:$0xff]
        %v747 = vld [vmem:[%s427 + $0x618] sm:$0xff]
        %v748 = vld [vmem:[%s427 + $0x620] sm:$0xff]
        %v749 = vld [vmem:[%s427 + $0x628] sm:$0xff]
        %v750 = vld [vmem:[%s427 + $0x630] sm:$0xff]
        %v751 = vld [vmem:[%s427 + $0x638] sm:$0xff]
        %v752 = vld [vmem:[%s427 + $0x640] sm:$0xff]
        %v753 = vld [vmem:[%s427 + $0x648] sm:$0xff]
        %v754 = vld [vmem:[%s427 + $0x650] sm:$0xff]
        %v755 = vld [vmem:[%s427 + $0x658] sm:$0xff]
        %v756 = vld [vmem:[%s427 + $0x660] sm:$0xff]
        %v757 = vld [vmem:[%s427 + $0x668] sm:$0xff]
        %v758 = vld [vmem:[%s427 + $0x670] sm:$0xff]
        %v759 = vld [vmem:[%s427 + $0x678] sm:$0xff]
        %v760 = vld [vmem:[%s427 + $0x680] sm:$0xff]
        %v761 = vld [vmem:[%s427 + $0x688] sm:$0xff]
        %v762 = vld [vmem:[%s427 + $0x690] sm:$0xff]
        %v763 = vld [vmem:[%s427 + $0x698] sm:$0xff]
        %v764 = vld [vmem:[%s427 + $0x6a0] sm:$0xff]
        %v765 = vld [vmem:[%s427 + $0x6a8] sm:$0xff]
        %v766 = vld [vmem:[%s427 + $0x6b0] sm:$0xff]
        %v767 = vld [vmem:[%s427 + $0x6b8] sm:$0xff]
        %v768 = vld [vmem:[%s427 + $0x6c0] sm:$0xff]
        %v769 = vld [vmem:[%s427 + $0x6c8] sm:$0xff]
        %v770 = vld [vmem:[%s427 + $0x6d0] sm:$0xff]
        %v771 = vld [vmem:[%s427 + $0x6d8] sm:$0xff]
        %v772 = vld [vmem:[%s427 + $0x6e0] sm:$0xff]
        %v773 = vld [vmem:[%s427 + $0x6e8] sm:$0xff]
        %v774 = vld [vmem:[%s427 + $0x6f0] sm:$0xff]
        %v775 = vld [vmem:[%s427 + $0x6f8] sm:$0xff]
        %v776 = vld [vmem:[%s427 + $0x700] sm:$0xff]
        %v777 = vld [vmem:[%s427 + $0x708] sm:$0xff]
        %v778 = vld [vmem:[%s427 + $0x710] sm:$0xff]
        %v779 = vld [vmem:[%s427 + $0x718] sm:$0xff]
        %v780 = vld [vmem:[%s427 + $0x720] sm:$0xff]
        %v781 = vld [vmem:[%s427 + $0x728] sm:$0xff]
        %v782 = vld [vmem:[%s427 + $0x730] sm:$0xff]
        %v783 = vld [vmem:[%s427 + $0x738] sm:$0xff]
        %v784 = vld [vmem:[%s427 + $0x740] sm:$0xff]
        %v785 = vld [vmem:[%s427 + $0x748] sm:$0xff]
        %v786 = vld [vmem:[%s427 + $0x750] sm:$0xff]
        %v787 = vld [vmem:[%s427 + $0x758] sm:$0xff]
        %v788 = vld [vmem:[%s427 + $0x760] sm:$0xff]
        %v789 = vld [vmem:[%s427 + $0x768] sm:$0xff]
        %v790 = vld [vmem:[%s427 + $0x770] sm:$0xff]
        %v791 = vld [vmem:[%s427 + $0x778] sm:$0xff]
        %v792 = vld [vmem:[%s427 + $0x780] sm:$0xff]
        %v793 = vld [vmem:[%s427 + $0x788] sm:$0xff]
        %v794 = vld [vmem:[%s427 + $0x790] sm:$0xff]
        %v795 = vld [vmem:[%s427 + $0x798] sm:$0xff]
        %v796 = vld [vmem:[%s427 + $0x7a0] sm:$0xff]
        %v797 = vld [vmem:[%s427 + $0x7a8] sm:$0xff]
        %v798 = vld [vmem:[%s427 + $0x7b0] sm:$0xff]
        %v799 = vld [vmem:[%s427 + $0x7b8] sm:$0xff]
        %v800 = vld [vmem:[%s427 + $0x7c0] sm:$0xff]
        %v801 = vld [vmem:[%s427 + $0x7c8] sm:$0xff]
        %v802 = vld [vmem:[%s427 + $0x7d0] sm:$0xff]
        %v803 = vld [vmem:[%s427 + $0x7d8] sm:$0xff]
        %v804 = vld [vmem:[%s427 + $0x7e0] sm:$0xff]
        %v805 = vld [vmem:[%s427 + $0x7e8] sm:$0xff]
        %v806 = vld [vmem:[%s427 + $0x7f0] sm:$0xff]
        %v807 = vld [vmem:[%s427 + $0x7f8] sm:$0xff]
        %v808 = vld [vmem:[%s427 + $0x800] sm:$0xff]
        %v809 = vld [vmem:[%s427 + $0x808] sm:$0xff]
        %v810 = vld [vmem:[%s427 + $0x810] sm:$0xff]
        %v811 = vld [vmem:[%s427 + $0x818] sm:$0xff]
        %v812 = vld [vmem:[%s427 + $0x820] sm:$0xff]
        %v813 = vld [vmem:[%s427 + $0x828] sm:$0xff]
        %v814 = vld [vmem:[%s427 + $0x830] sm:$0xff]
        %v815 = vld [vmem:[%s427 + $0x838] sm:$0xff]
        %v816 = vld [vmem:[%s427 + $0x840] sm:$0xff]
        %v817 = vld [vmem:[%s427 + $0x848] sm:$0xff]
        %v818 = vld [vmem:[%s427 + $0x850] sm:$0xff]
        %v819 = vld [vmem:[%s427 + $0x858] sm:$0xff]
        %v820 = vld [vmem:[%s427 + $0x860] sm:$0xff]
        %v821 = vld [vmem:[%s427 + $0x868] sm:$0xff]
        %v822 = vld [vmem:[%s427 + $0x870] sm:$0xff]
        %v823 = vld [vmem:[%s427 + $0x878] sm:$0xff]
        %v824 = vld [vmem:[%s427 + $0x880] sm:$0xff]
        %v825 = vld [vmem:[%s427 + $0x888] sm:$0xff]
        %v826 = vld [vmem:[%s427 + $0x890] sm:$0xff]
        %v827 = vld [vmem:[%s427 + $0x898] sm:$0xff]
        %v828 = vld [vmem:[%s427 + $0x8a0] sm:$0xff]
        %v829 = vld [vmem:[%s427 + $0x8a8] sm:$0xff]
        %v830 = vld [vmem:[%s427 + $0x8b0] sm:$0xff]
        %v831 = vld [vmem:[%s427 + $0x8b8] sm:$0xff]
        %v832 = vld [vmem:[%s427 + $0x8c0] sm:$0xff]
        %v833 = vld [vmem:[%s427 + $0x8c8] sm:$0xff]
        %v834 = vld [vmem:[%s427 + $0x8d0] sm:$0xff]
        %v835 = vld [vmem:[%s427 + $0x8d8] sm:$0xff]
        %v836 = vld [vmem:[%s427 + $0x8e0] sm:$0xff]
        %v837 = vld [vmem:[%s427 + $0x8e8] sm:$0xff]
        %v838 = vld [vmem:[%s427 + $0x8f0] sm:$0xff]
        %v839 = vld [vmem:[%s427 + $0x8f8] sm:$0xff]
        %v840 = vld [vmem:[%s427 + $0x900] sm:$0xff]
        %v841 = vld [vmem:[%s427 + $0x908] sm:$0xff]
        %v842 = vld [vmem:[%s427 + $0x910] sm:$0xff]
        %v843 = vld [vmem:[%s427 + $0x918] sm:$0xff]
        %v844 = vld [vmem:[%s427 + $0x920] sm:$0xff]
        %v845 = vld [vmem:[%s427 + $0x928] sm:$0xff]
        %v846 = vld [vmem:[%s427 + $0x930] sm:$0xff]
        %v847 = vld [vmem:[%s427 + $0x938] sm:$0xff]
        %v848 = vld [vmem:[%s427 + $0x940] sm:$0xff]
        %v849 = vld [vmem:[%s427 + $0x948] sm:$0xff]
        %v850 = vld [vmem:[%s427 + $0x950] sm:$0xff]
        %v851 = vld [vmem:[%s427 + $0x958] sm:$0xff]
        %v852 = vld [vmem:[%s427 + $0x960] sm:$0xff]
        %v853 = vld [vmem:[%s427 + $0x968] sm:$0xff]
        %v854 = vld [vmem:[%s427 + $0x970] sm:$0xff]
        %v855 = vld [vmem:[%s427 + $0x978] sm:$0xff]
        %v856 = vld [vmem:[%s427 + $0x980] sm:$0xff]
        %v857 = vld [vmem:[%s427 + $0x988] sm:$0xff]
        %v858 = vld [vmem:[%s427 + $0x990] sm:$0xff]
        %v859 = vld [vmem:[%s427 + $0x998] sm:$0xff]
        %v860 = vld [vmem:[%s427 + $0x9a0] sm:$0xff]
        %v861 = vld [vmem:[%s427 + $0x9a8] sm:$0xff]
        %v862 = vld [vmem:[%s427 + $0x9b0] sm:$0xff]
        %v863 = vld [vmem:[%s427 + $0x9b8] sm:$0xff]
        %v864 = vld [vmem:[%s427 + $0x9c0] sm:$0xff]
        %v865 = vld [vmem:[%s427 + $0x9c8] sm:$0xff]
        %v866 = vld [vmem:[%s427 + $0x9d0] sm:$0xff]
        %v867 = vld [vmem:[%s427 + $0x9d8] sm:$0xff]
        %v868 = vld [vmem:[%s427 + $0x9e0] sm:$0xff]
        %v869 = vld [vmem:[%s427 + $0x9e8] sm:$0xff]
        %v870 = vld [vmem:[%s427 + $0x9f0] sm:$0xff]
        %v871 = vld [vmem:[%s427 + $0x9f8] sm:$0xff]
        %v872 = vld [vmem:[%s427 + $0xa00] sm:$0xff]
        %v873 = vld [vmem:[%s427 + $0xa08] sm:$0xff]
        %v874 = vld [vmem:[%s427 + $0xa10] sm:$0xff]
        %v875 = vld [vmem:[%s427 + $0xa18] sm:$0xff]
        %v876 = vld [vmem:[%s427 + $0xa20] sm:$0xff]
        %v877 = vld [vmem:[%s427 + $0xa28] sm:$0xff]
        %v878 = vld [vmem:[%s427 + $0xa30] sm:$0xff]
        %v879 = vld [vmem:[%s427 + $0xa38] sm:$0xff]
        %v880 = vld [vmem:[%s427 + $0xa40] sm:$0xff]
        %v881 = vld [vmem:[%s427 + $0xa48] sm:$0xff]
        %v882 = vld [vmem:[%s427 + $0xa50] sm:$0xff]
        %v883 = vld [vmem:[%s427 + $0xa58] sm:$0xff]
        %v884 = vld [vmem:[%s427 + $0xa60] sm:$0xff]
        %v885 = vld [vmem:[%s427 + $0xa68] sm:$0xff]
        %v886 = vld [vmem:[%s427 + $0xa70] sm:$0xff]
        %v887 = vld [vmem:[%s427 + $0xa78] sm:$0xff]
        %v888 = vld [vmem:[%s427 + $0xa80] sm:$0xff]
        %v889 = vld [vmem:[%s427 + $0xa88] sm:$0xff]
        %v890 = vld [vmem:[%s427 + $0xa90] sm:$0xff]
        %v891 = vld [vmem:[%s427 + $0xa98] sm:$0xff]
        %v892 = vld [vmem:[%s427 + $0xaa0] sm:$0xff]
        %v893 = vld [vmem:[%s427 + $0xaa8] sm:$0xff]
        %v894 = vld [vmem:[%s427 + $0xab0] sm:$0xff]
        %v895 = vld [vmem:[%s427 + $0xab8] sm:$0xff]
        %v896 = vld [vmem:[%s427 + $0xac0] sm:$0xff]
        %v897 = vld [vmem:[%s427 + $0xac8] sm:$0xff]
        %v898 = vld [vmem:[%s427 + $0xad0] sm:$0xff]
        %v899 = vld [vmem:[%s427 + $0xad8] sm:$0xff]
        %v900 = vld [vmem:[%s427 + $0xae0] sm:$0xff]
        %v901 = vld [vmem:[%s427 + $0xae8] sm:$0xff]
        %v902 = vld [vmem:[%s427 + $0xaf0] sm:$0xff]
        %v903 = vld [vmem:[%s427 + $0xaf8] sm:$0xff]
        %v904 = vld [vmem:[%s427 + $0xb00] sm:$0xff]
        %v905 = vld [vmem:[%s427 + $0xb08] sm:$0xff]
        %v906 = vld [vmem:[%s427 + $0xb10] sm:$0xff]
        %v907 = vld [vmem:[%s427 + $0xb18] sm:$0xff]
        %v908 = vld [vmem:[%s427 + $0xb20] sm:$0xff]
        %v909 = vld [vmem:[%s427 + $0xb28] sm:$0xff]
        %v910 = vld [vmem:[%s427 + $0xb30] sm:$0xff]
        %v911 = vld [vmem:[%s427 + $0xb38] sm:$0xff]
        %v912 = vld [vmem:[%s427 + $0xb40] sm:$0xff]
        %v913 = vld [vmem:[%s427 + $0xb48] sm:$0xff]
        %v914 = vld [vmem:[%s427 + $0xb50] sm:$0xff]
        %v915 = vld [vmem:[%s427 + $0xb58] sm:$0xff]
        %v916 = vld [vmem:[%s427 + $0xb60] sm:$0xff]
        %v917 = vld [vmem:[%s427 + $0xb68] sm:$0xff]
        %v918 = vld [vmem:[%s427 + $0xb70] sm:$0xff]
        %v919 = vld [vmem:[%s427 + $0xb78] sm:$0xff]
        %v920 = vld [vmem:[%s427 + $0xb80] sm:$0xff]
        %v921 = vld [vmem:[%s427 + $0xb88] sm:$0xff]
        %v922 = vld [vmem:[%s427 + $0xb90] sm:$0xff]
        %v923 = vld [vmem:[%s427 + $0xb98] sm:$0xff]
        %v924 = vld [vmem:[%s427 + $0xba0] sm:$0xff]
        %v925 = vld [vmem:[%s427 + $0xba8] sm:$0xff]
        %v926 = vld [vmem:[%s427 + $0xbb0] sm:$0xff]
        %v927 = vld [vmem:[%s427 + $0xbb8] sm:$0xff]
        %v928 = vld [vmem:[%s427 + $0xbc0] sm:$0xff]
        %v929 = vld [vmem:[%s427 + $0xbc8] sm:$0xff]
        %v930 = vld [vmem:[%s427 + $0xbd0] sm:$0xff]
        %v931 = vld [vmem:[%s427 + $0xbd8] sm:$0xff]
        %v932 = vld [vmem:[%s427 + $0xbe0] sm:$0xff]
        %v933 = vld [vmem:[%s427 + $0xbe8] sm:$0xff]
        %v934 = vld [vmem:[%s427 + $0xbf0] sm:$0xff]
        %v935 = vld [vmem:[%s427 + $0xbf8] sm:$0xff]
        %v936 = vld [vmem:[%s427 + $0xc00] sm:$0xff]
        %v937 = vld [vmem:[%s427 + $0xc08] sm:$0xff]
        %v938 = vld [vmem:[%s427 + $0xc10] sm:$0xff]
        %v939 = vld [vmem:[%s427 + $0xc18] sm:$0xff]
        %v940 = vld [vmem:[%s427 + $0xc20] sm:$0xff]
        %v941 = vld [vmem:[%s427 + $0xc28] sm:$0xff]
        %v942 = vld [vmem:[%s427 + $0xc30] sm:$0xff]
        %v943 = vld [vmem:[%s427 + $0xc38] sm:$0xff]
        %v944 = vld [vmem:[%s427 + $0xc40] sm:$0xff]
        %v945 = vld [vmem:[%s427 + $0xc48] sm:$0xff]
        %v946 = vld [vmem:[%s427 + $0xc50] sm:$0xff]
        %v947 = vld [vmem:[%s427 + $0xc58] sm:$0xff]
        %v948 = vld [vmem:[%s427 + $0xc60] sm:$0xff]
        %v949 = vld [vmem:[%s427 + $0xc68] sm:$0xff]
        %v950 = vld [vmem:[%s427 + $0xc70] sm:$0xff]
        %v951 = vld [vmem:[%s427 + $0xc78] sm:$0xff]
        %v952 = vld [vmem:[%s427 + $0xc80] sm:$0xff]
        %v953 = vld [vmem:[%s427 + $0xc88] sm:$0xff]
        %v954 = vld [vmem:[%s427 + $0xc90] sm:$0xff]
        %v955 = vld [vmem:[%s427 + $0xc98] sm:$0xff]
        %v956 = vld [vmem:[%s427 + $0xca0] sm:$0xff]
        %v957 = vld [vmem:[%s427 + $0xca8] sm:$0xff]
        %v958 = vld [vmem:[%s427 + $0xcb0] sm:$0xff]
        %v959 = vld [vmem:[%s427 + $0xcb8] sm:$0xff]
        %v960 = vld [vmem:[%s427 + $0xcc0] sm:$0xff]
        %v961 = vld [vmem:[%s427 + $0xcc8] sm:$0xff]
        %v962 = vld [vmem:[%s427 + $0xcd0] sm:$0xff]
        %v963 = vld [vmem:[%s427 + $0xcd8] sm:$0xff]
        %v964 = vld [vmem:[%s427 + $0xce0] sm:$0xff]
        %v965 = vld [vmem:[%s427 + $0xce8] sm:$0xff]
        %v966 = vld [vmem:[%s427 + $0xcf0] sm:$0xff]
        %v967 = vld [vmem:[%s427 + $0xcf8] sm:$0xff]
        %v968 = vld [vmem:[%s427 + $0xd00] sm:$0xff]
        %v969 = vld [vmem:[%s427 + $0xd08] sm:$0xff]
        %v970 = vld [vmem:[%s427 + $0xd10] sm:$0xff]
        %v971 = vld [vmem:[%s427 + $0xd18] sm:$0xff]
        %v972 = vld [vmem:[%s427 + $0xd20] sm:$0xff]
        %v973 = vld [vmem:[%s427 + $0xd28] sm:$0xff]
        %v974 = vld [vmem:[%s427 + $0xd30] sm:$0xff]
        %v975 = vld [vmem:[%s427 + $0xd38] sm:$0xff]
        %v976 = vld [vmem:[%s427 + $0xd40] sm:$0xff]
        %v977 = vld [vmem:[%s427 + $0xd48] sm:$0xff]
        %v978 = vld [vmem:[%s427 + $0xd50] sm:$0xff]
        %v979 = vld [vmem:[%s427 + $0xd58] sm:$0xff]
        %v980 = vld [vmem:[%s427 + $0xd60] sm:$0xff]
        %v981 = vld [vmem:[%s427 + $0xd68] sm:$0xff]
        %v982 = vld [vmem:[%s427 + $0xd70] sm:$0xff]
        %v983 = vld [vmem:[%s427 + $0xd78] sm:$0xff]
        %v984 = vld [vmem:[%s427 + $0xd80] sm:$0xff]
        %v985 = vld [vmem:[%s427 + $0xd88] sm:$0xff]
        %v986 = vld [vmem:[%s427 + $0xd90] sm:$0xff]
        %v987 = vld [vmem:[%s427 + $0xd98] sm:$0xff]
        %v988 = vld [vmem:[%s427 + $0xda0] sm:$0xff]
        %v989 = vld [vmem:[%s427 + $0xda8] sm:$0xff]
        %v990 = vld [vmem:[%s427 + $0xdb0] sm:$0xff]
        %v991 = vld [vmem:[%s427 + $0xdb8] sm:$0xff]
        %v992 = vld [vmem:[%s427 + $0xdc0] sm:$0xff]
        %v993 = vld [vmem:[%s427 + $0xdc8] sm:$0xff]
        %v994 = vld [vmem:[%s427 + $0xdd0] sm:$0xff]
        %v995 = vld [vmem:[%s427 + $0xdd8] sm:$0xff]
        %v996 = vld [vmem:[%s427 + $0xde0] sm:$0xff]
        %v997 = vld [vmem:[%s427 + $0xde8] sm:$0xff]
        %v998 = vld [vmem:[%s427 + $0xdf0] sm:$0xff]
        %v999 = vld [vmem:[%s427 + $0xdf8] sm:$0xff]
        %v1000 = vld [vmem:[%s427 + $0xe00] sm:$0xff]
        %v1001 = vld [vmem:[%s427 + $0xe08] sm:$0xff]
        %v1002 = vld [vmem:[%s427 + $0xe10] sm:$0xff]
        %v1003 = vld [vmem:[%s427 + $0xe18] sm:$0xff]
        %v1004 = vld [vmem:[%s427 + $0xe20] sm:$0xff]
        %v1005 = vld [vmem:[%s427 + $0xe28] sm:$0xff]
        %v1006 = vld [vmem:[%s427 + $0xe30] sm:$0xff]
        %v1007 = vld [vmem:[%s427 + $0xe38] sm:$0xff]
        %v1008 = vld [vmem:[%s427 + $0xe40] sm:$0xff]
        %v1009 = vld [vmem:[%s427 + $0xe48] sm:$0xff]
        %v1010 = vld [vmem:[%s427 + $0xe50] sm:$0xff]
        %v1011 = vld [vmem:[%s427 + $0xe58] sm:$0xff]
        %v1012 = vld [vmem:[%s427 + $0xe60] sm:$0xff]
        %v1013 = vld [vmem:[%s427 + $0xe68] sm:$0xff]
        %v1014 = vld [vmem:[%s427 + $0xe70] sm:$0xff]
        %v1015 = vld [vmem:[%s427 + $0xe78] sm:$0xff]
        %v1016 = vld [vmem:[%s427 + $0xe80] sm:$0xff]
        %v1017 = vld [vmem:[%s427 + $0xe88] sm:$0xff]
        %v1018 = vld [vmem:[%s427 + $0xe90] sm:$0xff]
        %v1019 = vld [vmem:[%s427 + $0xe98] sm:$0xff]
        %v1020 = vld [vmem:[%s427 + $0xea0] sm:$0xff]
        %v1021 = vld [vmem:[%s427 + $0xea8] sm:$0xff]
        %v1022 = vld [vmem:[%s427 + $0xeb0] sm:$0xff]
        %v1023 = vld [vmem:[%s427 + $0xeb8] sm:$0xff]
        %v1024 = vld [vmem:[%s427 + $0xec0] sm:$0xff]
        %v1025 = vld [vmem:[%s427 + $0xec8] sm:$0xff]
        %v1026 = vld [vmem:[%s427 + $0xed0] sm:$0xff]
        %v1027 = vld [vmem:[%s427 + $0xed8] sm:$0xff]
        %v1028 = vld [vmem:[%s427 + $0xee0] sm:$0xff]
        %v1029 = vld [vmem:[%s427 + $0xee8] sm:$0xff]
        %v1030 = vld [vmem:[%s427 + $0xef0] sm:$0xff]
        %v1031 = vld [vmem:[%s427 + $0xef8] sm:$0xff]
        %v1032 = vld [vmem:[%s427 + $0xf00] sm:$0xff]
        %v1033 = vld [vmem:[%s427 + $0xf08] sm:$0xff]
        %v1034 = vld [vmem:[%s427 + $0xf10] sm:$0xff]
        %v1035 = vld [vmem:[%s427 + $0xf18] sm:$0xff]
        %v1036 = vld [vmem:[%s427 + $0xf20] sm:$0xff]
        %v1037 = vld [vmem:[%s427 + $0xf28] sm:$0xff]
        %v1038 = vld [vmem:[%s427 + $0xf30] sm:$0xff]
        %v1039 = vld [vmem:[%s427 + $0xf38] sm:$0xff]
        %v1040 = vld [vmem:[%s427 + $0xf40] sm:$0xff]
        %v1041 = vld [vmem:[%s427 + $0xf48] sm:$0xff]
        %v1042 = vld [vmem:[%s427 + $0xf50] sm:$0xff]
        %v1043 = vld [vmem:[%s427 + $0xf58] sm:$0xff]
        %v1044 = vld [vmem:[%s427 + $0xf60] sm:$0xff]
        %v1045 = vld [vmem:[%s427 + $0xf68] sm:$0xff]
        %v1046 = vld [vmem:[%s427 + $0xf70] sm:$0xff]
        %v1047 = vld [vmem:[%s427 + $0xf78] sm:$0xff]
        %v1048 = vld [vmem:[%s427 + $0xf80] sm:$0xff]
        %v1049 = vld [vmem:[%s427 + $0xf88] sm:$0xff]
        %v1050 = vld [vmem:[%s427 + $0xf90] sm:$0xff]
        %v1051 = vld [vmem:[%s427 + $0xf98] sm:$0xff]
        %v1052 = vld [vmem:[%s427 + $0xfa0] sm:$0xff]
        %v1053 = vld [vmem:[%s427 + $0xfa8] sm:$0xff]
        %v1054 = vld [vmem:[%s427 + $0xfb0] sm:$0xff]
        %v1055 = vld [vmem:[%s427 + $0xfb8] sm:$0xff]
        %v1056 = vld [vmem:[%s427 + $0xfc0] sm:$0xff]
        %v1057 = vld [vmem:[%s427 + $0xfc8] sm:$0xff]
        %v1058 = vld [vmem:[%s427 + $0xfd0] sm:$0xff]
        %v1059 = vld [vmem:[%s427 + $0xfd8] sm:$0xff]
        %v1060 = vld [vmem:[%s427 + $0xfe0] sm:$0xff]
        %v1061 = vld [vmem:[%s427 + $0xfe8] sm:$0xff]
        %v1062 = vld [vmem:[%s427 + $0xff0] sm:$0xff]
        %v1063 = vld [vmem:[%s427 + $0xff8] sm:$0xff]
        %v1576 = vunpack.c.l.b16 %v552
        %v1577 = vunpack.c.h.b16 %v552
        %v1578 = vunpack.c.l.b16 %v553
        %v1579 = vunpack.c.h.b16 %v553
        %v1580 = vunpack.c.l.b16 %v554
        %v1581 = vunpack.c.h.b16 %v554
        %v1582 = vunpack.c.l.b16 %v555
        %v1583 = vunpack.c.h.b16 %v555
        %v1584 = vunpack.c.l.b16 %v556
        %v1585 = vunpack.c.h.b16 %v556
        %v1586 = vunpack.c.l.b16 %v557
        %v1587 = vunpack.c.h.b16 %v557
        %v1588 = vunpack.c.l.b16 %v558
        %v1589 = vunpack.c.h.b16 %v558
        %v1590 = vunpack.c.l.b16 %v559
        %v1591 = vunpack.c.h.b16 %v559
        %v1592 = vunpack.c.l.b16 %v560
        %v1593 = vunpack.c.h.b16 %v560
        %v1594 = vunpack.c.l.b16 %v561
        %v1595 = vunpack.c.h.b16 %v561
        %v1596 = vunpack.c.l.b16 %v562
        %v1597 = vunpack.c.h.b16 %v562
        %v1598 = vunpack.c.l.b16 %v563
        %v1599 = vunpack.c.h.b16 %v563
        %v1600 = vunpack.c.l.b16 %v564
        %v1601 = vunpack.c.h.b16 %v564
        %v1602 = vunpack.c.l.b16 %v565
        %v1603 = vunpack.c.h.b16 %v565
        %v1604 = vunpack.c.l.b16 %v566
        %v1605 = vunpack.c.h.b16 %v566
        %v1606 = vunpack.c.l.b16 %v567
        %v1607 = vunpack.c.h.b16 %v567
        %v1608 = vunpack.c.l.b16 %v568
        %v1609 = vunpack.c.h.b16 %v568
        %v1610 = vunpack.c.l.b16 %v569
        %v1611 = vunpack.c.h.b16 %v569
        %v1612 = vunpack.c.l.b16 %v570
        %v1613 = vunpack.c.h.b16 %v570
        %v1614 = vunpack.c.l.b16 %v571
        %v1615 = vunpack.c.h.b16 %v571
        %v1616 = vunpack.c.l.b16 %v572
        %v1617 = vunpack.c.h.b16 %v572
        %v1618 = vunpack.c.l.b16 %v573
        %v1619 = vunpack.c.h.b16 %v573
        %v1620 = vunpack.c.l.b16 %v574
        %v1621 = vunpack.c.h.b16 %v574
        %v1622 = vunpack.c.l.b16 %v575
        %v1623 = vunpack.c.h.b16 %v575
        %v1624 = vunpack.c.l.b16 %v576
        %v1625 = vunpack.c.h.b16 %v576
        %v1626 = vunpack.c.l.b16 %v577
        %v1627 = vunpack.c.h.b16 %v577
        %v1628 = vunpack.c.l.b16 %v578
        %v1629 = vunpack.c.h.b16 %v578
        %v1630 = vunpack.c.l.b16 %v579
        %v1631 = vunpack.c.h.b16 %v579
        %v1632 = vunpack.c.l.b16 %v580
        %v1633 = vunpack.c.h.b16 %v580
        %v1634 = vunpack.c.l.b16 %v581
        %v1635 = vunpack.c.h.b16 %v581
        %v1636 = vunpack.c.l.b16 %v582
        %v1637 = vunpack.c.h.b16 %v582
        %v1638 = vunpack.c.l.b16 %v583
        %v1639 = vunpack.c.h.b16 %v583
        %v1640 = vunpack.c.l.b16 %v584
        %v1641 = vunpack.c.h.b16 %v584
        %v1642 = vunpack.c.l.b16 %v585
        %v1643 = vunpack.c.h.b16 %v585
        %v1644 = vunpack.c.l.b16 %v586
        %v1645 = vunpack.c.h.b16 %v586
        %v1646 = vunpack.c.l.b16 %v587
        %v1647 = vunpack.c.h.b16 %v587
        %v1648 = vunpack.c.l.b16 %v588
        %v1649 = vunpack.c.h.b16 %v588
        %v1650 = vunpack.c.l.b16 %v589
        %v1651 = vunpack.c.h.b16 %v589
        %v1652 = vunpack.c.l.b16 %v590
        %v1653 = vunpack.c.h.b16 %v590
        %v1654 = vunpack.c.l.b16 %v591
        %v1655 = vunpack.c.h.b16 %v591
        %v1656 = vunpack.c.l.b16 %v592
        %v1657 = vunpack.c.h.b16 %v592
        %v1658 = vunpack.c.l.b16 %v593
        %v1659 = vunpack.c.h.b16 %v593
        %v1660 = vunpack.c.l.b16 %v594
        %v1661 = vunpack.c.h.b16 %v594
        %v1662 = vunpack.c.l.b16 %v595
        %v1663 = vunpack.c.h.b16 %v595
        %v1664 = vunpack.c.l.b16 %v596
        %v1665 = vunpack.c.h.b16 %v596
        %v1666 = vunpack.c.l.b16 %v597
        %v1667 = vunpack.c.h.b16 %v597
        %v1668 = vunpack.c.l.b16 %v598
        %v1669 = vunpack.c.h.b16 %v598
        %v1670 = vunpack.c.l.b16 %v599
        %v1671 = vunpack.c.h.b16 %v599
        %v1672 = vunpack.c.l.b16 %v600
        %v1673 = vunpack.c.h.b16 %v600
        %v1674 = vunpack.c.l.b16 %v601
        %v1675 = vunpack.c.h.b16 %v601
        %v1676 = vunpack.c.l.b16 %v602
        %v1677 = vunpack.c.h.b16 %v602
        %v1678 = vunpack.c.l.b16 %v603
        %v1679 = vunpack.c.h.b16 %v603
        %v1680 = vunpack.c.l.b16 %v604
        %v1681 = vunpack.c.h.b16 %v604
        %v1682 = vunpack.c.l.b16 %v605
        %v1683 = vunpack.c.h.b16 %v605
        %v1684 = vunpack.c.l.b16 %v606
        %v1685 = vunpack.c.h.b16 %v606
        %v1686 = vunpack.c.l.b16 %v607
        %v1687 = vunpack.c.h.b16 %v607
        %v1688 = vunpack.c.l.b16 %v608
        %v1689 = vunpack.c.h.b16 %v608
        %v1690 = vunpack.c.l.b16 %v609
        %v1691 = vunpack.c.h.b16 %v609
        %v1692 = vunpack.c.l.b16 %v610
        %v1693 = vunpack.c.h.b16 %v610
        %v1694 = vunpack.c.l.b16 %v611
        %v1695 = vunpack.c.h.b16 %v611
        %v1696 = vunpack.c.l.b16 %v612
        %v1697 = vunpack.c.h.b16 %v612
        %v1698 = vunpack.c.l.b16 %v613
        %v1699 = vunpack.c.h.b16 %v613
        %v1700 = vunpack.c.l.b16 %v614
        %v1701 = vunpack.c.h.b16 %v614
        %v1702 = vunpack.c.l.b16 %v615
        %v1703 = vunpack.c.h.b16 %v615
        %v1704 = vunpack.c.l.b16 %v616
        %v1705 = vunpack.c.h.b16 %v616
        %v1706 = vunpack.c.l.b16 %v617
        %v1707 = vunpack.c.h.b16 %v617
        %v1708 = vunpack.c.l.b16 %v618
        %v1709 = vunpack.c.h.b16 %v618
        %v1710 = vunpack.c.l.b16 %v619
        %v1711 = vunpack.c.h.b16 %v619
        %v1712 = vunpack.c.l.b16 %v620
        %v1713 = vunpack.c.h.b16 %v620
        %v1714 = vunpack.c.l.b16 %v621
        %v1715 = vunpack.c.h.b16 %v621
        %v1716 = vunpack.c.l.b16 %v622
        %v1717 = vunpack.c.h.b16 %v622
        %v1718 = vunpack.c.l.b16 %v623
        %v1719 = vunpack.c.h.b16 %v623
        %v1720 = vunpack.c.l.b16 %v624
        %v1721 = vunpack.c.h.b16 %v624
        %v1722 = vunpack.c.l.b16 %v625
        %v1723 = vunpack.c.h.b16 %v625
        %v1724 = vunpack.c.l.b16 %v626
        %v1725 = vunpack.c.h.b16 %v626
        %v1726 = vunpack.c.l.b16 %v627
        %v1727 = vunpack.c.h.b16 %v627
        %v1728 = vunpack.c.l.b16 %v628
        %v1729 = vunpack.c.h.b16 %v628
        %v1730 = vunpack.c.l.b16 %v629
        %v1731 = vunpack.c.h.b16 %v629
        %v1732 = vunpack.c.l.b16 %v630
        %v1733 = vunpack.c.h.b16 %v630
        %v1734 = vunpack.c.l.b16 %v631
        %v1735 = vunpack.c.h.b16 %v631
        %v1736 = vunpack.c.l.b16 %v632
        %v1737 = vunpack.c.h.b16 %v632
        %v1738 = vunpack.c.l.b16 %v633
        %v1739 = vunpack.c.h.b16 %v633
        %v1740 = vunpack.c.l.b16 %v634
        %v1741 = vunpack.c.h.b16 %v634
        %v1742 = vunpack.c.l.b16 %v635
        %v1743 = vunpack.c.h.b16 %v635
        %v1744 = vunpack.c.l.b16 %v636
        %v1745 = vunpack.c.h.b16 %v636
        %v1746 = vunpack.c.l.b16 %v637
        %v1747 = vunpack.c.h.b16 %v637
        %v1748 = vunpack.c.l.b16 %v638
        %v1749 = vunpack.c.h.b16 %v638
        %v1750 = vunpack.c.l.b16 %v639
        %v1751 = vunpack.c.h.b16 %v639
        %v1752 = vunpack.c.l.b16 %v640
        %v1753 = vunpack.c.h.b16 %v640
        %v1754 = vunpack.c.l.b16 %v641
        %v1755 = vunpack.c.h.b16 %v641
        %v1756 = vunpack.c.l.b16 %v642
        %v1757 = vunpack.c.h.b16 %v642
        %v1758 = vunpack.c.l.b16 %v643
        %v1759 = vunpack.c.h.b16 %v643
        %v1760 = vunpack.c.l.b16 %v644
        %v1761 = vunpack.c.h.b16 %v644
        %v1762 = vunpack.c.l.b16 %v645
        %v1763 = vunpack.c.h.b16 %v645
        %v1764 = vunpack.c.l.b16 %v646
        %v1765 = vunpack.c.h.b16 %v646
        %v1766 = vunpack.c.l.b16 %v647
        %v1767 = vunpack.c.h.b16 %v647
        %v1768 = vunpack.c.l.b16 %v648
        %v1769 = vunpack.c.h.b16 %v648
        %v1770 = vunpack.c.l.b16 %v649
        %v1771 = vunpack.c.h.b16 %v649
        %v1772 = vunpack.c.l.b16 %v650
        %v1773 = vunpack.c.h.b16 %v650
        %v1774 = vunpack.c.l.b16 %v651
        %v1775 = vunpack.c.h.b16 %v651
        %v1776 = vunpack.c.l.b16 %v652
        %v1777 = vunpack.c.h.b16 %v652
        %v1778 = vunpack.c.l.b16 %v653
        %v1779 = vunpack.c.h.b16 %v653
        %v1780 = vunpack.c.l.b16 %v654
        %v1781 = vunpack.c.h.b16 %v654
        %v1782 = vunpack.c.l.b16 %v655
        %v1783 = vunpack.c.h.b16 %v655
        %v1784 = vunpack.c.l.b16 %v656
        %v1785 = vunpack.c.h.b16 %v656
        %v1786 = vunpack.c.l.b16 %v657
        %v1787 = vunpack.c.h.b16 %v657
        %v1788 = vunpack.c.l.b16 %v658
        %v1789 = vunpack.c.h.b16 %v658
        %v1790 = vunpack.c.l.b16 %v659
        %v1791 = vunpack.c.h.b16 %v659
        %v1792 = vunpack.c.l.b16 %v660
        %v1793 = vunpack.c.h.b16 %v660
        %v1794 = vunpack.c.l.b16 %v661
        %v1795 = vunpack.c.h.b16 %v661
        %v1796 = vunpack.c.l.b16 %v662
        %v1797 = vunpack.c.h.b16 %v662
        %v1798 = vunpack.c.l.b16 %v663
        %v1799 = vunpack.c.h.b16 %v663
        %v1800 = vunpack.c.l.b16 %v664
        %v1801 = vunpack.c.h.b16 %v664
        %v1802 = vunpack.c.l.b16 %v665
        %v1803 = vunpack.c.h.b16 %v665
        %v1804 = vunpack.c.l.b16 %v666
        %v1805 = vunpack.c.h.b16 %v666
        %v1806 = vunpack.c.l.b16 %v667
        %v1807 = vunpack.c.h.b16 %v667
        %v1808 = vunpack.c.l.b16 %v668
        %v1809 = vunpack.c.h.b16 %v668
        %v1810 = vunpack.c.l.b16 %v669
        %v1811 = vunpack.c.h.b16 %v669
        %v1812 = vunpack.c.l.b16 %v670
        %v1813 = vunpack.c.h.b16 %v670
        %v1814 = vunpack.c.l.b16 %v671
        %v1815 = vunpack.c.h.b16 %v671
        %v1816 = vunpack.c.l.b16 %v672
        %v1817 = vunpack.c.h.b16 %v672
        %v1818 = vunpack.c.l.b16 %v673
        %v1819 = vunpack.c.h.b16 %v673
        %v1820 = vunpack.c.l.b16 %v674
        %v1821 = vunpack.c.h.b16 %v674
        %v1822 = vunpack.c.l.b16 %v675
        %v1823 = vunpack.c.h.b16 %v675
        %v1824 = vunpack.c.l.b16 %v676
        %v1825 = vunpack.c.h.b16 %v676
        %v1826 = vunpack.c.l.b16 %v677
        %v1827 = vunpack.c.h.b16 %v677
        %v1828 = vunpack.c.l.b16 %v678
        %v1829 = vunpack.c.h.b16 %v678
        %v1830 = vunpack.c.l.b16 %v679
        %v1831 = vunpack.c.h.b16 %v679
        %v1832 = vunpack.c.l.b16 %v680
        %v1833 = vunpack.c.h.b16 %v680
        %v1834 = vunpack.c.l.b16 %v681
        %v1835 = vunpack.c.h.b16 %v681
        %v1836 = vunpack.c.l.b16 %v682
        %v1837 = vunpack.c.h.b16 %v682
        %v1838 = vunpack.c.l.b16 %v683
        %v1839 = vunpack.c.h.b16 %v683
        %v1840 = vunpack.c.l.b16 %v684
        %v1841 = vunpack.c.h.b16 %v684
        %v1842 = vunpack.c.l.b16 %v685
        %v1843 = vunpack.c.h.b16 %v685
        %v1844 = vunpack.c.l.b16 %v686
        %v1845 = vunpack.c.h.b16 %v686
        %v1846 = vunpack.c.l.b16 %v687
        %v1847 = vunpack.c.h.b16 %v687
        %v1848 = vunpack.c.l.b16 %v688
        %v1849 = vunpack.c.h.b16 %v688
        %v1850 = vunpack.c.l.b16 %v689
        %v1851 = vunpack.c.h.b16 %v689
        %v1852 = vunpack.c.l.b16 %v690
        %v1853 = vunpack.c.h.b16 %v690
        %v1854 = vunpack.c.l.b16 %v691
        %v1855 = vunpack.c.h.b16 %v691
        %v1856 = vunpack.c.l.b16 %v692
        %v1857 = vunpack.c.h.b16 %v692
        %v1858 = vunpack.c.l.b16 %v693
        %v1859 = vunpack.c.h.b16 %v693
        %v1860 = vunpack.c.l.b16 %v694
        %v1861 = vunpack.c.h.b16 %v694
        %v1862 = vunpack.c.l.b16 %v695
        %v1863 = vunpack.c.h.b16 %v695
        %v1864 = vunpack.c.l.b16 %v696
        %v1865 = vunpack.c.h.b16 %v696
        %v1866 = vunpack.c.l.b16 %v697
        %v1867 = vunpack.c.h.b16 %v697
        %v1868 = vunpack.c.l.b16 %v698
        %v1869 = vunpack.c.h.b16 %v698
        %v1870 = vunpack.c.l.b16 %v699
        %v1871 = vunpack.c.h.b16 %v699
        %v1872 = vunpack.c.l.b16 %v700
        %v1873 = vunpack.c.h.b16 %v700
        %v1874 = vunpack.c.l.b16 %v701
        %v1875 = vunpack.c.h.b16 %v701
        %v1876 = vunpack.c.l.b16 %v702
        %v1877 = vunpack.c.h.b16 %v702
        %v1878 = vunpack.c.l.b16 %v703
        %v1879 = vunpack.c.h.b16 %v703
        %v1880 = vunpack.c.l.b16 %v704
        %v1881 = vunpack.c.h.b16 %v704
        %v1882 = vunpack.c.l.b16 %v705
        %v1883 = vunpack.c.h.b16 %v705
        %v1884 = vunpack.c.l.b16 %v706
        %v1885 = vunpack.c.h.b16 %v706
        %v1886 = vunpack.c.l.b16 %v707
        %v1887 = vunpack.c.h.b16 %v707
        %v1888 = vunpack.c.l.b16 %v708
        %v1889 = vunpack.c.h.b16 %v708
        %v1890 = vunpack.c.l.b16 %v709
        %v1891 = vunpack.c.h.b16 %v709
        %v1892 = vunpack.c.l.b16 %v710
        %v1893 = vunpack.c.h.b16 %v710
        %v1894 = vunpack.c.l.b16 %v711
        %v1895 = vunpack.c.h.b16 %v711
        %v1896 = vunpack.c.l.b16 %v712
        %v1897 = vunpack.c.h.b16 %v712
        %v1898 = vunpack.c.l.b16 %v713
        %v1899 = vunpack.c.h.b16 %v713
        %v1900 = vunpack.c.l.b16 %v714
        %v1901 = vunpack.c.h.b16 %v714
        %v1902 = vunpack.c.l.b16 %v715
        %v1903 = vunpack.c.h.b16 %v715
        %v1904 = vunpack.c.l.b16 %v716
        %v1905 = vunpack.c.h.b16 %v716
        %v1906 = vunpack.c.l.b16 %v717
        %v1907 = vunpack.c.h.b16 %v717
        %v1908 = vunpack.c.l.b16 %v718
        %v1909 = vunpack.c.h.b16 %v718
        %v1910 = vunpack.c.l.b16 %v719
        %v1911 = vunpack.c.h.b16 %v719
        %v1912 = vunpack.c.l.b16 %v720
        %v1913 = vunpack.c.h.b16 %v720
        %v1914 = vunpack.c.l.b16 %v721
        %v1915 = vunpack.c.h.b16 %v721
        %v1916 = vunpack.c.l.b16 %v722
        %v1917 = vunpack.c.h.b16 %v722
        %v1918 = vunpack.c.l.b16 %v723
        %v1919 = vunpack.c.h.b16 %v723
        %v1920 = vunpack.c.l.b16 %v724
        %v1921 = vunpack.c.h.b16 %v724
        %v1922 = vunpack.c.l.b16 %v725
        %v1923 = vunpack.c.h.b16 %v725
        %v1924 = vunpack.c.l.b16 %v726
        %v1925 = vunpack.c.h.b16 %v726
        %v1926 = vunpack.c.l.b16 %v727
        %v1927 = vunpack.c.h.b16 %v727
        %v1928 = vunpack.c.l.b16 %v728
        %v1929 = vunpack.c.h.b16 %v728
        %v1930 = vunpack.c.l.b16 %v729
        %v1931 = vunpack.c.h.b16 %v729
        %v1932 = vunpack.c.l.b16 %v730
        %v1933 = vunpack.c.h.b16 %v730
        %v1934 = vunpack.c.l.b16 %v731
        %v1935 = vunpack.c.h.b16 %v731
        %v1936 = vunpack.c.l.b16 %v732
        %v1937 = vunpack.c.h.b16 %v732
        %v1938 = vunpack.c.l.b16 %v733
        %v1939 = vunpack.c.h.b16 %v733
        %v1940 = vunpack.c.l.b16 %v734
        %v1941 = vunpack.c.h.b16 %v734
        %v1942 = vunpack.c.l.b16 %v735
        %v1943 = vunpack.c.h.b16 %v735
        %v1944 = vunpack.c.l.b16 %v736
        %v1945 = vunpack.c.h.b16 %v736
        %v1946 = vunpack.c.l.b16 %v737
        %v1947 = vunpack.c.h.b16 %v737
        %v1948 = vunpack.c.l.b16 %v738
        %v1949 = vunpack.c.h.b16 %v738
        %v1950 = vunpack.c.l.b16 %v739
        %v1951 = vunpack.c.h.b16 %v739
        %v1952 = vunpack.c.l.b16 %v740
        %v1953 = vunpack.c.h.b16 %v740
        %v1954 = vunpack.c.l.b16 %v741
        %v1955 = vunpack.c.h.b16 %v741
        %v1956 = vunpack.c.l.b16 %v742
        %v1957 = vunpack.c.h.b16 %v742
        %v1958 = vunpack.c.l.b16 %v743
        %v1959 = vunpack.c.h.b16 %v743
        %v1960 = vunpack.c.l.b16 %v744
        %v1961 = vunpack.c.h.b16 %v744
        %v1962 = vunpack.c.l.b16 %v745
        %v1963 = vunpack.c.h.b16 %v745
        %v1964 = vunpack.c.l.b16 %v746
        %v1965 = vunpack.c.h.b16 %v746
        %v1966 = vunpack.c.l.b16 %v747
        %v1967 = vunpack.c.h.b16 %v747
        %v1968 = vunpack.c.l.b16 %v748
        %v1969 = vunpack.c.h.b16 %v748
        %v1970 = vunpack.c.l.b16 %v749
        %v1971 = vunpack.c.h.b16 %v749
        %v1972 = vunpack.c.l.b16 %v750
        %v1973 = vunpack.c.h.b16 %v750
        %v1974 = vunpack.c.l.b16 %v751
        %v1975 = vunpack.c.h.b16 %v751
        %v1976 = vunpack.c.l.b16 %v752
        %v1977 = vunpack.c.h.b16 %v752
        %v1978 = vunpack.c.l.b16 %v753
        %v1979 = vunpack.c.h.b16 %v753
        %v1980 = vunpack.c.l.b16 %v754
        %v1981 = vunpack.c.h.b16 %v754
        %v1982 = vunpack.c.l.b16 %v755
        %v1983 = vunpack.c.h.b16 %v755
        %v1984 = vunpack.c.l.b16 %v756
        %v1985 = vunpack.c.h.b16 %v756
        %v1986 = vunpack.c.l.b16 %v757
        %v1987 = vunpack.c.h.b16 %v757
        %v1988 = vunpack.c.l.b16 %v758
        %v1989 = vunpack.c.h.b16 %v758
        %v1990 = vunpack.c.l.b16 %v759
        %v1991 = vunpack.c.h.b16 %v759
        %v1992 = vunpack.c.l.b16 %v760
        %v1993 = vunpack.c.h.b16 %v760
        %v1994 = vunpack.c.l.b16 %v761
        %v1995 = vunpack.c.h.b16 %v761
        %v1996 = vunpack.c.l.b16 %v762
        %v1997 = vunpack.c.h.b16 %v762
        %v1998 = vunpack.c.l.b16 %v763
        %v1999 = vunpack.c.h.b16 %v763
        %v2000 = vunpack.c.l.b16 %v764
        %v2001 = vunpack.c.h.b16 %v764
        %v2002 = vunpack.c.l.b16 %v765
        %v2003 = vunpack.c.h.b16 %v765
        %v2004 = vunpack.c.l.b16 %v766
        %v2005 = vunpack.c.h.b16 %v766
        %v2006 = vunpack.c.l.b16 %v767
        %v2007 = vunpack.c.h.b16 %v767
        %v2008 = vunpack.c.l.b16 %v768
        %v2009 = vunpack.c.h.b16 %v768
        %v2010 = vunpack.c.l.b16 %v769
        %v2011 = vunpack.c.h.b16 %v769
        %v2012 = vunpack.c.l.b16 %v770
        %v2013 = vunpack.c.h.b16 %v770
        %v2014 = vunpack.c.l.b16 %v771
        %v2015 = vunpack.c.h.b16 %v771
        %v2016 = vunpack.c.l.b16 %v772
        %v2017 = vunpack.c.h.b16 %v772
        %v2018 = vunpack.c.l.b16 %v773
        %v2019 = vunpack.c.h.b16 %v773
        %v2020 = vunpack.c.l.b16 %v774
        %v2021 = vunpack.c.h.b16 %v774
        %v2022 = vunpack.c.l.b16 %v775
        %v2023 = vunpack.c.h.b16 %v775
        %v2024 = vunpack.c.l.b16 %v776
        %v2025 = vunpack.c.h.b16 %v776
        %v2026 = vunpack.c.l.b16 %v777
        %v2027 = vunpack.c.h.b16 %v777
        %v2028 = vunpack.c.l.b16 %v778
        %v2029 = vunpack.c.h.b16 %v778
        %v2030 = vunpack.c.l.b16 %v779
        %v2031 = vunpack.c.h.b16 %v779
        %v2032 = vunpack.c.l.b16 %v780
        %v2033 = vunpack.c.h.b16 %v780
        %v2034 = vunpack.c.l.b16 %v781
        %v2035 = vunpack.c.h.b16 %v781
        %v2036 = vunpack.c.l.b16 %v782
        %v2037 = vunpack.c.h.b16 %v782
        %v2038 = vunpack.c.l.b16 %v783
        %v2039 = vunpack.c.h.b16 %v783
        %v2040 = vunpack.c.l.b16 %v784
        %v2041 = vunpack.c.h.b16 %v784
        %v2042 = vunpack.c.l.b16 %v785
        %v2043 = vunpack.c.h.b16 %v785
        %v2044 = vunpack.c.l.b16 %v786
        %v2045 = vunpack.c.h.b16 %v786
        %v2046 = vunpack.c.l.b16 %v787
        %v2047 = vunpack.c.h.b16 %v787
        %v2048 = vunpack.c.l.b16 %v788
        %v2049 = vunpack.c.h.b16 %v788
        %v2050 = vunpack.c.l.b16 %v789
        %v2051 = vunpack.c.h.b16 %v789
        %v2052 = vunpack.c.l.b16 %v790
        %v2053 = vunpack.c.h.b16 %v790
        %v2054 = vunpack.c.l.b16 %v791
        %v2055 = vunpack.c.h.b16 %v791
        %v2056 = vunpack.c.l.b16 %v792
        %v2057 = vunpack.c.h.b16 %v792
        %v2058 = vunpack.c.l.b16 %v793
        %v2059 = vunpack.c.h.b16 %v793
        %v2060 = vunpack.c.l.b16 %v794
        %v2061 = vunpack.c.h.b16 %v794
        %v2062 = vunpack.c.l.b16 %v795
        %v2063 = vunpack.c.h.b16 %v795
        %v2064 = vunpack.c.l.b16 %v796
        %v2065 = vunpack.c.h.b16 %v796
        %v2066 = vunpack.c.l.b16 %v797
        %v2067 = vunpack.c.h.b16 %v797
        %v2068 = vunpack.c.l.b16 %v798
        %v2069 = vunpack.c.h.b16 %v798
        %v2070 = vunpack.c.l.b16 %v799
        %v2071 = vunpack.c.h.b16 %v799
        %v2072 = vunpack.c.l.b16 %v800
        %v2073 = vunpack.c.h.b16 %v800
        %v2074 = vunpack.c.l.b16 %v801
        %v2075 = vunpack.c.h.b16 %v801
        %v2076 = vunpack.c.l.b16 %v802
        %v2077 = vunpack.c.h.b16 %v802
        %v2078 = vunpack.c.l.b16 %v803
        %v2079 = vunpack.c.h.b16 %v803
        %v2080 = vunpack.c.l.b16 %v804
        %v2081 = vunpack.c.h.b16 %v804
        %v2082 = vunpack.c.l.b16 %v805
        %v2083 = vunpack.c.h.b16 %v805
        %v2084 = vunpack.c.l.b16 %v806
        %v2085 = vunpack.c.h.b16 %v806
        %v2086 = vunpack.c.l.b16 %v807
        %v2087 = vunpack.c.h.b16 %v807
        %v2088 = vunpack.c.l.b16 %v808
        %v2089 = vunpack.c.h.b16 %v808
        %v2090 = vunpack.c.l.b16 %v809
        %v2091 = vunpack.c.h.b16 %v809
        %v2092 = vunpack.c.l.b16 %v810
        %v2093 = vunpack.c.h.b16 %v810
        %v2094 = vunpack.c.l.b16 %v811
        %v2095 = vunpack.c.h.b16 %v811
        %v2096 = vunpack.c.l.b16 %v812
        %v2097 = vunpack.c.h.b16 %v812
        %v2098 = vunpack.c.l.b16 %v813
        %v2099 = vunpack.c.h.b16 %v813
        %v2100 = vunpack.c.l.b16 %v814
        %v2101 = vunpack.c.h.b16 %v814
        %v2102 = vunpack.c.l.b16 %v815
        %v2103 = vunpack.c.h.b16 %v815
        %v2104 = vunpack.c.l.b16 %v816
        %v2105 = vunpack.c.h.b16 %v816
        %v2106 = vunpack.c.l.b16 %v817
        %v2107 = vunpack.c.h.b16 %v817
        %v2108 = vunpack.c.l.b16 %v818
        %v2109 = vunpack.c.h.b16 %v818
        %v2110 = vunpack.c.l.b16 %v819
        %v2111 = vunpack.c.h.b16 %v819
        %v2112 = vunpack.c.l.b16 %v820
        %v2113 = vunpack.c.h.b16 %v820
        %v2114 = vunpack.c.l.b16 %v821
        %v2115 = vunpack.c.h.b16 %v821
        %v2116 = vunpack.c.l.b16 %v822
        %v2117 = vunpack.c.h.b16 %v822
        %v2118 = vunpack.c.l.b16 %v823
        %v2119 = vunpack.c.h.b16 %v823
        %v2120 = vunpack.c.l.b16 %v824
        %v2121 = vunpack.c.h.b16 %v824
        %v2122 = vunpack.c.l.b16 %v825
        %v2123 = vunpack.c.h.b16 %v825
        %v2124 = vunpack.c.l.b16 %v826
        %v2125 = vunpack.c.h.b16 %v826
        %v2126 = vunpack.c.l.b16 %v827
        %v2127 = vunpack.c.h.b16 %v827
        %v2128 = vunpack.c.l.b16 %v828
        %v2129 = vunpack.c.h.b16 %v828
        %v2130 = vunpack.c.l.b16 %v829
        %v2131 = vunpack.c.h.b16 %v829
        %v2132 = vunpack.c.l.b16 %v830
        %v2133 = vunpack.c.h.b16 %v830
        %v2134 = vunpack.c.l.b16 %v831
        %v2135 = vunpack.c.h.b16 %v831
        %v2136 = vunpack.c.l.b16 %v832
        %v2137 = vunpack.c.h.b16 %v832
        %v2138 = vunpack.c.l.b16 %v833
        %v2139 = vunpack.c.h.b16 %v833
        %v2140 = vunpack.c.l.b16 %v834
        %v2141 = vunpack.c.h.b16 %v834
        %v2142 = vunpack.c.l.b16 %v835
        %v2143 = vunpack.c.h.b16 %v835
        %v2144 = vunpack.c.l.b16 %v836
        %v2145 = vunpack.c.h.b16 %v836
        %v2146 = vunpack.c.l.b16 %v837
        %v2147 = vunpack.c.h.b16 %v837
        %v2148 = vunpack.c.l.b16 %v838
        %v2149 = vunpack.c.h.b16 %v838
        %v2150 = vunpack.c.l.b16 %v839
        %v2151 = vunpack.c.h.b16 %v839
        %v2152 = vunpack.c.l.b16 %v840
        %v2153 = vunpack.c.h.b16 %v840
        %v2154 = vunpack.c.l.b16 %v841
        %v2155 = vunpack.c.h.b16 %v841
        %v2156 = vunpack.c.l.b16 %v842
        %v2157 = vunpack.c.h.b16 %v842
        %v2158 = vunpack.c.l.b16 %v843
        %v2159 = vunpack.c.h.b16 %v843
        %v2160 = vunpack.c.l.b16 %v844
        %v2161 = vunpack.c.h.b16 %v844
        %v2162 = vunpack.c.l.b16 %v845
        %v2163 = vunpack.c.h.b16 %v845
        %v2164 = vunpack.c.l.b16 %v846
        %v2165 = vunpack.c.h.b16 %v846
        %v2166 = vunpack.c.l.b16 %v847
        %v2167 = vunpack.c.h.b16 %v847
        %v2168 = vunpack.c.l.b16 %v848
        %v2169 = vunpack.c.h.b16 %v848
        %v2170 = vunpack.c.l.b16 %v849
        %v2171 = vunpack.c.h.b16 %v849
        %v2172 = vunpack.c.l.b16 %v850
        %v2173 = vunpack.c.h.b16 %v850
        %v2174 = vunpack.c.l.b16 %v851
        %v2175 = vunpack.c.h.b16 %v851
        %v2176 = vunpack.c.l.b16 %v852
        %v2177 = vunpack.c.h.b16 %v852
        %v2178 = vunpack.c.l.b16 %v853
        %v2179 = vunpack.c.h.b16 %v853
        %v2180 = vunpack.c.l.b16 %v854
        %v2181 = vunpack.c.h.b16 %v854
        %v2182 = vunpack.c.l.b16 %v855
        %v2183 = vunpack.c.h.b16 %v855
        %v2184 = vunpack.c.l.b16 %v856
        %v2185 = vunpack.c.h.b16 %v856
        %v2186 = vunpack.c.l.b16 %v857
        %v2187 = vunpack.c.h.b16 %v857
        %v2188 = vunpack.c.l.b16 %v858
        %v2189 = vunpack.c.h.b16 %v858
        %v2190 = vunpack.c.l.b16 %v859
        %v2191 = vunpack.c.h.b16 %v859
        %v2192 = vunpack.c.l.b16 %v860
        %v2193 = vunpack.c.h.b16 %v860
        %v2194 = vunpack.c.l.b16 %v861
        %v2195 = vunpack.c.h.b16 %v861
        %v2196 = vunpack.c.l.b16 %v862
        %v2197 = vunpack.c.h.b16 %v862
        %v2198 = vunpack.c.l.b16 %v863
        %v2199 = vunpack.c.h.b16 %v863
        %v2200 = vunpack.c.l.b16 %v864
        %v2201 = vunpack.c.h.b16 %v864
        %v2202 = vunpack.c.l.b16 %v865
        %v2203 = vunpack.c.h.b16 %v865
        %v2204 = vunpack.c.l.b16 %v866
        %v2205 = vunpack.c.h.b16 %v866
        %v2206 = vunpack.c.l.b16 %v867
        %v2207 = vunpack.c.h.b16 %v867
        %v2208 = vunpack.c.l.b16 %v868
        %v2209 = vunpack.c.h.b16 %v868
        %v2210 = vunpack.c.l.b16 %v869
        %v2211 = vunpack.c.h.b16 %v869
        %v2212 = vunpack.c.l.b16 %v870
        %v2213 = vunpack.c.h.b16 %v870
        %v2214 = vunpack.c.l.b16 %v871
        %v2215 = vunpack.c.h.b16 %v871
        %v2216 = vunpack.c.l.b16 %v872
        %v2217 = vunpack.c.h.b16 %v872
        %v2218 = vunpack.c.l.b16 %v873
        %v2219 = vunpack.c.h.b16 %v873
        %v2220 = vunpack.c.l.b16 %v874
        %v2221 = vunpack.c.h.b16 %v874
        %v2222 = vunpack.c.l.b16 %v875
        %v2223 = vunpack.c.h.b16 %v875
        %v2224 = vunpack.c.l.b16 %v876
        %v2225 = vunpack.c.h.b16 %v876
        %v2226 = vunpack.c.l.b16 %v877
        %v2227 = vunpack.c.h.b16 %v877
        %v2228 = vunpack.c.l.b16 %v878
        %v2229 = vunpack.c.h.b16 %v878
        %v2230 = vunpack.c.l.b16 %v879
        %v2231 = vunpack.c.h.b16 %v879
        %v2232 = vunpack.c.l.b16 %v880
        %v2233 = vunpack.c.h.b16 %v880
        %v2234 = vunpack.c.l.b16 %v881
        %v2235 = vunpack.c.h.b16 %v881
        %v2236 = vunpack.c.l.b16 %v882
        %v2237 = vunpack.c.h.b16 %v882
        %v2238 = vunpack.c.l.b16 %v883
        %v2239 = vunpack.c.h.b16 %v883
        %v2240 = vunpack.c.l.b16 %v884
        %v2241 = vunpack.c.h.b16 %v884
        %v2242 = vunpack.c.l.b16 %v885
        %v2243 = vunpack.c.h.b16 %v885
        %v2244 = vunpack.c.l.b16 %v886
        %v2245 = vunpack.c.h.b16 %v886
        %v2246 = vunpack.c.l.b16 %v887
        %v2247 = vunpack.c.h.b16 %v887
        %v2248 = vunpack.c.l.b16 %v888
        %v2249 = vunpack.c.h.b16 %v888
        %v2250 = vunpack.c.l.b16 %v889
        %v2251 = vunpack.c.h.b16 %v889
        %v2252 = vunpack.c.l.b16 %v890
        %v2253 = vunpack.c.h.b16 %v890
        %v2254 = vunpack.c.l.b16 %v891
        %v2255 = vunpack.c.h.b16 %v891
        %v2256 = vunpack.c.l.b16 %v892
        %v2257 = vunpack.c.h.b16 %v892
        %v2258 = vunpack.c.l.b16 %v893
        %v2259 = vunpack.c.h.b16 %v893
        %v2260 = vunpack.c.l.b16 %v894
        %v2261 = vunpack.c.h.b16 %v894
        %v2262 = vunpack.c.l.b16 %v895
        %v2263 = vunpack.c.h.b16 %v895
        %v2264 = vunpack.c.l.b16 %v896
        %v2265 = vunpack.c.h.b16 %v896
        %v2266 = vunpack.c.l.b16 %v897
        %v2267 = vunpack.c.h.b16 %v897
        %v2268 = vunpack.c.l.b16 %v898
        %v2269 = vunpack.c.h.b16 %v898
        %v2270 = vunpack.c.l.b16 %v899
        %v2271 = vunpack.c.h.b16 %v899
        %v2272 = vunpack.c.l.b16 %v900
        %v2273 = vunpack.c.h.b16 %v900
        %v2274 = vunpack.c.l.b16 %v901
        %v2275 = vunpack.c.h.b16 %v901
        %v2276 = vunpack.c.l.b16 %v902
        %v2277 = vunpack.c.h.b16 %v902
        %v2278 = vunpack.c.l.b16 %v903
        %v2279 = vunpack.c.h.b16 %v903
        %v2280 = vunpack.c.l.b16 %v904
        %v2281 = vunpack.c.h.b16 %v904
        %v2282 = vunpack.c.l.b16 %v905
        %v2283 = vunpack.c.h.b16 %v905
        %v2284 = vunpack.c.l.b16 %v906
        %v2285 = vunpack.c.h.b16 %v906
        %v2286 = vunpack.c.l.b16 %v907
        %v2287 = vunpack.c.h.b16 %v907
        %v2288 = vunpack.c.l.b16 %v908
        %v2289 = vunpack.c.h.b16 %v908
        %v2290 = vunpack.c.l.b16 %v909
        %v2291 = vunpack.c.h.b16 %v909
        %v2292 = vunpack.c.l.b16 %v910
        %v2293 = vunpack.c.h.b16 %v910
        %v2294 = vunpack.c.l.b16 %v911
        %v2295 = vunpack.c.h.b16 %v911
        %v2296 = vunpack.c.l.b16 %v912
        %v2297 = vunpack.c.h.b16 %v912
        %v2298 = vunpack.c.l.b16 %v913
        %v2299 = vunpack.c.h.b16 %v913
        %v2300 = vunpack.c.l.b16 %v914
        %v2301 = vunpack.c.h.b16 %v914
        %v2302 = vunpack.c.l.b16 %v915
        %v2303 = vunpack.c.h.b16 %v915
        %v2304 = vunpack.c.l.b16 %v916
        %v2305 = vunpack.c.h.b16 %v916
        %v2306 = vunpack.c.l.b16 %v917
        %v2307 = vunpack.c.h.b16 %v917
        %v2308 = vunpack.c.l.b16 %v918
        %v2309 = vunpack.c.h.b16 %v918
        %v2310 = vunpack.c.l.b16 %v919
        %v2311 = vunpack.c.h.b16 %v919
        %v2312 = vunpack.c.l.b16 %v920
        %v2313 = vunpack.c.h.b16 %v920
        %v2314 = vunpack.c.l.b16 %v921
        %v2315 = vunpack.c.h.b16 %v921
        %v2316 = vunpack.c.l.b16 %v922
        %v2317 = vunpack.c.h.b16 %v922
        %v2318 = vunpack.c.l.b16 %v923
        %v2319 = vunpack.c.h.b16 %v923
        %v2320 = vunpack.c.l.b16 %v924
        %v2321 = vunpack.c.h.b16 %v924
        %v2322 = vunpack.c.l.b16 %v925
        %v2323 = vunpack.c.h.b16 %v925
        %v2324 = vunpack.c.l.b16 %v926
        %v2325 = vunpack.c.h.b16 %v926
        %v2326 = vunpack.c.l.b16 %v927
        %v2327 = vunpack.c.h.b16 %v927
        %v2328 = vunpack.c.l.b16 %v928
        %v2329 = vunpack.c.h.b16 %v928
        %v2330 = vunpack.c.l.b16 %v929
        %v2331 = vunpack.c.h.b16 %v929
        %v2332 = vunpack.c.l.b16 %v930
        %v2333 = vunpack.c.h.b16 %v930
        %v2334 = vunpack.c.l.b16 %v931
        %v2335 = vunpack.c.h.b16 %v931
        %v2336 = vunpack.c.l.b16 %v932
        %v2337 = vunpack.c.h.b16 %v932
        %v2338 = vunpack.c.l.b16 %v933
        %v2339 = vunpack.c.h.b16 %v933
        %v2340 = vunpack.c.l.b16 %v934
        %v2341 = vunpack.c.h.b16 %v934
        %v2342 = vunpack.c.l.b16 %v935
        %v2343 = vunpack.c.h.b16 %v935
        %v2344 = vunpack.c.l.b16 %v936
        %v2345 = vunpack.c.h.b16 %v936
        %v2346 = vunpack.c.l.b16 %v937
        %v2347 = vunpack.c.h.b16 %v937
        %v2348 = vunpack.c.l.b16 %v938
        %v2349 = vunpack.c.h.b16 %v938
        %v2350 = vunpack.c.l.b16 %v939
        %v2351 = vunpack.c.h.b16 %v939
        %v2352 = vunpack.c.l.b16 %v940
        %v2353 = vunpack.c.h.b16 %v940
        %v2354 = vunpack.c.l.b16 %v941
        %v2355 = vunpack.c.h.b16 %v941
        %v2356 = vunpack.c.l.b16 %v942
        %v2357 = vunpack.c.h.b16 %v942
        %v2358 = vunpack.c.l.b16 %v943
        %v2359 = vunpack.c.h.b16 %v943
        %v2360 = vunpack.c.l.b16 %v944
        %v2361 = vunpack.c.h.b16 %v944
        %v2362 = vunpack.c.l.b16 %v945
        %v2363 = vunpack.c.h.b16 %v945
        %v2364 = vunpack.c.l.b16 %v946
        %v2365 = vunpack.c.h.b16 %v946
        %v2366 = vunpack.c.l.b16 %v947
        %v2367 = vunpack.c.h.b16 %v947
        %v2368 = vunpack.c.l.b16 %v948
        %v2369 = vunpack.c.h.b16 %v948
        %v2370 = vunpack.c.l.b16 %v949
        %v2371 = vunpack.c.h.b16 %v949
        %v2372 = vunpack.c.l.b16 %v950
        %v2373 = vunpack.c.h.b16 %v950
        %v2374 = vunpack.c.l.b16 %v951
        %v2375 = vunpack.c.h.b16 %v951
        %v2376 = vunpack.c.l.b16 %v952
        %v2377 = vunpack.c.h.b16 %v952
        %v2378 = vunpack.c.l.b16 %v953
        %v2379 = vunpack.c.h.b16 %v953
        %v2380 = vunpack.c.l.b16 %v954
        %v2381 = vunpack.c.h.b16 %v954
        %v2382 = vunpack.c.l.b16 %v955
        %v2383 = vunpack.c.h.b16 %v955
        %v2384 = vunpack.c.l.b16 %v956
        %v2385 = vunpack.c.h.b16 %v956
        %v2386 = vunpack.c.l.b16 %v957
        %v2387 = vunpack.c.h.b16 %v957
        %v2388 = vunpack.c.l.b16 %v958
        %v2389 = vunpack.c.h.b16 %v958
        %v2390 = vunpack.c.l.b16 %v959
        %v2391 = vunpack.c.h.b16 %v959
        %v2392 = vunpack.c.l.b16 %v960
        %v2393 = vunpack.c.h.b16 %v960
        %v2394 = vunpack.c.l.b16 %v961
        %v2395 = vunpack.c.h.b16 %v961
        %v2396 = vunpack.c.l.b16 %v962
        %v2397 = vunpack.c.h.b16 %v962
        %v2398 = vunpack.c.l.b16 %v963
        %v2399 = vunpack.c.h.b16 %v963
        %v2400 = vunpack.c.l.b16 %v964
        %v2401 = vunpack.c.h.b16 %v964
        %v2402 = vunpack.c.l.b16 %v965
        %v2403 = vunpack.c.h.b16 %v965
        %v2404 = vunpack.c.l.b16 %v966
        %v2405 = vunpack.c.h.b16 %v966
        %v2406 = vunpack.c.l.b16 %v967
        %v2407 = vunpack.c.h.b16 %v967
        %v2408 = vunpack.c.l.b16 %v968
        %v2409 = vunpack.c.h.b16 %v968
        %v2410 = vunpack.c.l.b16 %v969
        %v2411 = vunpack.c.h.b16 %v969
        %v2412 = vunpack.c.l.b16 %v970
        %v2413 = vunpack.c.h.b16 %v970
        %v2414 = vunpack.c.l.b16 %v971
        %v2415 = vunpack.c.h.b16 %v971
        %v2416 = vunpack.c.l.b16 %v972
        %v2417 = vunpack.c.h.b16 %v972
        %v2418 = vunpack.c.l.b16 %v973
        %v2419 = vunpack.c.h.b16 %v973
        %v2420 = vunpack.c.l.b16 %v974
        %v2421 = vunpack.c.h.b16 %v974
        %v2422 = vunpack.c.l.b16 %v975
        %v2423 = vunpack.c.h.b16 %v975
        %v2424 = vunpack.c.l.b16 %v976
        %v2425 = vunpack.c.h.b16 %v976
        %v2426 = vunpack.c.l.b16 %v977
        %v2427 = vunpack.c.h.b16 %v977
        %v2428 = vunpack.c.l.b16 %v978
        %v2429 = vunpack.c.h.b16 %v978
        %v2430 = vunpack.c.l.b16 %v979
        %v2431 = vunpack.c.h.b16 %v979
        %v2432 = vunpack.c.l.b16 %v980
        %v2433 = vunpack.c.h.b16 %v980
        %v2434 = vunpack.c.l.b16 %v981
        %v2435 = vunpack.c.h.b16 %v981
        %v2436 = vunpack.c.l.b16 %v982
        %v2437 = vunpack.c.h.b16 %v982
        %v2438 = vunpack.c.l.b16 %v983
        %v2439 = vunpack.c.h.b16 %v983
        %v2440 = vunpack.c.l.b16 %v984
        %v2441 = vunpack.c.h.b16 %v984
        %v2442 = vunpack.c.l.b16 %v985
        %v2443 = vunpack.c.h.b16 %v985
        %v2444 = vunpack.c.l.b16 %v986
        %v2445 = vunpack.c.h.b16 %v986
        %v2446 = vunpack.c.l.b16 %v987
        %v2447 = vunpack.c.h.b16 %v987
        %v2448 = vunpack.c.l.b16 %v988
        %v2449 = vunpack.c.h.b16 %v988
        %v2450 = vunpack.c.l.b16 %v989
        %v2451 = vunpack.c.h.b16 %v989
        %v2452 = vunpack.c.l.b16 %v990
        %v2453 = vunpack.c.h.b16 %v990
        %v2454 = vunpack.c.l.b16 %v991
        %v2455 = vunpack.c.h.b16 %v991
        %v2456 = vunpack.c.l.b16 %v992
        %v2457 = vunpack.c.h.b16 %v992
        %v2458 = vunpack.c.l.b16 %v993
        %v2459 = vunpack.c.h.b16 %v993
        %v2460 = vunpack.c.l.b16 %v994
        %v2461 = vunpack.c.h.b16 %v994
        %v2462 = vunpack.c.l.b16 %v995
        %v2463 = vunpack.c.h.b16 %v995
        %v2464 = vunpack.c.l.b16 %v996
        %v2465 = vunpack.c.h.b16 %v996
        %v2466 = vunpack.c.l.b16 %v997
        %v2467 = vunpack.c.h.b16 %v997
        %v2468 = vunpack.c.l.b16 %v998
        %v2469 = vunpack.c.h.b16 %v998
        %v2470 = vunpack.c.l.b16 %v999
        %v2471 = vunpack.c.h.b16 %v999
        %v2472 = vunpack.c.l.b16 %v1000
        %v2473 = vunpack.c.h.b16 %v1000
        %v2474 = vunpack.c.l.b16 %v1001
        %v2475 = vunpack.c.h.b16 %v1001
        %v2476 = vunpack.c.l.b16 %v1002
        %v2477 = vunpack.c.h.b16 %v1002
        %v2478 = vunpack.c.l.b16 %v1003
        %v2479 = vunpack.c.h.b16 %v1003
        %v2480 = vunpack.c.l.b16 %v1004
        %v2481 = vunpack.c.h.b16 %v1004
        %v2482 = vunpack.c.l.b16 %v1005
        %v2483 = vunpack.c.h.b16 %v1005
        %v2484 = vunpack.c.l.b16 %v1006
        %v2485 = vunpack.c.h.b16 %v1006
        %v2486 = vunpack.c.l.b16 %v1007
        %v2487 = vunpack.c.h.b16 %v1007
        %v2488 = vunpack.c.l.b16 %v1008
        %v2489 = vunpack.c.h.b16 %v1008
        %v2490 = vunpack.c.l.b16 %v1009
        %v2491 = vunpack.c.h.b16 %v1009
        %v2492 = vunpack.c.l.b16 %v1010
        %v2493 = vunpack.c.h.b16 %v1010
        %v2494 = vunpack.c.l.b16 %v1011
        %v2495 = vunpack.c.h.b16 %v1011
        %v2496 = vunpack.c.l.b16 %v1012
        %v2497 = vunpack.c.h.b16 %v1012
        %v2498 = vunpack.c.l.b16 %v1013
        %v2499 = vunpack.c.h.b16 %v1013
        %v2500 = vunpack.c.l.b16 %v1014
        %v2501 = vunpack.c.h.b16 %v1014
        %v2502 = vunpack.c.l.b16 %v1015
        %v2503 = vunpack.c.h.b16 %v1015
        %v2504 = vunpack.c.l.b16 %v1016
        %v2505 = vunpack.c.h.b16 %v1016
        %v2506 = vunpack.c.l.b16 %v1017
        %v2507 = vunpack.c.h.b16 %v1017
        %v2508 = vunpack.c.l.b16 %v1018
        %v2509 = vunpack.c.h.b16 %v1018
        %v2510 = vunpack.c.l.b16 %v1019
        %v2511 = vunpack.c.h.b16 %v1019
        %v2512 = vunpack.c.l.b16 %v1020
        %v2513 = vunpack.c.h.b16 %v1020
        %v2514 = vunpack.c.l.b16 %v1021
        %v2515 = vunpack.c.h.b16 %v1021
        %v2516 = vunpack.c.l.b16 %v1022
        %v2517 = vunpack.c.h.b16 %v1022
        %v2518 = vunpack.c.l.b16 %v1023
        %v2519 = vunpack.c.h.b16 %v1023
        %v2520 = vunpack.c.l.b16 %v1024
        %v2521 = vunpack.c.h.b16 %v1024
        %v2522 = vunpack.c.l.b16 %v1025
        %v2523 = vunpack.c.h.b16 %v1025
        %v2524 = vunpack.c.l.b16 %v1026
        %v2525 = vunpack.c.h.b16 %v1026
        %v2526 = vunpack.c.l.b16 %v1027
        %v2527 = vunpack.c.h.b16 %v1027
        %v2528 = vunpack.c.l.b16 %v1028
        %v2529 = vunpack.c.h.b16 %v1028
        %v2530 = vunpack.c.l.b16 %v1029
        %v2531 = vunpack.c.h.b16 %v1029
        %v2532 = vunpack.c.l.b16 %v1030
        %v2533 = vunpack.c.h.b16 %v1030
        %v2534 = vunpack.c.l.b16 %v1031
        %v2535 = vunpack.c.h.b16 %v1031
        %v2536 = vunpack.c.l.b16 %v1032
        %v2537 = vunpack.c.h.b16 %v1032
        %v2538 = vunpack.c.l.b16 %v1033
        %v2539 = vunpack.c.h.b16 %v1033
        %v2540 = vunpack.c.l.b16 %v1034
        %v2541 = vunpack.c.h.b16 %v1034
        %v2542 = vunpack.c.l.b16 %v1035
        %v2543 = vunpack.c.h.b16 %v1035
        %v2544 = vunpack.c.l.b16 %v1036
        %v2545 = vunpack.c.h.b16 %v1036
        %v2546 = vunpack.c.l.b16 %v1037
        %v2547 = vunpack.c.h.b16 %v1037
        %v2548 = vunpack.c.l.b16 %v1038
        %v2549 = vunpack.c.h.b16 %v1038
        %v2550 = vunpack.c.l.b16 %v1039
        %v2551 = vunpack.c.h.b16 %v1039
        %v2552 = vunpack.c.l.b16 %v1040
        %v2553 = vunpack.c.h.b16 %v1040
        %v2554 = vunpack.c.l.b16 %v1041
        %v2555 = vunpack.c.h.b16 %v1041
        %v2556 = vunpack.c.l.b16 %v1042
        %v2557 = vunpack.c.h.b16 %v1042
        %v2558 = vunpack.c.l.b16 %v1043
        %v2559 = vunpack.c.h.b16 %v1043
        %v2560 = vunpack.c.l.b16 %v1044
        %v2561 = vunpack.c.h.b16 %v1044
        %v2562 = vunpack.c.l.b16 %v1045
        %v2563 = vunpack.c.h.b16 %v1045
        %v2564 = vunpack.c.l.b16 %v1046
        %v2565 = vunpack.c.h.b16 %v1046
        %v2566 = vunpack.c.l.b16 %v1047
        %v2567 = vunpack.c.h.b16 %v1047
        %v2568 = vunpack.c.l.b16 %v1048
        %v2569 = vunpack.c.h.b16 %v1048
        %v2570 = vunpack.c.l.b16 %v1049
        %v2571 = vunpack.c.h.b16 %v1049
        %v2572 = vunpack.c.l.b16 %v1050
        %v2573 = vunpack.c.h.b16 %v1050
        %v2574 = vunpack.c.l.b16 %v1051
        %v2575 = vunpack.c.h.b16 %v1051
        %v2576 = vunpack.c.l.b16 %v1052
        %v2577 = vunpack.c.h.b16 %v1052
        %v2578 = vunpack.c.l.b16 %v1053
        %v2579 = vunpack.c.h.b16 %v1053
        %v2580 = vunpack.c.l.b16 %v1054
        %v2581 = vunpack.c.h.b16 %v1054
        %v2582 = vunpack.c.l.b16 %v1055
        %v2583 = vunpack.c.h.b16 %v1055
        %v2584 = vunpack.c.l.b16 %v1056
        %v2585 = vunpack.c.h.b16 %v1056
        %v2586 = vunpack.c.l.b16 %v1057
        %v2587 = vunpack.c.h.b16 %v1057
        %v2588 = vunpack.c.l.b16 %v1058
        %v2589 = vunpack.c.h.b16 %v1058
        %v2590 = vunpack.c.l.b16 %v1059
        %v2591 = vunpack.c.h.b16 %v1059
        %v2592 = vunpack.c.l.b16 %v1060
        %v2593 = vunpack.c.h.b16 %v1060
        %v2594 = vunpack.c.l.b16 %v1061
        %v2595 = vunpack.c.h.b16 %v1061
        %v2596 = vunpack.c.l.b16 %v1062
        %v2597 = vunpack.c.h.b16 %v1062
        %v2598 = vunpack.c.l.b16 %v1063
        %v2599 = vunpack.c.h.b16 %v1063
        %v2600 = vpack.c.b16 %v1580, %v1576
        %v2601 = vpack.c.b16 %v1581, %v1577
        %v2602 = vpack.c.b16 %v1582, %v1578
        %v2603 = vpack.c.b16 %v1583, %v1579
        %v2604 = vpack.c.b16 %v1588, %v1584
        %v2605 = vpack.c.b16 %v1589, %v1585
        %v2606 = vpack.c.b16 %v1590, %v1586
        %v2607 = vpack.c.b16 %v1591, %v1587
        %v2608 = vpack.c.b16 %v1596, %v1592
        %v2609 = vpack.c.b16 %v1597, %v1593
        %v2610 = vpack.c.b16 %v1598, %v1594
        %v2611 = vpack.c.b16 %v1599, %v1595
        %v2612 = vpack.c.b16 %v1604, %v1600
        %v2613 = vpack.c.b16 %v1605, %v1601
        %v2614 = vpack.c.b16 %v1606, %v1602
        %v2615 = vpack.c.b16 %v1607, %v1603
        %v2616 = vpack.c.b16 %v1612, %v1608
        %v2617 = vpack.c.b16 %v1613, %v1609
        %v2618 = vpack.c.b16 %v1614, %v1610
        %v2619 = vpack.c.b16 %v1615, %v1611
        %v2620 = vpack.c.b16 %v1620, %v1616
        %v2621 = vpack.c.b16 %v1621, %v1617
        %v2622 = vpack.c.b16 %v1622, %v1618
        %v2623 = vpack.c.b16 %v1623, %v1619
        %v2624 = vpack.c.b16 %v1628, %v1624
        %v2625 = vpack.c.b16 %v1629, %v1625
        %v2626 = vpack.c.b16 %v1630, %v1626
        %v2627 = vpack.c.b16 %v1631, %v1627
        %v2628 = vpack.c.b16 %v1636, %v1632
        %v2629 = vpack.c.b16 %v1637, %v1633
        %v2630 = vpack.c.b16 %v1638, %v1634
        %v2631 = vpack.c.b16 %v1639, %v1635
        %v2632 = vpack.c.b16 %v1644, %v1640
        %v2633 = vpack.c.b16 %v1645, %v1641
        %v2634 = vpack.c.b16 %v1646, %v1642
        %v2635 = vpack.c.b16 %v1647, %v1643
        %v2636 = vpack.c.b16 %v1652, %v1648
        %v2637 = vpack.c.b16 %v1653, %v1649
        %v2638 = vpack.c.b16 %v1654, %v1650
        %v2639 = vpack.c.b16 %v1655, %v1651
        %v2640 = vpack.c.b16 %v1660, %v1656
        %v2641 = vpack.c.b16 %v1661, %v1657
        %v2642 = vpack.c.b16 %v1662, %v1658
        %v2643 = vpack.c.b16 %v1663, %v1659
        %v2644 = vpack.c.b16 %v1668, %v1664
        %v2645 = vpack.c.b16 %v1669, %v1665
        %v2646 = vpack.c.b16 %v1670, %v1666
        %v2647 = vpack.c.b16 %v1671, %v1667
        %v2648 = vpack.c.b16 %v1676, %v1672
        %v2649 = vpack.c.b16 %v1677, %v1673
        %v2650 = vpack.c.b16 %v1678, %v1674
        %v2651 = vpack.c.b16 %v1679, %v1675
        %v2652 = vpack.c.b16 %v1684, %v1680
        %v2653 = vpack.c.b16 %v1685, %v1681
        %v2654 = vpack.c.b16 %v1686, %v1682
        %v2655 = vpack.c.b16 %v1687, %v1683
        %v2656 = vpack.c.b16 %v1692, %v1688
        %v2657 = vpack.c.b16 %v1693, %v1689
        %v2658 = vpack.c.b16 %v1694, %v1690
        %v2659 = vpack.c.b16 %v1695, %v1691
        %v2660 = vpack.c.b16 %v1700, %v1696
        %v2661 = vpack.c.b16 %v1701, %v1697
        %v2662 = vpack.c.b16 %v1702, %v1698
        %v2663 = vpack.c.b16 %v1703, %v1699
        %v2664 = vpack.c.b16 %v1708, %v1704
        %v2665 = vpack.c.b16 %v1709, %v1705
        %v2666 = vpack.c.b16 %v1710, %v1706
        %v2667 = vpack.c.b16 %v1711, %v1707
        %v2668 = vpack.c.b16 %v1716, %v1712
        %v2669 = vpack.c.b16 %v1717, %v1713
        %v2670 = vpack.c.b16 %v1718, %v1714
        %v2671 = vpack.c.b16 %v1719, %v1715
        %v2672 = vpack.c.b16 %v1724, %v1720
        %v2673 = vpack.c.b16 %v1725, %v1721
        %v2674 = vpack.c.b16 %v1726, %v1722
        %v2675 = vpack.c.b16 %v1727, %v1723
        %v2676 = vpack.c.b16 %v1732, %v1728
        %v2677 = vpack.c.b16 %v1733, %v1729
        %v2678 = vpack.c.b16 %v1734, %v1730
        %v2679 = vpack.c.b16 %v1735, %v1731
        %v2680 = vpack.c.b16 %v1740, %v1736
        %v2681 = vpack.c.b16 %v1741, %v1737
        %v2682 = vpack.c.b16 %v1742, %v1738
        %v2683 = vpack.c.b16 %v1743, %v1739
        %v2684 = vpack.c.b16 %v1748, %v1744
        %v2685 = vpack.c.b16 %v1749, %v1745
        %v2686 = vpack.c.b16 %v1750, %v1746
        %v2687 = vpack.c.b16 %v1751, %v1747
        %v2688 = vpack.c.b16 %v1756, %v1752
        %v2689 = vpack.c.b16 %v1757, %v1753
        %v2690 = vpack.c.b16 %v1758, %v1754
        %v2691 = vpack.c.b16 %v1759, %v1755
        %v2692 = vpack.c.b16 %v1764, %v1760
        %v2693 = vpack.c.b16 %v1765, %v1761
        %v2694 = vpack.c.b16 %v1766, %v1762
        %v2695 = vpack.c.b16 %v1767, %v1763
        %v2696 = vpack.c.b16 %v1772, %v1768
        %v2697 = vpack.c.b16 %v1773, %v1769
        %v2698 = vpack.c.b16 %v1774, %v1770
        %v2699 = vpack.c.b16 %v1775, %v1771
        %v2700 = vpack.c.b16 %v1780, %v1776
        %v2701 = vpack.c.b16 %v1781, %v1777
        %v2702 = vpack.c.b16 %v1782, %v1778
        %v2703 = vpack.c.b16 %v1783, %v1779
        %v2704 = vpack.c.b16 %v1788, %v1784
        %v2705 = vpack.c.b16 %v1789, %v1785
        %v2706 = vpack.c.b16 %v1790, %v1786
        %v2707 = vpack.c.b16 %v1791, %v1787
        %v2708 = vpack.c.b16 %v1796, %v1792
        %v2709 = vpack.c.b16 %v1797, %v1793
        %v2710 = vpack.c.b16 %v1798, %v1794
        %v2711 = vpack.c.b16 %v1799, %v1795
        %v2712 = vpack.c.b16 %v1804, %v1800
        %v2713 = vpack.c.b16 %v1805, %v1801
        %v2714 = vpack.c.b16 %v1806, %v1802
        %v2715 = vpack.c.b16 %v1807, %v1803
        %v2716 = vpack.c.b16 %v1812, %v1808
        %v2717 = vpack.c.b16 %v1813, %v1809
        %v2718 = vpack.c.b16 %v1814, %v1810
        %v2719 = vpack.c.b16 %v1815, %v1811
        %v2720 = vpack.c.b16 %v1820, %v1816
        %v2721 = vpack.c.b16 %v1821, %v1817
        %v2722 = vpack.c.b16 %v1822, %v1818
        %v2723 = vpack.c.b16 %v1823, %v1819
        %v2724 = vpack.c.b16 %v1828, %v1824
        %v2725 = vpack.c.b16 %v1829, %v1825
        %v2726 = vpack.c.b16 %v1830, %v1826
        %v2727 = vpack.c.b16 %v1831, %v1827
        %v2728 = vpack.c.b16 %v1836, %v1832
        %v2729 = vpack.c.b16 %v1837, %v1833
        %v2730 = vpack.c.b16 %v1838, %v1834
        %v2731 = vpack.c.b16 %v1839, %v1835
        %v2732 = vpack.c.b16 %v1844, %v1840
        %v2733 = vpack.c.b16 %v1845, %v1841
        %v2734 = vpack.c.b16 %v1846, %v1842
        %v2735 = vpack.c.b16 %v1847, %v1843
        %v2736 = vpack.c.b16 %v1852, %v1848
        %v2737 = vpack.c.b16 %v1853, %v1849
        %v2738 = vpack.c.b16 %v1854, %v1850
        %v2739 = vpack.c.b16 %v1855, %v1851
        %v2740 = vpack.c.b16 %v1860, %v1856
        %v2741 = vpack.c.b16 %v1861, %v1857
        %v2742 = vpack.c.b16 %v1862, %v1858
        %v2743 = vpack.c.b16 %v1863, %v1859
        %v2744 = vpack.c.b16 %v1868, %v1864
        %v2745 = vpack.c.b16 %v1869, %v1865
        %v2746 = vpack.c.b16 %v1870, %v1866
        %v2747 = vpack.c.b16 %v1871, %v1867
        %v2748 = vpack.c.b16 %v1876, %v1872
        %v2749 = vpack.c.b16 %v1877, %v1873
        %v2750 = vpack.c.b16 %v1878, %v1874
        %v2751 = vpack.c.b16 %v1879, %v1875
        %v2752 = vpack.c.b16 %v1884, %v1880
        %v2753 = vpack.c.b16 %v1885, %v1881
        %v2754 = vpack.c.b16 %v1886, %v1882
        %v2755 = vpack.c.b16 %v1887, %v1883
        %v2756 = vpack.c.b16 %v1892, %v1888
        %v2757 = vpack.c.b16 %v1893, %v1889
        %v2758 = vpack.c.b16 %v1894, %v1890
        %v2759 = vpack.c.b16 %v1895, %v1891
        %v2760 = vpack.c.b16 %v1900, %v1896
        %v2761 = vpack.c.b16 %v1901, %v1897
        %v2762 = vpack.c.b16 %v1902, %v1898
        %v2763 = vpack.c.b16 %v1903, %v1899
        %v2764 = vpack.c.b16 %v1908, %v1904
        %v2765 = vpack.c.b16 %v1909, %v1905
        %v2766 = vpack.c.b16 %v1910, %v1906
        %v2767 = vpack.c.b16 %v1911, %v1907
        %v2768 = vpack.c.b16 %v1916, %v1912
        %v2769 = vpack.c.b16 %v1917, %v1913
        %v2770 = vpack.c.b16 %v1918, %v1914
        %v2771 = vpack.c.b16 %v1919, %v1915
        %v2772 = vpack.c.b16 %v1924, %v1920
        %v2773 = vpack.c.b16 %v1925, %v1921
        %v2774 = vpack.c.b16 %v1926, %v1922
        %v2775 = vpack.c.b16 %v1927, %v1923
        %v2776 = vpack.c.b16 %v1932, %v1928
        %v2777 = vpack.c.b16 %v1933, %v1929
        %v2778 = vpack.c.b16 %v1934, %v1930
        %v2779 = vpack.c.b16 %v1935, %v1931
        %v2780 = vpack.c.b16 %v1940, %v1936
        %v2781 = vpack.c.b16 %v1941, %v1937
        %v2782 = vpack.c.b16 %v1942, %v1938
        %v2783 = vpack.c.b16 %v1943, %v1939
        %v2784 = vpack.c.b16 %v1948, %v1944
        %v2785 = vpack.c.b16 %v1949, %v1945
        %v2786 = vpack.c.b16 %v1950, %v1946
        %v2787 = vpack.c.b16 %v1951, %v1947
        %v2788 = vpack.c.b16 %v1956, %v1952
        %v2789 = vpack.c.b16 %v1957, %v1953
        %v2790 = vpack.c.b16 %v1958, %v1954
        %v2791 = vpack.c.b16 %v1959, %v1955
        %v2792 = vpack.c.b16 %v1964, %v1960
        %v2793 = vpack.c.b16 %v1965, %v1961
        %v2794 = vpack.c.b16 %v1966, %v1962
        %v2795 = vpack.c.b16 %v1967, %v1963
        %v2796 = vpack.c.b16 %v1972, %v1968
        %v2797 = vpack.c.b16 %v1973, %v1969
        %v2798 = vpack.c.b16 %v1974, %v1970
        %v2799 = vpack.c.b16 %v1975, %v1971
        %v2800 = vpack.c.b16 %v1980, %v1976
        %v2801 = vpack.c.b16 %v1981, %v1977
        %v2802 = vpack.c.b16 %v1982, %v1978
        %v2803 = vpack.c.b16 %v1983, %v1979
        %v2804 = vpack.c.b16 %v1988, %v1984
        %v2805 = vpack.c.b16 %v1989, %v1985
        %v2806 = vpack.c.b16 %v1990, %v1986
        %v2807 = vpack.c.b16 %v1991, %v1987
        %v2808 = vpack.c.b16 %v1996, %v1992
        %v2809 = vpack.c.b16 %v1997, %v1993
        %v2810 = vpack.c.b16 %v1998, %v1994
        %v2811 = vpack.c.b16 %v1999, %v1995
        %v2812 = vpack.c.b16 %v2004, %v2000
        %v2813 = vpack.c.b16 %v2005, %v2001
        %v2814 = vpack.c.b16 %v2006, %v2002
        %v2815 = vpack.c.b16 %v2007, %v2003
        %v2816 = vpack.c.b16 %v2012, %v2008
        %v2817 = vpack.c.b16 %v2013, %v2009
        %v2818 = vpack.c.b16 %v2014, %v2010
        %v2819 = vpack.c.b16 %v2015, %v2011
        %v2820 = vpack.c.b16 %v2020, %v2016
        %v2821 = vpack.c.b16 %v2021, %v2017
        %v2822 = vpack.c.b16 %v2022, %v2018
        %v2823 = vpack.c.b16 %v2023, %v2019
        %v2824 = vpack.c.b16 %v2028, %v2024
        %v2825 = vpack.c.b16 %v2029, %v2025
        %v2826 = vpack.c.b16 %v2030, %v2026
        %v2827 = vpack.c.b16 %v2031, %v2027
        %v2828 = vpack.c.b16 %v2036, %v2032
        %v2829 = vpack.c.b16 %v2037, %v2033
        %v2830 = vpack.c.b16 %v2038, %v2034
        %v2831 = vpack.c.b16 %v2039, %v2035
        %v2832 = vpack.c.b16 %v2044, %v2040
        %v2833 = vpack.c.b16 %v2045, %v2041
        %v2834 = vpack.c.b16 %v2046, %v2042
        %v2835 = vpack.c.b16 %v2047, %v2043
        %v2836 = vpack.c.b16 %v2052, %v2048
        %v2837 = vpack.c.b16 %v2053, %v2049
        %v2838 = vpack.c.b16 %v2054, %v2050
        %v2839 = vpack.c.b16 %v2055, %v2051
        %v2840 = vpack.c.b16 %v2060, %v2056
        %v2841 = vpack.c.b16 %v2061, %v2057
        %v2842 = vpack.c.b16 %v2062, %v2058
        %v2843 = vpack.c.b16 %v2063, %v2059
        %v2844 = vpack.c.b16 %v2068, %v2064
        %v2845 = vpack.c.b16 %v2069, %v2065
        %v2846 = vpack.c.b16 %v2070, %v2066
        %v2847 = vpack.c.b16 %v2071, %v2067
        %v2848 = vpack.c.b16 %v2076, %v2072
        %v2849 = vpack.c.b16 %v2077, %v2073
        %v2850 = vpack.c.b16 %v2078, %v2074
        %v2851 = vpack.c.b16 %v2079, %v2075
        %v2852 = vpack.c.b16 %v2084, %v2080
        %v2853 = vpack.c.b16 %v2085, %v2081
        %v2854 = vpack.c.b16 %v2086, %v2082
        %v2855 = vpack.c.b16 %v2087, %v2083
        %v2856 = vpack.c.b16 %v2092, %v2088
        %v2857 = vpack.c.b16 %v2093, %v2089
        %v2858 = vpack.c.b16 %v2094, %v2090
        %v2859 = vpack.c.b16 %v2095, %v2091
        %v2860 = vpack.c.b16 %v2100, %v2096
        %v2861 = vpack.c.b16 %v2101, %v2097
        %v2862 = vpack.c.b16 %v2102, %v2098
        %v2863 = vpack.c.b16 %v2103, %v2099
        %v2864 = vpack.c.b16 %v2108, %v2104
        %v2865 = vpack.c.b16 %v2109, %v2105
        %v2866 = vpack.c.b16 %v2110, %v2106
        %v2867 = vpack.c.b16 %v2111, %v2107
        %v2868 = vpack.c.b16 %v2116, %v2112
        %v2869 = vpack.c.b16 %v2117, %v2113
        %v2870 = vpack.c.b16 %v2118, %v2114
        %v2871 = vpack.c.b16 %v2119, %v2115
        %v2872 = vpack.c.b16 %v2124, %v2120
        %v2873 = vpack.c.b16 %v2125, %v2121
        %v2874 = vpack.c.b16 %v2126, %v2122
        %v2875 = vpack.c.b16 %v2127, %v2123
        %v2876 = vpack.c.b16 %v2132, %v2128
        %v2877 = vpack.c.b16 %v2133, %v2129
        %v2878 = vpack.c.b16 %v2134, %v2130
        %v2879 = vpack.c.b16 %v2135, %v2131
        %v2880 = vpack.c.b16 %v2140, %v2136
        %v2881 = vpack.c.b16 %v2141, %v2137
        %v2882 = vpack.c.b16 %v2142, %v2138
        %v2883 = vpack.c.b16 %v2143, %v2139
        %v2884 = vpack.c.b16 %v2148, %v2144
        %v2885 = vpack.c.b16 %v2149, %v2145
        %v2886 = vpack.c.b16 %v2150, %v2146
        %v2887 = vpack.c.b16 %v2151, %v2147
        %v2888 = vpack.c.b16 %v2156, %v2152
        %v2889 = vpack.c.b16 %v2157, %v2153
        %v2890 = vpack.c.b16 %v2158, %v2154
        %v2891 = vpack.c.b16 %v2159, %v2155
        %v2892 = vpack.c.b16 %v2164, %v2160
        %v2893 = vpack.c.b16 %v2165, %v2161
        %v2894 = vpack.c.b16 %v2166, %v2162
        %v2895 = vpack.c.b16 %v2167, %v2163
        %v2896 = vpack.c.b16 %v2172, %v2168
        %v2897 = vpack.c.b16 %v2173, %v2169
        %v2898 = vpack.c.b16 %v2174, %v2170
        %v2899 = vpack.c.b16 %v2175, %v2171
        %v2900 = vpack.c.b16 %v2180, %v2176
        %v2901 = vpack.c.b16 %v2181, %v2177
        %v2902 = vpack.c.b16 %v2182, %v2178
        %v2903 = vpack.c.b16 %v2183, %v2179
        %v2904 = vpack.c.b16 %v2188, %v2184
        %v2905 = vpack.c.b16 %v2189, %v2185
        %v2906 = vpack.c.b16 %v2190, %v2186
        %v2907 = vpack.c.b16 %v2191, %v2187
        %v2908 = vpack.c.b16 %v2196, %v2192
        %v2909 = vpack.c.b16 %v2197, %v2193
        %v2910 = vpack.c.b16 %v2198, %v2194
        %v2911 = vpack.c.b16 %v2199, %v2195
        %v2912 = vpack.c.b16 %v2204, %v2200
        %v2913 = vpack.c.b16 %v2205, %v2201
        %v2914 = vpack.c.b16 %v2206, %v2202
        %v2915 = vpack.c.b16 %v2207, %v2203
        %v2916 = vpack.c.b16 %v2212, %v2208
        %v2917 = vpack.c.b16 %v2213, %v2209
        %v2918 = vpack.c.b16 %v2214, %v2210
        %v2919 = vpack.c.b16 %v2215, %v2211
        %v2920 = vpack.c.b16 %v2220, %v2216
        %v2921 = vpack.c.b16 %v2221, %v2217
        %v2922 = vpack.c.b16 %v2222, %v2218
        %v2923 = vpack.c.b16 %v2223, %v2219
        %v2924 = vpack.c.b16 %v2228, %v2224
        %v2925 = vpack.c.b16 %v2229, %v2225
        %v2926 = vpack.c.b16 %v2230, %v2226
        %v2927 = vpack.c.b16 %v2231, %v2227
        %v2928 = vpack.c.b16 %v2236, %v2232
        %v2929 = vpack.c.b16 %v2237, %v2233
        %v2930 = vpack.c.b16 %v2238, %v2234
        %v2931 = vpack.c.b16 %v2239, %v2235
        %v2932 = vpack.c.b16 %v2244, %v2240
        %v2933 = vpack.c.b16 %v2245, %v2241
        %v2934 = vpack.c.b16 %v2246, %v2242
        %v2935 = vpack.c.b16 %v2247, %v2243
        %v2936 = vpack.c.b16 %v2252, %v2248
        %v2937 = vpack.c.b16 %v2253, %v2249
        %v2938 = vpack.c.b16 %v2254, %v2250
        %v2939 = vpack.c.b16 %v2255, %v2251
        %v2940 = vpack.c.b16 %v2260, %v2256
        %v2941 = vpack.c.b16 %v2261, %v2257
        %v2942 = vpack.c.b16 %v2262, %v2258
        %v2943 = vpack.c.b16 %v2263, %v2259
        %v2944 = vpack.c.b16 %v2268, %v2264
        %v2945 = vpack.c.b16 %v2269, %v2265
        %v2946 = vpack.c.b16 %v2270, %v2266
        %v2947 = vpack.c.b16 %v2271, %v2267
        %v2948 = vpack.c.b16 %v2276, %v2272
        %v2949 = vpack.c.b16 %v2277, %v2273
        %v2950 = vpack.c.b16 %v2278, %v2274
        %v2951 = vpack.c.b16 %v2279, %v2275
        %v2952 = vpack.c.b16 %v2284, %v2280
        %v2953 = vpack.c.b16 %v2285, %v2281
        %v2954 = vpack.c.b16 %v2286, %v2282
        %v2955 = vpack.c.b16 %v2287, %v2283
        %v2956 = vpack.c.b16 %v2292, %v2288
        %v2957 = vpack.c.b16 %v2293, %v2289
        %v2958 = vpack.c.b16 %v2294, %v2290
        %v2959 = vpack.c.b16 %v2295, %v2291
        %v2960 = vpack.c.b16 %v2300, %v2296
        %v2961 = vpack.c.b16 %v2301, %v2297
        %v2962 = vpack.c.b16 %v2302, %v2298
        %v2963 = vpack.c.b16 %v2303, %v2299
        %v2964 = vpack.c.b16 %v2308, %v2304
        %v2965 = vpack.c.b16 %v2309, %v2305
        %v2966 = vpack.c.b16 %v2310, %v2306
        %v2967 = vpack.c.b16 %v2311, %v2307
        %v2968 = vpack.c.b16 %v2316, %v2312
        %v2969 = vpack.c.b16 %v2317, %v2313
        %v2970 = vpack.c.b16 %v2318, %v2314
        %v2971 = vpack.c.b16 %v2319, %v2315
        %v2972 = vpack.c.b16 %v2324, %v2320
        %v2973 = vpack.c.b16 %v2325, %v2321
        %v2974 = vpack.c.b16 %v2326, %v2322
        %v2975 = vpack.c.b16 %v2327, %v2323
        %v2976 = vpack.c.b16 %v2332, %v2328
        %v2977 = vpack.c.b16 %v2333, %v2329
        %v2978 = vpack.c.b16 %v2334, %v2330
        %v2979 = vpack.c.b16 %v2335, %v2331
        %v2980 = vpack.c.b16 %v2340, %v2336
        %v2981 = vpack.c.b16 %v2341, %v2337
        %v2982 = vpack.c.b16 %v2342, %v2338
        %v2983 = vpack.c.b16 %v2343, %v2339
        %v2984 = vpack.c.b16 %v2348, %v2344
        %v2985 = vpack.c.b16 %v2349, %v2345
        %v2986 = vpack.c.b16 %v2350, %v2346
        %v2987 = vpack.c.b16 %v2351, %v2347
        %v2988 = vpack.c.b16 %v2356, %v2352
        %v2989 = vpack.c.b16 %v2357, %v2353
        %v2990 = vpack.c.b16 %v2358, %v2354
        %v2991 = vpack.c.b16 %v2359, %v2355
        %v2992 = vpack.c.b16 %v2364, %v2360
        %v2993 = vpack.c.b16 %v2365, %v2361
        %v2994 = vpack.c.b16 %v2366, %v2362
        %v2995 = vpack.c.b16 %v2367, %v2363
        %v2996 = vpack.c.b16 %v2372, %v2368
        %v2997 = vpack.c.b16 %v2373, %v2369
        %v2998 = vpack.c.b16 %v2374, %v2370
        %v2999 = vpack.c.b16 %v2375, %v2371
        %v3000 = vpack.c.b16 %v2380, %v2376
        %v3001 = vpack.c.b16 %v2381, %v2377
        %v3002 = vpack.c.b16 %v2382, %v2378
        %v3003 = vpack.c.b16 %v2383, %v2379
        %v3004 = vpack.c.b16 %v2388, %v2384
        %v3005 = vpack.c.b16 %v2389, %v2385
        %v3006 = vpack.c.b16 %v2390, %v2386
        %v3007 = vpack.c.b16 %v2391, %v2387
        %v3008 = vpack.c.b16 %v2396, %v2392
        %v3009 = vpack.c.b16 %v2397, %v2393
        %v3010 = vpack.c.b16 %v2398, %v2394
        %v3011 = vpack.c.b16 %v2399, %v2395
        %v3012 = vpack.c.b16 %v2404, %v2400
        %v3013 = vpack.c.b16 %v2405, %v2401
        %v3014 = vpack.c.b16 %v2406, %v2402
        %v3015 = vpack.c.b16 %v2407, %v2403
        %v3016 = vpack.c.b16 %v2412, %v2408
        %v3017 = vpack.c.b16 %v2413, %v2409
        %v3018 = vpack.c.b16 %v2414, %v2410
        %v3019 = vpack.c.b16 %v2415, %v2411
        %v3020 = vpack.c.b16 %v2420, %v2416
        %v3021 = vpack.c.b16 %v2421, %v2417
        %v3022 = vpack.c.b16 %v2422, %v2418
        %v3023 = vpack.c.b16 %v2423, %v2419
        %v3024 = vpack.c.b16 %v2428, %v2424
        %v3025 = vpack.c.b16 %v2429, %v2425
        %v3026 = vpack.c.b16 %v2430, %v2426
        %v3027 = vpack.c.b16 %v2431, %v2427
        %v3028 = vpack.c.b16 %v2436, %v2432
        %v3029 = vpack.c.b16 %v2437, %v2433
        %v3030 = vpack.c.b16 %v2438, %v2434
        %v3031 = vpack.c.b16 %v2439, %v2435
        %v3032 = vpack.c.b16 %v2444, %v2440
        %v3033 = vpack.c.b16 %v2445, %v2441
        %v3034 = vpack.c.b16 %v2446, %v2442
        %v3035 = vpack.c.b16 %v2447, %v2443
        %v3036 = vpack.c.b16 %v2452, %v2448
        %v3037 = vpack.c.b16 %v2453, %v2449
        %v3038 = vpack.c.b16 %v2454, %v2450
        %v3039 = vpack.c.b16 %v2455, %v2451
        %v3040 = vpack.c.b16 %v2460, %v2456
        %v3041 = vpack.c.b16 %v2461, %v2457
        %v3042 = vpack.c.b16 %v2462, %v2458
        %v3043 = vpack.c.b16 %v2463, %v2459
        %v3044 = vpack.c.b16 %v2468, %v2464
        %v3045 = vpack.c.b16 %v2469, %v2465
        %v3046 = vpack.c.b16 %v2470, %v2466
        %v3047 = vpack.c.b16 %v2471, %v2467
        %v3048 = vpack.c.b16 %v2476, %v2472
        %v3049 = vpack.c.b16 %v2477, %v2473
        %v3050 = vpack.c.b16 %v2478, %v2474
        %v3051 = vpack.c.b16 %v2479, %v2475
        %v3052 = vpack.c.b16 %v2484, %v2480
        %v3053 = vpack.c.b16 %v2485, %v2481
        %v3054 = vpack.c.b16 %v2486, %v2482
        %v3055 = vpack.c.b16 %v2487, %v2483
        %v3056 = vpack.c.b16 %v2492, %v2488
        %v3057 = vpack.c.b16 %v2493, %v2489
        %v3058 = vpack.c.b16 %v2494, %v2490
        %v3059 = vpack.c.b16 %v2495, %v2491
        %v3060 = vpack.c.b16 %v2500, %v2496
        %v3061 = vpack.c.b16 %v2501, %v2497
        %v3062 = vpack.c.b16 %v2502, %v2498
        %v3063 = vpack.c.b16 %v2503, %v2499
        %v3064 = vpack.c.b16 %v2508, %v2504
        %v3065 = vpack.c.b16 %v2509, %v2505
        %v3066 = vpack.c.b16 %v2510, %v2506
        %v3067 = vpack.c.b16 %v2511, %v2507
        %v3068 = vpack.c.b16 %v2516, %v2512
        %v3069 = vpack.c.b16 %v2517, %v2513
        %v3070 = vpack.c.b16 %v2518, %v2514
        %v3071 = vpack.c.b16 %v2519, %v2515
        %v3072 = vpack.c.b16 %v2524, %v2520
        %v3073 = vpack.c.b16 %v2525, %v2521
        %v3074 = vpack.c.b16 %v2526, %v2522
        %v3075 = vpack.c.b16 %v2527, %v2523
        %v3076 = vpack.c.b16 %v2532, %v2528
        %v3077 = vpack.c.b16 %v2533, %v2529
        %v3078 = vpack.c.b16 %v2534, %v2530
        %v3079 = vpack.c.b16 %v2535, %v2531
        %v3080 = vpack.c.b16 %v2540, %v2536
        %v3081 = vpack.c.b16 %v2541, %v2537
        %v3082 = vpack.c.b16 %v2542, %v2538
        %v3083 = vpack.c.b16 %v2543, %v2539
        %v3084 = vpack.c.b16 %v2548, %v2544
        %v3085 = vpack.c.b16 %v2549, %v2545
        %v3086 = vpack.c.b16 %v2550, %v2546
        %v3087 = vpack.c.b16 %v2551, %v2547
        %v3088 = vpack.c.b16 %v2556, %v2552
        %v3089 = vpack.c.b16 %v2557, %v2553
        %v3090 = vpack.c.b16 %v2558, %v2554
        %v3091 = vpack.c.b16 %v2559, %v2555
        %v3092 = vpack.c.b16 %v2564, %v2560
        %v3093 = vpack.c.b16 %v2565, %v2561
        %v3094 = vpack.c.b16 %v2566, %v2562
        %v3095 = vpack.c.b16 %v2567, %v2563
        %v3096 = vpack.c.b16 %v2572, %v2568
        %v3097 = vpack.c.b16 %v2573, %v2569
        %v3098 = vpack.c.b16 %v2574, %v2570
        %v3099 = vpack.c.b16 %v2575, %v2571
        %v3100 = vpack.c.b16 %v2580, %v2576
        %v3101 = vpack.c.b16 %v2581, %v2577
        %v3102 = vpack.c.b16 %v2582, %v2578
        %v3103 = vpack.c.b16 %v2583, %v2579
        %v3104 = vpack.c.b16 %v2588, %v2584
        %v3105 = vpack.c.b16 %v2589, %v2585
        %v3106 = vpack.c.b16 %v2590, %v2586
        %v3107 = vpack.c.b16 %v2591, %v2587
        %v3108 = vpack.c.b16 %v2596, %v2592
        %v3109 = vpack.c.b16 %v2597, %v2593
        %v3110 = vpack.c.b16 %v2598, %v2594
        %v3111 = vpack.c.b16 %v2599, %v2595
        %3624 = vmatprep.subr.bf16.mxu0 %v2629
        %3625 = vmatpush1.bf16.msra.mxu0 %v2628
        %3626 = vmatprep.subr.bf16.mxu0 %v2625
        %3627 = vmatpush1.bf16.msra.mxu0 %v2624
        %3628 = vmatprep.subr.bf16.mxu0 %v2621
        %3629 = vmatpush1.bf16.msra.mxu0 %v2620
        %3630 = vmatprep.subr.bf16.mxu0 %v2617
        %3631 = vmatpush1.bf16.msra.mxu0 %v2616
        %3632 = vmatprep.subr.bf16.mxu0 %v2613
        %3633 = vmatpush1.bf16.msra.mxu0 %v2612
        %3634 = vmatprep.subr.bf16.mxu0 %v2609
        %3635 = vmatpush1.bf16.msra.mxu0 %v2608
        %3636 = vmatprep.subr.bf16.mxu0 %v2605
        %3637 = vmatpush1.bf16.msra.mxu0 %v2604
        %3638 = vmatprep.subr.bf16.mxu0 %v2601
        %3639 = vmatpush1.bf16.msra.mxu0 %v2600
        %3640 = vmatprep.subr.bf16.mxu0 %v2661
        %3641 = vmatpush2.bf16.msra.mxu0 %v2660
        %3642 = vmatprep.subr.bf16.mxu0 %v2657
        %3643 = vmatpush2.bf16.msra.mxu0 %v2656
        %3644 = vmatprep.subr.bf16.mxu0 %v2653
        %3645 = vmatpush2.bf16.msra.mxu0 %v2652
        %3646 = vmatprep.subr.bf16.mxu0 %v2649
        %3647 = vmatpush2.bf16.msra.mxu0 %v2648
        %3648 = vmatprep.subr.bf16.mxu0 %v2645
        %3649 = vmatpush2.bf16.msra.mxu0 %v2644
        %3650 = vmatprep.subr.bf16.mxu0 %v2641
        %3651 = vmatpush2.bf16.msra.mxu0 %v2640
        %3652 = vmatprep.subr.bf16.mxu0 %v2637
        %3653 = vmatpush2.bf16.msra.mxu0 %v2636
        %3654 = vmatprep.subr.bf16.mxu0 %v2633
        %3655 = vmatpush2.bf16.msra.mxu0 %v2632
        %3656 = vmatprep.mubr.bf16.mxu0 %v537
        %3657 = vmatmul.mubr.bf16.gmra.mxu0 %v536
        %v3658 = vpop.f32.mrf.mxu0
        %v3659 = vadd.f32 0.0, %v3658
        %v3660 = vpop.f32.mrf.mxu0
        %v3661 = vadd.f32 0.0, %v3660
        %v3662 = vpop.f32.mrf.mxu0
        %v3663 = vpop.f32.mrf.mxu0
        %3664 = vdwg.mxu0
        %3665 = vmatprep.subr.bf16.mxu0 %v2693
        %3666 = vmatpush1.bf16.msra.mxu0 %v2692
        %3667 = vmatprep.subr.bf16.mxu0 %v2689
        %3668 = vmatpush1.bf16.msra.mxu0 %v2688
        %3669 = vmatprep.subr.bf16.mxu0 %v2685
        %3670 = vmatpush1.bf16.msra.mxu0 %v2684
        %3671 = vmatprep.subr.bf16.mxu0 %v2681
        %3672 = vmatpush1.bf16.msra.mxu0 %v2680
        %3673 = vmatprep.subr.bf16.mxu0 %v2677
        %3674 = vmatpush1.bf16.msra.mxu0 %v2676
        %3675 = vmatprep.subr.bf16.mxu0 %v2673
        %3676 = vmatpush1.bf16.msra.mxu0 %v2672
        %3677 = vmatprep.subr.bf16.mxu0 %v2669
        %3678 = vmatpush1.bf16.msra.mxu0 %v2668
        %3679 = vmatprep.subr.bf16.mxu0 %v2665
        %3680 = vmatpush1.bf16.msra.mxu0 %v2664
        %3681 = vmatprep.subr.bf16.mxu0 %v2725
        %3682 = vmatpush2.bf16.msra.mxu0 %v2724
        %3683 = vmatprep.subr.bf16.mxu0 %v2721
        %3684 = vmatpush2.bf16.msra.mxu0 %v2720
        %3685 = vmatprep.subr.bf16.mxu0 %v2717
        %3686 = vmatpush2.bf16.msra.mxu0 %v2716
        %3687 = vmatprep.subr.bf16.mxu0 %v2713
        %3688 = vmatpush2.bf16.msra.mxu0 %v2712
        %3689 = vmatprep.subr.bf16.mxu0 %v2709
        %3690 = vmatpush2.bf16.msra.mxu0 %v2708
        %3691 = vmatprep.subr.bf16.mxu0 %v2705
        %3692 = vmatpush2.bf16.msra.mxu0 %v2704
        %3693 = vmatprep.subr.bf16.mxu0 %v2701
        %3694 = vmatpush2.bf16.msra.mxu0 %v2700
        %3695 = vmatprep.subr.bf16.mxu0 %v2697
        %3696 = vmatpush2.bf16.msra.mxu0 %v2696
        %3697 = vmatprep.mubr.bf16.mxu0 %v539
        %3698 = vmatmul.mubr.bf16.gmra.mxu0 %v538
        %v3699 = vpop.f32.mrf.mxu0
        %v3700 = vadd.f32 %v3659, %v3699
        %v3701 = vpop.f32.mrf.mxu0
        %v3702 = vadd.f32 %v3661, %v3701
        %v3703 = vpop.f32.mrf.mxu0
        %v3704 = vpop.f32.mrf.mxu0
        %3705 = vdwg.mxu0
        %3706 = vmatprep.subr.bf16.mxu0 %v2757
        %3707 = vmatpush1.bf16.msra.mxu0 %v2756
        %3708 = vmatprep.subr.bf16.mxu0 %v2753
        %3709 = vmatpush1.bf16.msra.mxu0 %v2752
        %3710 = vmatprep.subr.bf16.mxu0 %v2749
        %3711 = vmatpush1.bf16.msra.mxu0 %v2748
        %3712 = vmatprep.subr.bf16.mxu0 %v2745
        %3713 = vmatpush1.bf16.msra.mxu0 %v2744
        %3714 = vmatprep.subr.bf16.mxu0 %v2741
        %3715 = vmatpush1.bf16.msra.mxu0 %v2740
        %3716 = vmatprep.subr.bf16.mxu0 %v2737
        %3717 = vmatpush1.bf16.msra.mxu0 %v2736
        %3718 = vmatprep.subr.bf16.mxu0 %v2733
        %3719 = vmatpush1.bf16.msra.mxu0 %v2732
        %3720 = vmatprep.subr.bf16.mxu0 %v2729
        %3721 = vmatpush1.bf16.msra.mxu0 %v2728
        %3722 = vmatprep.subr.bf16.mxu0 %v2789
        %3723 = vmatpush2.bf16.msra.mxu0 %v2788
        %3724 = vmatprep.subr.bf16.mxu0 %v2785
        %3725 = vmatpush2.bf16.msra.mxu0 %v2784
        %3726 = vmatprep.subr.bf16.mxu0 %v2781
        %3727 = vmatpush2.bf16.msra.mxu0 %v2780
        %3728 = vmatprep.subr.bf16.mxu0 %v2777
        %3729 = vmatpush2.bf16.msra.mxu0 %v2776
        %3730 = vmatprep.subr.bf16.mxu0 %v2773
        %3731 = vmatpush2.bf16.msra.mxu0 %v2772
        %3732 = vmatprep.subr.bf16.mxu0 %v2769
        %3733 = vmatpush2.bf16.msra.mxu0 %v2768
        %3734 = vmatprep.subr.bf16.mxu0 %v2765
        %3735 = vmatpush2.bf16.msra.mxu0 %v2764
        %3736 = vmatprep.subr.bf16.mxu0 %v2761
        %3737 = vmatpush2.bf16.msra.mxu0 %v2760
        %3738 = vmatprep.mubr.bf16.mxu0 %v541
        %3739 = vmatmul.mubr.bf16.gmra.mxu0 %v540
        %v3740 = vpop.f32.mrf.mxu0
        %v3741 = vadd.f32 %v3700, %v3740
        %v3742 = vpop.f32.mrf.mxu0
        %v3743 = vadd.f32 %v3702, %v3742
        %v3744 = vpop.f32.mrf.mxu0
        %v3745 = vpop.f32.mrf.mxu0
        %3746 = vdwg.mxu0
        %3747 = vmatprep.subr.bf16.mxu0 %v2821
        %3748 = vmatpush1.bf16.msra.mxu0 %v2820
        %3749 = vmatprep.subr.bf16.mxu0 %v2817
        %3750 = vmatpush1.bf16.msra.mxu0 %v2816
        %3751 = vmatprep.subr.bf16.mxu0 %v2813
        %3752 = vmatpush1.bf16.msra.mxu0 %v2812
        %3753 = vmatprep.subr.bf16.mxu0 %v2809
        %3754 = vmatpush1.bf16.msra.mxu0 %v2808
        %3755 = vmatprep.subr.bf16.mxu0 %v2805
        %3756 = vmatpush1.bf16.msra.mxu0 %v2804
        %3757 = vmatprep.subr.bf16.mxu0 %v2801
        %3758 = vmatpush1.bf16.msra.mxu0 %v2800
        %3759 = vmatprep.subr.bf16.mxu0 %v2797
        %3760 = vmatpush1.bf16.msra.mxu0 %v2796
        %3761 = vmatprep.subr.bf16.mxu0 %v2793
        %3762 = vmatpush1.bf16.msra.mxu0 %v2792
        %3763 = vmatprep.subr.bf16.mxu0 %v2853
        %3764 = vmatpush2.bf16.msra.mxu0 %v2852
        %3765 = vmatprep.subr.bf16.mxu0 %v2849
        %3766 = vmatpush2.bf16.msra.mxu0 %v2848
        %3767 = vmatprep.subr.bf16.mxu0 %v2845
        %3768 = vmatpush2.bf16.msra.mxu0 %v2844
        %3769 = vmatprep.subr.bf16.mxu0 %v2841
        %3770 = vmatpush2.bf16.msra.mxu0 %v2840
        %3771 = vmatprep.subr.bf16.mxu0 %v2837
        %3772 = vmatpush2.bf16.msra.mxu0 %v2836
        %3773 = vmatprep.subr.bf16.mxu0 %v2833
        %3774 = vmatpush2.bf16.msra.mxu0 %v2832
        %3775 = vmatprep.subr.bf16.mxu0 %v2829
        %3776 = vmatpush2.bf16.msra.mxu0 %v2828
        %3777 = vmatprep.subr.bf16.mxu0 %v2825
        %3778 = vmatpush2.bf16.msra.mxu0 %v2824
        %3779 = vmatprep.mubr.bf16.mxu0 %v543
        %3780 = vmatmul.mubr.bf16.gmra.mxu0 %v542
        %v3781 = vpop.f32.mrf.mxu0
        %v3782 = vadd.f32 %v3741, %v3781
        %v3783 = vpop.f32.mrf.mxu0
        %v3784 = vadd.f32 %v3743, %v3783
        %v3785 = vpop.f32.mrf.mxu0
        %v3786 = vpop.f32.mrf.mxu0
        %3787 = vdwg.mxu0
        %3788 = vmatprep.subr.bf16.mxu0 %v2885
        %3789 = vmatpush1.bf16.msra.mxu0 %v2884
        %3790 = vmatprep.subr.bf16.mxu0 %v2881
        %3791 = vmatpush1.bf16.msra.mxu0 %v2880
        %3792 = vmatprep.subr.bf16.mxu0 %v2877
        %3793 = vmatpush1.bf16.msra.mxu0 %v2876
        %3794 = vmatprep.subr.bf16.mxu0 %v2873
        %3795 = vmatpush1.bf16.msra.mxu0 %v2872
        %3796 = vmatprep.subr.bf16.mxu0 %v2869
        %3797 = vmatpush1.bf16.msra.mxu0 %v2868
        %3798 = vmatprep.subr.bf16.mxu0 %v2865
        %3799 = vmatpush1.bf16.msra.mxu0 %v2864
        %3800 = vmatprep.subr.bf16.mxu0 %v2861
        %3801 = vmatpush1.bf16.msra.mxu0 %v2860
        %3802 = vmatprep.subr.bf16.mxu0 %v2857
        %3803 = vmatpush1.bf16.msra.mxu0 %v2856
        %3804 = vmatprep.subr.bf16.mxu0 %v2917
        %3805 = vmatpush2.bf16.msra.mxu0 %v2916
        %3806 = vmatprep.subr.bf16.mxu0 %v2913
        %3807 = vmatpush2.bf16.msra.mxu0 %v2912
        %3808 = vmatprep.subr.bf16.mxu0 %v2909
        %3809 = vmatpush2.bf16.msra.mxu0 %v2908
        %3810 = vmatprep.subr.bf16.mxu0 %v2905
        %3811 = vmatpush2.bf16.msra.mxu0 %v2904
        %3812 = vmatprep.subr.bf16.mxu0 %v2901
        %3813 = vmatpush2.bf16.msra.mxu0 %v2900
        %3814 = vmatprep.subr.bf16.mxu0 %v2897
        %3815 = vmatpush2.bf16.msra.mxu0 %v2896
        %3816 = vmatprep.subr.bf16.mxu0 %v2893
        %3817 = vmatpush2.bf16.msra.mxu0 %v2892
        %3818 = vmatprep.subr.bf16.mxu0 %v2889
        %3819 = vmatpush2.bf16.msra.mxu0 %v2888
        %3820 = vmatprep.mubr.bf16.mxu0 %v545
        %3821 = vmatmul.mubr.bf16.gmra.mxu0 %v544
        %v3822 = vpop.f32.mrf.mxu0
        %v3823 = vadd.f32 %v3782, %v3822
        %v3824 = vpop.f32.mrf.mxu0
        %v3825 = vadd.f32 %v3784, %v3824
        %v3826 = vpop.f32.mrf.mxu0
        %v3827 = vpop.f32.mrf.mxu0
        %3828 = vdwg.mxu0
        %3829 = vmatprep.subr.bf16.mxu0 %v2949
        %3830 = vmatpush1.bf16.msra.mxu0 %v2948
        %3831 = vmatprep.subr.bf16.mxu0 %v2945
        %3832 = vmatpush1.bf16.msra.mxu0 %v2944
        %3833 = vmatprep.subr.bf16.mxu0 %v2941
        %3834 = vmatpush1.bf16.msra.mxu0 %v2940
        %3835 = vmatprep.subr.bf16.mxu0 %v2937
        %3836 = vmatpush1.bf16.msra.mxu0 %v2936
        %3837 = vmatprep.subr.bf16.mxu0 %v2933
        %3838 = vmatpush1.bf16.msra.mxu0 %v2932
        %3839 = vmatprep.subr.bf16.mxu0 %v2929
        %3840 = vmatpush1.bf16.msra.mxu0 %v2928
        %3841 = vmatprep.subr.bf16.mxu0 %v2925
        %3842 = vmatpush1.bf16.msra.mxu0 %v2924
        %3843 = vmatprep.subr.bf16.mxu0 %v2921
        %3844 = vmatpush1.bf16.msra.mxu0 %v2920
        %3845 = vmatprep.subr.bf16.mxu0 %v2981
        %3846 = vmatpush2.bf16.msra.mxu0 %v2980
        %3847 = vmatprep.subr.bf16.mxu0 %v2977
        %3848 = vmatpush2.bf16.msra.mxu0 %v2976
        %3849 = vmatprep.subr.bf16.mxu0 %v2973
        %3850 = vmatpush2.bf16.msra.mxu0 %v2972
        %3851 = vmatprep.subr.bf16.mxu0 %v2969
        %3852 = vmatpush2.bf16.msra.mxu0 %v2968
        %3853 = vmatprep.subr.bf16.mxu0 %v2965
        %3854 = vmatpush2.bf16.msra.mxu0 %v2964
        %3855 = vmatprep.subr.bf16.mxu0 %v2961
        %3856 = vmatpush2.bf16.msra.mxu0 %v2960
        %3857 = vmatprep.subr.bf16.mxu0 %v2957
        %3858 = vmatpush2.bf16.msra.mxu0 %v2956
        %3859 = vmatprep.subr.bf16.mxu0 %v2953
        %3860 = vmatpush2.bf16.msra.mxu0 %v2952
        %3861 = vmatprep.mubr.bf16.mxu0 %v547
        %3862 = vmatmul.mubr.bf16.gmra.mxu0 %v546
        %v3863 = vpop.f32.mrf.mxu0
        %v3864 = vadd.f32 %v3823, %v3863
        %v3865 = vpop.f32.mrf.mxu0
        %v3866 = vadd.f32 %v3825, %v3865
        %v3867 = vpop.f32.mrf.mxu0
        %v3868 = vpop.f32.mrf.mxu0
        %3869 = vdwg.mxu0
        %3870 = vmatprep.subr.bf16.mxu0 %v3013
        %3871 = vmatpush1.bf16.msra.mxu0 %v3012
        %3872 = vmatprep.subr.bf16.mxu0 %v3009
        %3873 = vmatpush1.bf16.msra.mxu0 %v3008
        %3874 = vmatprep.subr.bf16.mxu0 %v3005
        %3875 = vmatpush1.bf16.msra.mxu0 %v3004
        %3876 = vmatprep.subr.bf16.mxu0 %v3001
        %3877 = vmatpush1.bf16.msra.mxu0 %v3000
        %3878 = vmatprep.subr.bf16.mxu0 %v2997
        %3879 = vmatpush1.bf16.msra.mxu0 %v2996
        %3880 = vmatprep.subr.bf16.mxu0 %v2993
        %3881 = vmatpush1.bf16.msra.mxu0 %v2992
        %3882 = vmatprep.subr.bf16.mxu0 %v2989
        %3883 = vmatpush1.bf16.msra.mxu0 %v2988
        %3884 = vmatprep.subr.bf16.mxu0 %v2985
        %3885 = vmatpush1.bf16.msra.mxu0 %v2984
        %3886 = vmatprep.subr.bf16.mxu0 %v3045
        %3887 = vmatpush2.bf16.msra.mxu0 %v3044
        %3888 = vmatprep.subr.bf16.mxu0 %v3041
        %3889 = vmatpush2.bf16.msra.mxu0 %v3040
        %3890 = vmatprep.subr.bf16.mxu0 %v3037
        %3891 = vmatpush2.bf16.msra.mxu0 %v3036
        %3892 = vmatprep.subr.bf16.mxu0 %v3033
        %3893 = vmatpush2.bf16.msra.mxu0 %v3032
        %3894 = vmatprep.subr.bf16.mxu0 %v3029
        %3895 = vmatpush2.bf16.msra.mxu0 %v3028
        %3896 = vmatprep.subr.bf16.mxu0 %v3025
        %3897 = vmatpush2.bf16.msra.mxu0 %v3024
        %3898 = vmatprep.subr.bf16.mxu0 %v3021
        %3899 = vmatpush2.bf16.msra.mxu0 %v3020
        %3900 = vmatprep.subr.bf16.mxu0 %v3017
        %3901 = vmatpush2.bf16.msra.mxu0 %v3016
        %3902 = vmatprep.mubr.bf16.mxu0 %v549
        %3903 = vmatmul.mubr.bf16.gmra.mxu0 %v548
        %v3904 = vpop.f32.mrf.mxu0
        %v3905 = vadd.f32 %v3864, %v3904
        %v3906 = vpop.f32.mrf.mxu0
        %v3907 = vadd.f32 %v3866, %v3906
        %v3908 = vpop.f32.mrf.mxu0
        %v3909 = vpop.f32.mrf.mxu0
        %3910 = vdwg.mxu0
        %3911 = vmatprep.subr.bf16.mxu0 %v3077
        %3912 = vmatpush1.bf16.msra.mxu0 %v3076
        %3913 = vmatprep.subr.bf16.mxu0 %v3073
        %3914 = vmatpush1.bf16.msra.mxu0 %v3072
        %3915 = vmatprep.subr.bf16.mxu0 %v3069
        %3916 = vmatpush1.bf16.msra.mxu0 %v3068
        %3917 = vmatprep.subr.bf16.mxu0 %v3065
        %3918 = vmatpush1.bf16.msra.mxu0 %v3064
        %3919 = vmatprep.subr.bf16.mxu0 %v3061
        %3920 = vmatpush1.bf16.msra.mxu0 %v3060
        %3921 = vmatprep.subr.bf16.mxu0 %v3057
        %3922 = vmatpush1.bf16.msra.mxu0 %v3056
        %3923 = vmatprep.subr.bf16.mxu0 %v3053
        %3924 = vmatpush1.bf16.msra.mxu0 %v3052
        %3925 = vmatprep.subr.bf16.mxu0 %v3049
        %3926 = vmatpush1.bf16.msra.mxu0 %v3048
        %3927 = vmatprep.subr.bf16.mxu0 %v3109
        %3928 = vmatpush2.bf16.msra.mxu0 %v3108
        %3929 = vmatprep.subr.bf16.mxu0 %v3105
        %3930 = vmatpush2.bf16.msra.mxu0 %v3104
        %3931 = vmatprep.subr.bf16.mxu0 %v3101
        %3932 = vmatpush2.bf16.msra.mxu0 %v3100
        %3933 = vmatprep.subr.bf16.mxu0 %v3097
        %3934 = vmatpush2.bf16.msra.mxu0 %v3096
        %3935 = vmatprep.subr.bf16.mxu0 %v3093
        %3936 = vmatpush2.bf16.msra.mxu0 %v3092
        %3937 = vmatprep.subr.bf16.mxu0 %v3089
        %3938 = vmatpush2.bf16.msra.mxu0 %v3088
        %3939 = vmatprep.subr.bf16.mxu0 %v3085
        %3940 = vmatpush2.bf16.msra.mxu0 %v3084
        %3941 = vmatprep.subr.bf16.mxu0 %v3081
        %3942 = vmatpush2.bf16.msra.mxu0 %v3080
        %3943 = vmatprep.mubr.bf16.mxu0 %v551
        %3944 = vmatmul.mubr.bf16.gmra.mxu0 %v550
        %v3945 = vpop.f32.mrf.mxu0
        %v3946 = vadd.f32 %v3905, %v3945
        %v3947 = vpop.f32.mrf.mxu0
        %v3948 = vadd.f32 %v3907, %v3947
        %v3949 = vpop.f32.mrf.mxu0
        %v3950 = vpop.f32.mrf.mxu0
        %3951 = vdwg.mxu0
        %3952 = vmatprep.subr.bf16.mxu0 %v2631
        %3953 = vmatpush1.bf16.msra.mxu0 %v2630
        %3954 = vmatprep.subr.bf16.mxu0 %v2627
        %3955 = vmatpush1.bf16.msra.mxu0 %v2626
        %3956 = vmatprep.subr.bf16.mxu0 %v2623
        %3957 = vmatpush1.bf16.msra.mxu0 %v2622
        %3958 = vmatprep.subr.bf16.mxu0 %v2619
        %3959 = vmatpush1.bf16.msra.mxu0 %v2618
        %3960 = vmatprep.subr.bf16.mxu0 %v2615
        %3961 = vmatpush1.bf16.msra.mxu0 %v2614
        %3962 = vmatprep.subr.bf16.mxu0 %v2611
        %3963 = vmatpush1.bf16.msra.mxu0 %v2610
        %3964 = vmatprep.subr.bf16.mxu0 %v2607
        %3965 = vmatpush1.bf16.msra.mxu0 %v2606
        %3966 = vmatprep.subr.bf16.mxu0 %v2603
        %3967 = vmatpush1.bf16.msra.mxu0 %v2602
        %3968 = vmatprep.subr.bf16.mxu0 %v2663
        %3969 = vmatpush2.bf16.msra.mxu0 %v2662
        %3970 = vmatprep.subr.bf16.mxu0 %v2659
        %3971 = vmatpush2.bf16.msra.mxu0 %v2658
        %3972 = vmatprep.subr.bf16.mxu0 %v2655
        %3973 = vmatpush2.bf16.msra.mxu0 %v2654
        %3974 = vmatprep.subr.bf16.mxu0 %v2651
        %3975 = vmatpush2.bf16.msra.mxu0 %v2650
        %3976 = vmatprep.subr.bf16.mxu0 %v2647
        %3977 = vmatpush2.bf16.msra.mxu0 %v2646
        %3978 = vmatprep.subr.bf16.mxu0 %v2643
        %3979 = vmatpush2.bf16.msra.mxu0 %v2642
        %3980 = vmatprep.subr.bf16.mxu0 %v2639
        %3981 = vmatpush2.bf16.msra.mxu0 %v2638
        %3982 = vmatprep.subr.bf16.mxu0 %v2635
        %3983 = vmatpush2.bf16.msra.mxu0 %v2634
        %3984 = vmatprep.mubr.bf16.mxu0 %v537
        %3985 = vmatmul.mubr.bf16.gmra.mxu0 %v536
        %v3986 = vpop.f32.mrf.mxu0
        %v3987 = vadd.f32 0.0, %v3986
        %v3988 = vpop.f32.mrf.mxu0
        %v3989 = vadd.f32 0.0, %v3988
        %v3990 = vpop.f32.mrf.mxu0
        %v3991 = vpop.f32.mrf.mxu0
        %3992 = vdwg.mxu0
        %3993 = vmatprep.subr.bf16.mxu0 %v2695
        %3994 = vmatpush1.bf16.msra.mxu0 %v2694
        %3995 = vmatprep.subr.bf16.mxu0 %v2691
        %3996 = vmatpush1.bf16.msra.mxu0 %v2690
        %3997 = vmatprep.subr.bf16.mxu0 %v2687
        %3998 = vmatpush1.bf16.msra.mxu0 %v2686
        %3999 = vmatprep.subr.bf16.mxu0 %v2683
        %4000 = vmatpush1.bf16.msra.mxu0 %v2682
        %4001 = vmatprep.subr.bf16.mxu0 %v2679
        %4002 = vmatpush1.bf16.msra.mxu0 %v2678
        %4003 = vmatprep.subr.bf16.mxu0 %v2675
        %4004 = vmatpush1.bf16.msra.mxu0 %v2674
        %4005 = vmatprep.subr.bf16.mxu0 %v2671
        %4006 = vmatpush1.bf16.msra.mxu0 %v2670
        %4007 = vmatprep.subr.bf16.mxu0 %v2667
        %4008 = vmatpush1.bf16.msra.mxu0 %v2666
        %4009 = vmatprep.subr.bf16.mxu0 %v2727
        %4010 = vmatpush2.bf16.msra.mxu0 %v2726
        %4011 = vmatprep.subr.bf16.mxu0 %v2723
        %4012 = vmatpush2.bf16.msra.mxu0 %v2722
        %4013 = vmatprep.subr.bf16.mxu0 %v2719
        %4014 = vmatpush2.bf16.msra.mxu0 %v2718
        %4015 = vmatprep.subr.bf16.mxu0 %v2715
        %4016 = vmatpush2.bf16.msra.mxu0 %v2714
        %4017 = vmatprep.subr.bf16.mxu0 %v2711
        %4018 = vmatpush2.bf16.msra.mxu0 %v2710
        %4019 = vmatprep.subr.bf16.mxu0 %v2707
        %4020 = vmatpush2.bf16.msra.mxu0 %v2706
        %4021 = vmatprep.subr.bf16.mxu0 %v2703
        %4022 = vmatpush2.bf16.msra.mxu0 %v2702
        %4023 = vmatprep.subr.bf16.mxu0 %v2699
        %4024 = vmatpush2.bf16.msra.mxu0 %v2698
        %4025 = vmatprep.mubr.bf16.mxu0 %v539
        %4026 = vmatmul.mubr.bf16.gmra.mxu0 %v538
        %v4027 = vpop.f32.mrf.mxu0
        %v4028 = vadd.f32 %v3987, %v4027
        %v4029 = vpop.f32.mrf.mxu0
        %v4030 = vadd.f32 %v3989, %v4029
        %v4031 = vpop.f32.mrf.mxu0
        %v4032 = vpop.f32.mrf.mxu0
        %4033 = vdwg.mxu0
        %4034 = vmatprep.subr.bf16.mxu0 %v2759
        %4035 = vmatpush1.bf16.msra.mxu0 %v2758
        %4036 = vmatprep.subr.bf16.mxu0 %v2755
        %4037 = vmatpush1.bf16.msra.mxu0 %v2754
        %4038 = vmatprep.subr.bf16.mxu0 %v2751
        %4039 = vmatpush1.bf16.msra.mxu0 %v2750
        %4040 = vmatprep.subr.bf16.mxu0 %v2747
        %4041 = vmatpush1.bf16.msra.mxu0 %v2746
        %4042 = vmatprep.subr.bf16.mxu0 %v2743
        %4043 = vmatpush1.bf16.msra.mxu0 %v2742
        %4044 = vmatprep.subr.bf16.mxu0 %v2739
        %4045 = vmatpush1.bf16.msra.mxu0 %v2738
        %4046 = vmatprep.subr.bf16.mxu0 %v2735
        %4047 = vmatpush1.bf16.msra.mxu0 %v2734
        %4048 = vmatprep.subr.bf16.mxu0 %v2731
        %4049 = vmatpush1.bf16.msra.mxu0 %v2730
        %4050 = vmatprep.subr.bf16.mxu0 %v2791
        %4051 = vmatpush2.bf16.msra.mxu0 %v2790
        %4052 = vmatprep.subr.bf16.mxu0 %v2787
        %4053 = vmatpush2.bf16.msra.mxu0 %v2786
        %4054 = vmatprep.subr.bf16.mxu0 %v2783
        %4055 = vmatpush2.bf16.msra.mxu0 %v2782
        %4056 = vmatprep.subr.bf16.mxu0 %v2779
        %4057 = vmatpush2.bf16.msra.mxu0 %v2778
        %4058 = vmatprep.subr.bf16.mxu0 %v2775
        %4059 = vmatpush2.bf16.msra.mxu0 %v2774
        %4060 = vmatprep.subr.bf16.mxu0 %v2771
        %4061 = vmatpush2.bf16.msra.mxu0 %v2770
        %4062 = vmatprep.subr.bf16.mxu0 %v2767
        %4063 = vmatpush2.bf16.msra.mxu0 %v2766
        %4064 = vmatprep.subr.bf16.mxu0 %v2763
        %4065 = vmatpush2.bf16.msra.mxu0 %v2762
        %4066 = vmatprep.mubr.bf16.mxu0 %v541
        %4067 = vmatmul.mubr.bf16.gmra.mxu0 %v540
        %v4068 = vpop.f32.mrf.mxu0
        %v4069 = vadd.f32 %v4028, %v4068
        %v4070 = vpop.f32.mrf.mxu0
        %v4071 = vadd.f32 %v4030, %v4070
        %v4072 = vpop.f32.mrf.mxu0
        %v4073 = vpop.f32.mrf.mxu0
        %4074 = vdwg.mxu0
        %4075 = vmatprep.subr.bf16.mxu0 %v2823
        %4076 = vmatpush1.bf16.msra.mxu0 %v2822
        %4077 = vmatprep.subr.bf16.mxu0 %v2819
        %4078 = vmatpush1.bf16.msra.mxu0 %v2818
        %4079 = vmatprep.subr.bf16.mxu0 %v2815
        %4080 = vmatpush1.bf16.msra.mxu0 %v2814
        %4081 = vmatprep.subr.bf16.mxu0 %v2811
        %4082 = vmatpush1.bf16.msra.mxu0 %v2810
        %4083 = vmatprep.subr.bf16.mxu0 %v2807
        %4084 = vmatpush1.bf16.msra.mxu0 %v2806
        %4085 = vmatprep.subr.bf16.mxu0 %v2803
        %4086 = vmatpush1.bf16.msra.mxu0 %v2802
        %4087 = vmatprep.subr.bf16.mxu0 %v2799
        %4088 = vmatpush1.bf16.msra.mxu0 %v2798
        %4089 = vmatprep.subr.bf16.mxu0 %v2795
        %4090 = vmatpush1.bf16.msra.mxu0 %v2794
        %4091 = vmatprep.subr.bf16.mxu0 %v2855
        %4092 = vmatpush2.bf16.msra.mxu0 %v2854
        %4093 = vmatprep.subr.bf16.mxu0 %v2851
        %4094 = vmatpush2.bf16.msra.mxu0 %v2850
        %4095 = vmatprep.subr.bf16.mxu0 %v2847
        %4096 = vmatpush2.bf16.msra.mxu0 %v2846
        %4097 = vmatprep.subr.bf16.mxu0 %v2843
        %4098 = vmatpush2.bf16.msra.mxu0 %v2842
        %4099 = vmatprep.subr.bf16.mxu0 %v2839
        %4100 = vmatpush2.bf16.msra.mxu0 %v2838
        %4101 = vmatprep.subr.bf16.mxu0 %v2835
        %4102 = vmatpush2.bf16.msra.mxu0 %v2834
        %4103 = vmatprep.subr.bf16.mxu0 %v2831
        %4104 = vmatpush2.bf16.msra.mxu0 %v2830
        %4105 = vmatprep.subr.bf16.mxu0 %v2827
        %4106 = vmatpush2.bf16.msra.mxu0 %v2826
        %4107 = vmatprep.mubr.bf16.mxu0 %v543
        %4108 = vmatmul.mubr.bf16.gmra.mxu0 %v542
        %v4109 = vpop.f32.mrf.mxu0
        %v4110 = vadd.f32 %v4069, %v4109
        %v4111 = vpop.f32.mrf.mxu0
        %v4112 = vadd.f32 %v4071, %v4111
        %v4113 = vpop.f32.mrf.mxu0
        %v4114 = vpop.f32.mrf.mxu0
        %4115 = vdwg.mxu0
        %4116 = vmatprep.subr.bf16.mxu0 %v2887
        %4117 = vmatpush1.bf16.msra.mxu0 %v2886
        %4118 = vmatprep.subr.bf16.mxu0 %v2883
        %4119 = vmatpush1.bf16.msra.mxu0 %v2882
        %4120 = vmatprep.subr.bf16.mxu0 %v2879
        %4121 = vmatpush1.bf16.msra.mxu0 %v2878
        %4122 = vmatprep.subr.bf16.mxu0 %v2875
        %4123 = vmatpush1.bf16.msra.mxu0 %v2874
        %4124 = vmatprep.subr.bf16.mxu0 %v2871
        %4125 = vmatpush1.bf16.msra.mxu0 %v2870
        %4126 = vmatprep.subr.bf16.mxu0 %v2867
        %4127 = vmatpush1.bf16.msra.mxu0 %v2866
        %4128 = vmatprep.subr.bf16.mxu0 %v2863
        %4129 = vmatpush1.bf16.msra.mxu0 %v2862
        %4130 = vmatprep.subr.bf16.mxu0 %v2859
        %4131 = vmatpush1.bf16.msra.mxu0 %v2858
        %4132 = vmatprep.subr.bf16.mxu0 %v2919
        %4133 = vmatpush2.bf16.msra.mxu0 %v2918
        %4134 = vmatprep.subr.bf16.mxu0 %v2915
        %4135 = vmatpush2.bf16.msra.mxu0 %v2914
        %4136 = vmatprep.subr.bf16.mxu0 %v2911
        %4137 = vmatpush2.bf16.msra.mxu0 %v2910
        %4138 = vmatprep.subr.bf16.mxu0 %v2907
        %4139 = vmatpush2.bf16.msra.mxu0 %v2906
        %4140 = vmatprep.subr.bf16.mxu0 %v2903
        %4141 = vmatpush2.bf16.msra.mxu0 %v2902
        %4142 = vmatprep.subr.bf16.mxu0 %v2899
        %4143 = vmatpush2.bf16.msra.mxu0 %v2898
        %4144 = vmatprep.subr.bf16.mxu0 %v2895
        %4145 = vmatpush2.bf16.msra.mxu0 %v2894
        %4146 = vmatprep.subr.bf16.mxu0 %v2891
        %4147 = vmatpush2.bf16.msra.mxu0 %v2890
        %4148 = vmatprep.mubr.bf16.mxu0 %v545
        %4149 = vmatmul.mubr.bf16.gmra.mxu0 %v544
        %v4150 = vpop.f32.mrf.mxu0
        %v4151 = vadd.f32 %v4110, %v4150
        %v4152 = vpop.f32.mrf.mxu0
        %v4153 = vadd.f32 %v4112, %v4152
        %v4154 = vpop.f32.mrf.mxu0
        %v4155 = vpop.f32.mrf.mxu0
        %4156 = vdwg.mxu0
        %4157 = vmatprep.subr.bf16.mxu0 %v2951
        %4158 = vmatpush1.bf16.msra.mxu0 %v2950
        %4159 = vmatprep.subr.bf16.mxu0 %v2947
        %4160 = vmatpush1.bf16.msra.mxu0 %v2946
        %4161 = vmatprep.subr.bf16.mxu0 %v2943
        %4162 = vmatpush1.bf16.msra.mxu0 %v2942
        %4163 = vmatprep.subr.bf16.mxu0 %v2939
        %4164 = vmatpush1.bf16.msra.mxu0 %v2938
        %4165 = vmatprep.subr.bf16.mxu0 %v2935
        %4166 = vmatpush1.bf16.msra.mxu0 %v2934
        %4167 = vmatprep.subr.bf16.mxu0 %v2931
        %4168 = vmatpush1.bf16.msra.mxu0 %v2930
        %4169 = vmatprep.subr.bf16.mxu0 %v2927
        %4170 = vmatpush1.bf16.msra.mxu0 %v2926
        %4171 = vmatprep.subr.bf16.mxu0 %v2923
        %4172 = vmatpush1.bf16.msra.mxu0 %v2922
        %4173 = vmatprep.subr.bf16.mxu0 %v2983
        %4174 = vmatpush2.bf16.msra.mxu0 %v2982
        %4175 = vmatprep.subr.bf16.mxu0 %v2979
        %4176 = vmatpush2.bf16.msra.mxu0 %v2978
        %4177 = vmatprep.subr.bf16.mxu0 %v2975
        %4178 = vmatpush2.bf16.msra.mxu0 %v2974
        %4179 = vmatprep.subr.bf16.mxu0 %v2971
        %4180 = vmatpush2.bf16.msra.mxu0 %v2970
        %4181 = vmatprep.subr.bf16.mxu0 %v2967
        %4182 = vmatpush2.bf16.msra.mxu0 %v2966
        %4183 = vmatprep.subr.bf16.mxu0 %v2963
        %4184 = vmatpush2.bf16.msra.mxu0 %v2962
        %4185 = vmatprep.subr.bf16.mxu0 %v2959
        %4186 = vmatpush2.bf16.msra.mxu0 %v2958
        %4187 = vmatprep.subr.bf16.mxu0 %v2955
        %4188 = vmatpush2.bf16.msra.mxu0 %v2954
        %4189 = vmatprep.mubr.bf16.mxu0 %v547
        %4190 = vmatmul.mubr.bf16.gmra.mxu0 %v546
        %v4191 = vpop.f32.mrf.mxu0
        %v4192 = vadd.f32 %v4151, %v4191
        %v4193 = vpop.f32.mrf.mxu0
        %v4194 = vadd.f32 %v4153, %v4193
        %v4195 = vpop.f32.mrf.mxu0
        %v4196 = vpop.f32.mrf.mxu0
        %4197 = vdwg.mxu0
        %4198 = vmatprep.subr.bf16.mxu0 %v3015
        %4199 = vmatpush1.bf16.msra.mxu0 %v3014
        %4200 = vmatprep.subr.bf16.mxu0 %v3011
        %4201 = vmatpush1.bf16.msra.mxu0 %v3010
        %4202 = vmatprep.subr.bf16.mxu0 %v3007
        %4203 = vmatpush1.bf16.msra.mxu0 %v3006
        %4204 = vmatprep.subr.bf16.mxu0 %v3003
        %4205 = vmatpush1.bf16.msra.mxu0 %v3002
        %4206 = vmatprep.subr.bf16.mxu0 %v2999
        %4207 = vmatpush1.bf16.msra.mxu0 %v2998
        %4208 = vmatprep.subr.bf16.mxu0 %v2995
        %4209 = vmatpush1.bf16.msra.mxu0 %v2994
        %4210 = vmatprep.subr.bf16.mxu0 %v2991
        %4211 = vmatpush1.bf16.msra.mxu0 %v2990
        %4212 = vmatprep.subr.bf16.mxu0 %v2987
        %4213 = vmatpush1.bf16.msra.mxu0 %v2986
        %4214 = vmatprep.subr.bf16.mxu0 %v3047
        %4215 = vmatpush2.bf16.msra.mxu0 %v3046
        %4216 = vmatprep.subr.bf16.mxu0 %v3043
        %4217 = vmatpush2.bf16.msra.mxu0 %v3042
        %4218 = vmatprep.subr.bf16.mxu0 %v3039
        %4219 = vmatpush2.bf16.msra.mxu0 %v3038
        %4220 = vmatprep.subr.bf16.mxu0 %v3035
        %4221 = vmatpush2.bf16.msra.mxu0 %v3034
        %4222 = vmatprep.subr.bf16.mxu0 %v3031
        %4223 = vmatpush2.bf16.msra.mxu0 %v3030
        %4224 = vmatprep.subr.bf16.mxu0 %v3027
        %4225 = vmatpush2.bf16.msra.mxu0 %v3026
        %4226 = vmatprep.subr.bf16.mxu0 %v3023
        %4227 = vmatpush2.bf16.msra.mxu0 %v3022
        %4228 = vmatprep.subr.bf16.mxu0 %v3019
        %4229 = vmatpush2.bf16.msra.mxu0 %v3018
        %4230 = vmatprep.mubr.bf16.mxu0 %v549
        %4231 = vmatmul.mubr.bf16.gmra.mxu0 %v548
        %v4232 = vpop.f32.mrf.mxu0
        %v4233 = vadd.f32 %v4192, %v4232
        %v4234 = vpop.f32.mrf.mxu0
        %v4235 = vadd.f32 %v4194, %v4234
        %v4236 = vpop.f32.mrf.mxu0
        %v4237 = vpop.f32.mrf.mxu0
        %4238 = vdwg.mxu0
        %4239 = vmatprep.subr.bf16.mxu0 %v3079
        %4240 = vmatpush1.bf16.msra.mxu0 %v3078
        %4241 = vmatprep.subr.bf16.mxu0 %v3075
        %4242 = vmatpush1.bf16.msra.mxu0 %v3074
        %4243 = vmatprep.subr.bf16.mxu0 %v3071
        %4244 = vmatpush1.bf16.msra.mxu0 %v3070
        %4245 = vmatprep.subr.bf16.mxu0 %v3067
        %4246 = vmatpush1.bf16.msra.mxu0 %v3066
        %4247 = vmatprep.subr.bf16.mxu0 %v3063
        %4248 = vmatpush1.bf16.msra.mxu0 %v3062
        %4249 = vmatprep.subr.bf16.mxu0 %v3059
        %4250 = vmatpush1.bf16.msra.mxu0 %v3058
        %4251 = vmatprep.subr.bf16.mxu0 %v3055
        %4252 = vmatpush1.bf16.msra.mxu0 %v3054
        %4253 = vmatprep.subr.bf16.mxu0 %v3051
        %4254 = vmatpush1.bf16.msra.mxu0 %v3050
        %4255 = vmatprep.subr.bf16.mxu0 %v3111
        %4256 = vmatpush2.bf16.msra.mxu0 %v3110
        %4257 = vmatprep.subr.bf16.mxu0 %v3107
        %4258 = vmatpush2.bf16.msra.mxu0 %v3106
        %4259 = vmatprep.subr.bf16.mxu0 %v3103
        %4260 = vmatpush2.bf16.msra.mxu0 %v3102
        %4261 = vmatprep.subr.bf16.mxu0 %v3099
        %4262 = vmatpush2.bf16.msra.mxu0 %v3098
        %4263 = vmatprep.subr.bf16.mxu0 %v3095
        %4264 = vmatpush2.bf16.msra.mxu0 %v3094
        %4265 = vmatprep.subr.bf16.mxu0 %v3091
        %4266 = vmatpush2.bf16.msra.mxu0 %v3090
        %4267 = vmatprep.subr.bf16.mxu0 %v3087
        %4268 = vmatpush2.bf16.msra.mxu0 %v3086
        %4269 = vmatprep.subr.bf16.mxu0 %v3083
        %4270 = vmatpush2.bf16.msra.mxu0 %v3082
        %4271 = vmatprep.mubr.bf16.mxu0 %v551
        %4272 = vmatmul.mubr.bf16.gmra.mxu0 %v550
        %v4273 = vpop.f32.mrf.mxu0
        %v4274 = vadd.f32 %v4233, %v4273
        %v4275 = vpop.f32.mrf.mxu0
        %v4276 = vadd.f32 %v4235, %v4275
        %v4277 = vpop.f32.mrf.mxu0
        %v4278 = vpop.f32.mrf.mxu0
        %4279 = vdwg.mxu0
        %v4280 = vld [vmem:[%s436] sm:$0xf]
        %v4281 = vld [vmem:[%s445] sm:$0xf]
        %v4282 = vrot.slane %v3946, 4
        %v4283 = vadd.f32 %v3946, %v4282
        %v4284 = vrot.slane %v4283, 2
        %v4285 = vadd.f32 %v4283, %v4284
        %v4286 = vrot.slane %v4285, 1
        %v4287 = vadd.f32 %v4285, %v4286
        %v4288 = vrot.slane %v3948, 4
        %v4289 = vadd.f32 %v3948, %v4288
        %v4290 = vrot.slane %v4289, 2
        %v4291 = vadd.f32 %v4289, %v4290
        %v4292 = vrot.slane %v4291, 1
        %v4293 = vadd.f32 %v4291, %v4292
        %v4294 = vrot.slane %v4274, 4
        %v4295 = vadd.f32 %v4274, %v4294
        %v4296 = vrot.slane %v4295, 2
        %v4297 = vadd.f32 %v4295, %v4296
        %v4298 = vrot.slane %v4297, 1
        %v4299 = vadd.f32 %v4297, %v4298
        %v4300 = vrot.slane %v4276, 4
        %v4301 = vadd.f32 %v4276, %v4300
        %v4302 = vrot.slane %v4301, 2
        %v4303 = vadd.f32 %v4301, %v4302
        %v4304 = vrot.slane %v4303, 1
        %v4305 = vadd.f32 %v4303, %v4304
        %v4306 = vrcp.pop 8.0
        %v4307 = vmul.f32 %v4287, %v4306
        %v4308 = vmul.f32 %v4293, %v4306
        %v4309 = vmul.f32 %v4299, %v4306
        %v4310 = vmul.f32 %v4305, %v4306
        %v4311 = vsub.f32 %v3946, %v4307
        %v4312 = vsub.f32 %v3948, %v4308
        %v4313 = vsub.f32 %v4274, %v4309
        %v4314 = vsub.f32 %v4276, %v4310
        %v4315 = vmul.f32 %v4311, %v4311
        %v4316 = vmul.f32 %v4312, %v4312
        %v4317 = vmul.f32 %v4313, %v4313
        %v4318 = vmul.f32 %v4314, %v4314
        %v4319 = vrot.slane %v4315, 4
        %v4320 = vadd.f32 %v4315, %v4319
        %v4321 = vrot.slane %v4320, 2
        %v4322 = vadd.f32 %v4320, %v4321
        %v4323 = vrot.slane %v4322, 1
        %v4324 = vadd.f32 %v4322, %v4323
        %v4325 = vrot.slane %v4316, 4
        %v4326 = vadd.f32 %v4316, %v4325
        %v4327 = vrot.slane %v4326, 2
        %v4328 = vadd.f32 %v4326, %v4327
        %v4329 = vrot.slane %v4328, 1
        %v4330 = vadd.f32 %v4328, %v4329
        %v4331 = vrot.slane %v4317, 4
        %v4332 = vadd.f32 %v4317, %v4331
        %v4333 = vrot.slane %v4332, 2
        %v4334 = vadd.f32 %v4332, %v4333
        %v4335 = vrot.slane %v4334, 1
        %v4336 = vadd.f32 %v4334, %v4335
        %v4337 = vrot.slane %v4318, 4
        %v4338 = vadd.f32 %v4318, %v4337
        %v4339 = vrot.slane %v4338, 2
        %v4340 = vadd.f32 %v4338, %v4339
        %v4341 = vrot.slane %v4340, 1
        %v4342 = vadd.f32 %v4340, %v4341
        %v4343 = vmul.f32 %v4324, %v4306
        %v4344 = vmul.f32 %v4330, %v4306
        %v4345 = vmul.f32 %v4336, %v4306
        %v4346 = vmul.f32 %v4342, %v4306
        %v4347 = vadd.f32 %v4343, 1e-05
        %v4348 = vadd.f32 %v4344, 1e-05
        %v4349 = vadd.f32 %v4345, 1e-05
        %v4350 = vadd.f32 %v4346, 1e-05
        %v4351 = vrsqrt.pop %v4347
        %v4352 = vrsqrt.pop %v4348
        %v4353 = vrsqrt.pop %v4349
        %v4354 = vrsqrt.pop %v4350
        %v4359 = vcombine.low %v4351, %v4352
        %v4360 = vcombine.low %v4353, %v4354
        %v4362 = vunpack.c.l.s4 1966171168
        %v4363 = vunpack.c.0.s8 %v4362
        %v4364 = vlaneseq
        %v4365 = vshrl.u32 %v4364, 7
        %v4366 = vsub.s32 %v4363, %v4365
        %v4367 = vrot.slane %v4359, %v4366
        %v4369 = vunpack.c.l.s4 1966171168
        %v4370 = vunpack.c.0.s8 %v4369
        %v4371 = vlaneseq
        %v4372 = vshrl.u32 %v4371, 7
        %v4373 = vsub.s32 %v4370, %v4372
        %v4374 = vrot.slane %v4360, %v4373
        %v4375 = vcombine.low %v4367, %v4374
        %v4377 = vunpack.c.l.s4 1966171168
        %v4378 = vunpack.c.0.s8 %v4377
        %v4379 = vlaneseq
        %v4380 = vshrl.u32 %v4379, 7
        %v4381 = vsub.s32 %v4378, %v4380
        %v4382 = vrot.slane %v4375, %v4381
        %v4384 = vmul.f32 %v4280, %v4382
        %v4386 = vlaneseq
        %v4387 = vshrl.u32 %v4386, 7
        %v4388 = vsub.s32 0, %v4387
        %v4389 = vrot.slane %v4384, %v4388
        %v4390 = vlaneseq
        %v4391 = vshrl.u32 %v4390, 7
        %v4392 = vsub.s32 1, %v4391
        %v4393 = vrot.slane %v4384, %v4392
        %v4394 = vlaneseq
        %v4395 = vshrl.u32 %v4394, 7
        %v4396 = vsub.s32 2, %v4395
        %v4397 = vrot.slane %v4384, %v4396
        %v4398 = vlaneseq
        %v4399 = vshrl.u32 %v4398, 7
        %v4400 = vsub.s32 3, %v4399
        %v4401 = vrot.slane %v4384, %v4400
        %v4406 = vmul.f32 %v4307, %v4389
        %v4407 = vmul.f32 %v4308, %v4393
        %v4408 = vmul.f32 %v4309, %v4397
        %v4409 = vmul.f32 %v4310, %v4401
        %v4414 = vcombine.low %v4406, %v4407
        %v4415 = vcombine.low %v4408, %v4409
        %v4417 = vunpack.c.l.s4 1966171168
        %v4418 = vunpack.c.0.s8 %v4417
        %v4419 = vlaneseq
        %v4420 = vshrl.u32 %v4419, 7
        %v4421 = vsub.s32 %v4418, %v4420
        %v4422 = vrot.slane %v4414, %v4421
        %v4424 = vunpack.c.l.s4 1966171168
        %v4425 = vunpack.c.0.s8 %v4424
        %v4426 = vlaneseq
        %v4427 = vshrl.u32 %v4426, 7
        %v4428 = vsub.s32 %v4425, %v4427
        %v4429 = vrot.slane %v4415, %v4428
        %v4430 = vcombine.low %v4422, %v4429
        %v4432 = vunpack.c.l.s4 1966171168
        %v4433 = vunpack.c.0.s8 %v4432
        %v4434 = vlaneseq
        %v4435 = vshrl.u32 %v4434, 7
        %v4436 = vsub.s32 %v4433, %v4435
        %v4437 = vrot.slane %v4430, %v4436
        %v4439 = vsub.f32 %v4281, %v4437
        %v4440 = vmul.f32 %v3946, %v4389
        %v4441 = vmul.f32 %v3948, %v4393
        %v4442 = vmul.f32 %v4274, %v4397
        %v4443 = vmul.f32 %v4276, %v4401
        %v4445 = vlaneseq
        %v4446 = vshrl.u32 %v4445, 7
        %v4447 = vsub.s32 0, %v4446
        %v4448 = vrot.slane %v4439, %v4447
        %v4449 = vlaneseq
        %v4450 = vshrl.u32 %v4449, 7
        %v4451 = vsub.s32 1, %v4450
        %v4452 = vrot.slane %v4439, %v4451
        %v4453 = vlaneseq
        %v4454 = vshrl.u32 %v4453, 7
        %v4455 = vsub.s32 2, %v4454
        %v4456 = vrot.slane %v4439, %v4455
        %v4457 = vlaneseq
        %v4458 = vshrl.u32 %v4457, 7
        %v4459 = vsub.s32 3, %v4458
        %v4460 = vrot.slane %v4439, %v4459
        %v4465 = vadd.f32 %v4440, %v4448
        %v4466 = vadd.f32 %v4441, %v4452
        %v4467 = vadd.f32 %v4442, %v4456
        %v4468 = vadd.f32 %v4443, %v4460
        %v4469 = vmax.f32 %v4465, 0.0
        %v4470 = vmax.f32 %v4466, 0.0
        %v4471 = vmax.f32 %v4467, 0.0
        %v4472 = vmax.f32 %v4468, 0.0
        %v4473 = vpack.c.bf16 %v4469, %v4469
        %v4474 = vpack.c.bf16 %v4470, %v4470
        %v4475 = vpack.c.bf16 %v4471, %v4471
        %v4476 = vpack.c.bf16 %v4472, %v4472
        %v4477 = vld [vmem:[%s454] sm:$0xff]
        %v4478 = vld [vmem:[%s454 + $0x8] sm:$0xff]
        %v4479 = vld [vmem:[%s454 + $0x10] sm:$0xff]
        %v4480 = vld [vmem:[%s454 + $0x18] sm:$0xff]
        %v4481 = vld [vmem:[%s454 + $0x20] sm:$0xff]
        %v4482 = vld [vmem:[%s454 + $0x28] sm:$0xff]
        %v4483 = vld [vmem:[%s454 + $0x30] sm:$0xff]
        %v4484 = vld [vmem:[%s454 + $0x38] sm:$0xff]
        %v4485 = vld [vmem:[%s454 + $0x40] sm:$0xff]
        %v4486 = vld [vmem:[%s454 + $0x48] sm:$0xff]
        %v4487 = vld [vmem:[%s454 + $0x50] sm:$0xff]
        %v4488 = vld [vmem:[%s454 + $0x58] sm:$0xff]
        %v4489 = vld [vmem:[%s454 + $0x60] sm:$0xff]
        %v4490 = vld [vmem:[%s454 + $0x68] sm:$0xff]
        %v4491 = vld [vmem:[%s454 + $0x70] sm:$0xff]
        %v4492 = vld [vmem:[%s454 + $0x78] sm:$0xff]
        %v4493 = vld [vmem:[%s454 + $0x80] sm:$0xff]
        %v4494 = vld [vmem:[%s454 + $0x88] sm:$0xff]
        %v4495 = vld [vmem:[%s454 + $0x90] sm:$0xff]
        %v4496 = vld [vmem:[%s454 + $0x98] sm:$0xff]
        %v4497 = vld [vmem:[%s454 + $0xa0] sm:$0xff]
        %v4498 = vld [vmem:[%s454 + $0xa8] sm:$0xff]
        %v4499 = vld [vmem:[%s454 + $0xb0] sm:$0xff]
        %v4500 = vld [vmem:[%s454 + $0xb8] sm:$0xff]
        %v4501 = vld [vmem:[%s454 + $0xc0] sm:$0xff]
        %v4502 = vld [vmem:[%s454 + $0xc8] sm:$0xff]
        %v4503 = vld [vmem:[%s454 + $0xd0] sm:$0xff]
        %v4504 = vld [vmem:[%s454 + $0xd8] sm:$0xff]
        %v4505 = vld [vmem:[%s454 + $0xe0] sm:$0xff]
        %v4506 = vld [vmem:[%s454 + $0xe8] sm:$0xff]
        %v4507 = vld [vmem:[%s454 + $0xf0] sm:$0xff]
        %v4508 = vld [vmem:[%s454 + $0xf8] sm:$0xff]
        %v4509 = vld [vmem:[%s454 + $0x100] sm:$0xff]
        %v4510 = vld [vmem:[%s454 + $0x108] sm:$0xff]
        %v4511 = vld [vmem:[%s454 + $0x110] sm:$0xff]
        %v4512 = vld [vmem:[%s454 + $0x118] sm:$0xff]
        %v4513 = vld [vmem:[%s454 + $0x120] sm:$0xff]
        %v4514 = vld [vmem:[%s454 + $0x128] sm:$0xff]
        %v4515 = vld [vmem:[%s454 + $0x130] sm:$0xff]
        %v4516 = vld [vmem:[%s454 + $0x138] sm:$0xff]
        %v4517 = vld [vmem:[%s454 + $0x140] sm:$0xff]
        %v4518 = vld [vmem:[%s454 + $0x148] sm:$0xff]
        %v4519 = vld [vmem:[%s454 + $0x150] sm:$0xff]
        %v4520 = vld [vmem:[%s454 + $0x158] sm:$0xff]
        %v4521 = vld [vmem:[%s454 + $0x160] sm:$0xff]
        %v4522 = vld [vmem:[%s454 + $0x168] sm:$0xff]
        %v4523 = vld [vmem:[%s454 + $0x170] sm:$0xff]
        %v4524 = vld [vmem:[%s454 + $0x178] sm:$0xff]
        %v4525 = vld [vmem:[%s454 + $0x180] sm:$0xff]
        %v4526 = vld [vmem:[%s454 + $0x188] sm:$0xff]
        %v4527 = vld [vmem:[%s454 + $0x190] sm:$0xff]
        %v4528 = vld [vmem:[%s454 + $0x198] sm:$0xff]
        %v4529 = vld [vmem:[%s454 + $0x1a0] sm:$0xff]
        %v4530 = vld [vmem:[%s454 + $0x1a8] sm:$0xff]
        %v4531 = vld [vmem:[%s454 + $0x1b0] sm:$0xff]
        %v4532 = vld [vmem:[%s454 + $0x1b8] sm:$0xff]
        %v4533 = vld [vmem:[%s454 + $0x1c0] sm:$0xff]
        %v4534 = vld [vmem:[%s454 + $0x1c8] sm:$0xff]
        %v4535 = vld [vmem:[%s454 + $0x1d0] sm:$0xff]
        %v4536 = vld [vmem:[%s454 + $0x1d8] sm:$0xff]
        %v4537 = vld [vmem:[%s454 + $0x1e0] sm:$0xff]
        %v4538 = vld [vmem:[%s454 + $0x1e8] sm:$0xff]
        %v4539 = vld [vmem:[%s454 + $0x1f0] sm:$0xff]
        %v4540 = vld [vmem:[%s454 + $0x1f8] sm:$0xff]
        %v4541 = vld [vmem:[%s454 + $0x200] sm:$0xff]
        %v4542 = vld [vmem:[%s454 + $0x208] sm:$0xff]
        %v4543 = vld [vmem:[%s454 + $0x210] sm:$0xff]
        %v4544 = vld [vmem:[%s454 + $0x218] sm:$0xff]
        %v4545 = vld [vmem:[%s454 + $0x220] sm:$0xff]
        %v4546 = vld [vmem:[%s454 + $0x228] sm:$0xff]
        %v4547 = vld [vmem:[%s454 + $0x230] sm:$0xff]
        %v4548 = vld [vmem:[%s454 + $0x238] sm:$0xff]
        %v4549 = vld [vmem:[%s454 + $0x240] sm:$0xff]
        %v4550 = vld [vmem:[%s454 + $0x248] sm:$0xff]
        %v4551 = vld [vmem:[%s454 + $0x250] sm:$0xff]
        %v4552 = vld [vmem:[%s454 + $0x258] sm:$0xff]
        %v4553 = vld [vmem:[%s454 + $0x260] sm:$0xff]
        %v4554 = vld [vmem:[%s454 + $0x268] sm:$0xff]
        %v4555 = vld [vmem:[%s454 + $0x270] sm:$0xff]
        %v4556 = vld [vmem:[%s454 + $0x278] sm:$0xff]
        %v4557 = vld [vmem:[%s454 + $0x280] sm:$0xff]
        %v4558 = vld [vmem:[%s454 + $0x288] sm:$0xff]
        %v4559 = vld [vmem:[%s454 + $0x290] sm:$0xff]
        %v4560 = vld [vmem:[%s454 + $0x298] sm:$0xff]
        %v4561 = vld [vmem:[%s454 + $0x2a0] sm:$0xff]
        %v4562 = vld [vmem:[%s454 + $0x2a8] sm:$0xff]
        %v4563 = vld [vmem:[%s454 + $0x2b0] sm:$0xff]
        %v4564 = vld [vmem:[%s454 + $0x2b8] sm:$0xff]
        %v4565 = vld [vmem:[%s454 + $0x2c0] sm:$0xff]
        %v4566 = vld [vmem:[%s454 + $0x2c8] sm:$0xff]
        %v4567 = vld [vmem:[%s454 + $0x2d0] sm:$0xff]
        %v4568 = vld [vmem:[%s454 + $0x2d8] sm:$0xff]
        %v4569 = vld [vmem:[%s454 + $0x2e0] sm:$0xff]
        %v4570 = vld [vmem:[%s454 + $0x2e8] sm:$0xff]
        %v4571 = vld [vmem:[%s454 + $0x2f0] sm:$0xff]
        %v4572 = vld [vmem:[%s454 + $0x2f8] sm:$0xff]
        %v4573 = vld [vmem:[%s454 + $0x300] sm:$0xff]
        %v4574 = vld [vmem:[%s454 + $0x308] sm:$0xff]
        %v4575 = vld [vmem:[%s454 + $0x310] sm:$0xff]
        %v4576 = vld [vmem:[%s454 + $0x318] sm:$0xff]
        %v4577 = vld [vmem:[%s454 + $0x320] sm:$0xff]
        %v4578 = vld [vmem:[%s454 + $0x328] sm:$0xff]
        %v4579 = vld [vmem:[%s454 + $0x330] sm:$0xff]
        %v4580 = vld [vmem:[%s454 + $0x338] sm:$0xff]
        %v4581 = vld [vmem:[%s454 + $0x340] sm:$0xff]
        %v4582 = vld [vmem:[%s454 + $0x348] sm:$0xff]
        %v4583 = vld [vmem:[%s454 + $0x350] sm:$0xff]
        %v4584 = vld [vmem:[%s454 + $0x358] sm:$0xff]
        %v4585 = vld [vmem:[%s454 + $0x360] sm:$0xff]
        %v4586 = vld [vmem:[%s454 + $0x368] sm:$0xff]
        %v4587 = vld [vmem:[%s454 + $0x370] sm:$0xff]
        %v4588 = vld [vmem:[%s454 + $0x378] sm:$0xff]
        %v4589 = vld [vmem:[%s454 + $0x380] sm:$0xff]
        %v4590 = vld [vmem:[%s454 + $0x388] sm:$0xff]
        %v4591 = vld [vmem:[%s454 + $0x390] sm:$0xff]
        %v4592 = vld [vmem:[%s454 + $0x398] sm:$0xff]
        %v4593 = vld [vmem:[%s454 + $0x3a0] sm:$0xff]
        %v4594 = vld [vmem:[%s454 + $0x3a8] sm:$0xff]
        %v4595 = vld [vmem:[%s454 + $0x3b0] sm:$0xff]
        %v4596 = vld [vmem:[%s454 + $0x3b8] sm:$0xff]
        %v4597 = vld [vmem:[%s454 + $0x3c0] sm:$0xff]
        %v4598 = vld [vmem:[%s454 + $0x3c8] sm:$0xff]
        %v4599 = vld [vmem:[%s454 + $0x3d0] sm:$0xff]
        %v4600 = vld [vmem:[%s454 + $0x3d8] sm:$0xff]
        %v4601 = vld [vmem:[%s454 + $0x3e0] sm:$0xff]
        %v4602 = vld [vmem:[%s454 + $0x3e8] sm:$0xff]
        %v4603 = vld [vmem:[%s454 + $0x3f0] sm:$0xff]
        %v4604 = vld [vmem:[%s454 + $0x3f8] sm:$0xff]
        %v4605 = vld [vmem:[%s454 + $0x400] sm:$0xff]
        %v4606 = vld [vmem:[%s454 + $0x408] sm:$0xff]
        %v4607 = vld [vmem:[%s454 + $0x410] sm:$0xff]
        %v4608 = vld [vmem:[%s454 + $0x418] sm:$0xff]
        %v4609 = vld [vmem:[%s454 + $0x420] sm:$0xff]
        %v4610 = vld [vmem:[%s454 + $0x428] sm:$0xff]
        %v4611 = vld [vmem:[%s454 + $0x430] sm:$0xff]
        %v4612 = vld [vmem:[%s454 + $0x438] sm:$0xff]
        %v4613 = vld [vmem:[%s454 + $0x440] sm:$0xff]
        %v4614 = vld [vmem:[%s454 + $0x448] sm:$0xff]
        %v4615 = vld [vmem:[%s454 + $0x450] sm:$0xff]
        %v4616 = vld [vmem:[%s454 + $0x458] sm:$0xff]
        %v4617 = vld [vmem:[%s454 + $0x460] sm:$0xff]
        %v4618 = vld [vmem:[%s454 + $0x468] sm:$0xff]
        %v4619 = vld [vmem:[%s454 + $0x470] sm:$0xff]
        %v4620 = vld [vmem:[%s454 + $0x478] sm:$0xff]
        %v4621 = vld [vmem:[%s454 + $0x480] sm:$0xff]
        %v4622 = vld [vmem:[%s454 + $0x488] sm:$0xff]
        %v4623 = vld [vmem:[%s454 + $0x490] sm:$0xff]
        %v4624 = vld [vmem:[%s454 + $0x498] sm:$0xff]
        %v4625 = vld [vmem:[%s454 + $0x4a0] sm:$0xff]
        %v4626 = vld [vmem:[%s454 + $0x4a8] sm:$0xff]
        %v4627 = vld [vmem:[%s454 + $0x4b0] sm:$0xff]
        %v4628 = vld [vmem:[%s454 + $0x4b8] sm:$0xff]
        %v4629 = vld [vmem:[%s454 + $0x4c0] sm:$0xff]
        %v4630 = vld [vmem:[%s454 + $0x4c8] sm:$0xff]
        %v4631 = vld [vmem:[%s454 + $0x4d0] sm:$0xff]
        %v4632 = vld [vmem:[%s454 + $0x4d8] sm:$0xff]
        %v4633 = vld [vmem:[%s454 + $0x4e0] sm:$0xff]
        %v4634 = vld [vmem:[%s454 + $0x4e8] sm:$0xff]
        %v4635 = vld [vmem:[%s454 + $0x4f0] sm:$0xff]
        %v4636 = vld [vmem:[%s454 + $0x4f8] sm:$0xff]
        %v4637 = vld [vmem:[%s454 + $0x500] sm:$0xff]
        %v4638 = vld [vmem:[%s454 + $0x508] sm:$0xff]
        %v4639 = vld [vmem:[%s454 + $0x510] sm:$0xff]
        %v4640 = vld [vmem:[%s454 + $0x518] sm:$0xff]
        %v4641 = vld [vmem:[%s454 + $0x520] sm:$0xff]
        %v4642 = vld [vmem:[%s454 + $0x528] sm:$0xff]
        %v4643 = vld [vmem:[%s454 + $0x530] sm:$0xff]
        %v4644 = vld [vmem:[%s454 + $0x538] sm:$0xff]
        %v4645 = vld [vmem:[%s454 + $0x540] sm:$0xff]
        %v4646 = vld [vmem:[%s454 + $0x548] sm:$0xff]
        %v4647 = vld [vmem:[%s454 + $0x550] sm:$0xff]
        %v4648 = vld [vmem:[%s454 + $0x558] sm:$0xff]
        %v4649 = vld [vmem:[%s454 + $0x560] sm:$0xff]
        %v4650 = vld [vmem:[%s454 + $0x568] sm:$0xff]
        %v4651 = vld [vmem:[%s454 + $0x570] sm:$0xff]
        %v4652 = vld [vmem:[%s454 + $0x578] sm:$0xff]
        %v4653 = vld [vmem:[%s454 + $0x580] sm:$0xff]
        %v4654 = vld [vmem:[%s454 + $0x588] sm:$0xff]
        %v4655 = vld [vmem:[%s454 + $0x590] sm:$0xff]
        %v4656 = vld [vmem:[%s454 + $0x598] sm:$0xff]
        %v4657 = vld [vmem:[%s454 + $0x5a0] sm:$0xff]
        %v4658 = vld [vmem:[%s454 + $0x5a8] sm:$0xff]
        %v4659 = vld [vmem:[%s454 + $0x5b0] sm:$0xff]
        %v4660 = vld [vmem:[%s454 + $0x5b8] sm:$0xff]
        %v4661 = vld [vmem:[%s454 + $0x5c0] sm:$0xff]
        %v4662 = vld [vmem:[%s454 + $0x5c8] sm:$0xff]
        %v4663 = vld [vmem:[%s454 + $0x5d0] sm:$0xff]
        %v4664 = vld [vmem:[%s454 + $0x5d8] sm:$0xff]
        %v4665 = vld [vmem:[%s454 + $0x5e0] sm:$0xff]
        %v4666 = vld [vmem:[%s454 + $0x5e8] sm:$0xff]
        %v4667 = vld [vmem:[%s454 + $0x5f0] sm:$0xff]
        %v4668 = vld [vmem:[%s454 + $0x5f8] sm:$0xff]
        %v4669 = vld [vmem:[%s454 + $0x600] sm:$0xff]
        %v4670 = vld [vmem:[%s454 + $0x608] sm:$0xff]
        %v4671 = vld [vmem:[%s454 + $0x610] sm:$0xff]
        %v4672 = vld [vmem:[%s454 + $0x618] sm:$0xff]
        %v4673 = vld [vmem:[%s454 + $0x620] sm:$0xff]
        %v4674 = vld [vmem:[%s454 + $0x628] sm:$0xff]
        %v4675 = vld [vmem:[%s454 + $0x630] sm:$0xff]
        %v4676 = vld [vmem:[%s454 + $0x638] sm:$0xff]
        %v4677 = vld [vmem:[%s454 + $0x640] sm:$0xff]
        %v4678 = vld [vmem:[%s454 + $0x648] sm:$0xff]
        %v4679 = vld [vmem:[%s454 + $0x650] sm:$0xff]
        %v4680 = vld [vmem:[%s454 + $0x658] sm:$0xff]
        %v4681 = vld [vmem:[%s454 + $0x660] sm:$0xff]
        %v4682 = vld [vmem:[%s454 + $0x668] sm:$0xff]
        %v4683 = vld [vmem:[%s454 + $0x670] sm:$0xff]
        %v4684 = vld [vmem:[%s454 + $0x678] sm:$0xff]
        %v4685 = vld [vmem:[%s454 + $0x680] sm:$0xff]
        %v4686 = vld [vmem:[%s454 + $0x688] sm:$0xff]
        %v4687 = vld [vmem:[%s454 + $0x690] sm:$0xff]
        %v4688 = vld [vmem:[%s454 + $0x698] sm:$0xff]
        %v4689 = vld [vmem:[%s454 + $0x6a0] sm:$0xff]
        %v4690 = vld [vmem:[%s454 + $0x6a8] sm:$0xff]
        %v4691 = vld [vmem:[%s454 + $0x6b0] sm:$0xff]
        %v4692 = vld [vmem:[%s454 + $0x6b8] sm:$0xff]
        %v4693 = vld [vmem:[%s454 + $0x6c0] sm:$0xff]
        %v4694 = vld [vmem:[%s454 + $0x6c8] sm:$0xff]
        %v4695 = vld [vmem:[%s454 + $0x6d0] sm:$0xff]
        %v4696 = vld [vmem:[%s454 + $0x6d8] sm:$0xff]
        %v4697 = vld [vmem:[%s454 + $0x6e0] sm:$0xff]
        %v4698 = vld [vmem:[%s454 + $0x6e8] sm:$0xff]
        %v4699 = vld [vmem:[%s454 + $0x6f0] sm:$0xff]
        %v4700 = vld [vmem:[%s454 + $0x6f8] sm:$0xff]
        %v4701 = vld [vmem:[%s454 + $0x700] sm:$0xff]
        %v4702 = vld [vmem:[%s454 + $0x708] sm:$0xff]
        %v4703 = vld [vmem:[%s454 + $0x710] sm:$0xff]
        %v4704 = vld [vmem:[%s454 + $0x718] sm:$0xff]
        %v4705 = vld [vmem:[%s454 + $0x720] sm:$0xff]
        %v4706 = vld [vmem:[%s454 + $0x728] sm:$0xff]
        %v4707 = vld [vmem:[%s454 + $0x730] sm:$0xff]
        %v4708 = vld [vmem:[%s454 + $0x738] sm:$0xff]
        %v4709 = vld [vmem:[%s454 + $0x740] sm:$0xff]
        %v4710 = vld [vmem:[%s454 + $0x748] sm:$0xff]
        %v4711 = vld [vmem:[%s454 + $0x750] sm:$0xff]
        %v4712 = vld [vmem:[%s454 + $0x758] sm:$0xff]
        %v4713 = vld [vmem:[%s454 + $0x760] sm:$0xff]
        %v4714 = vld [vmem:[%s454 + $0x768] sm:$0xff]
        %v4715 = vld [vmem:[%s454 + $0x770] sm:$0xff]
        %v4716 = vld [vmem:[%s454 + $0x778] sm:$0xff]
        %v4717 = vld [vmem:[%s454 + $0x780] sm:$0xff]
        %v4718 = vld [vmem:[%s454 + $0x788] sm:$0xff]
        %v4719 = vld [vmem:[%s454 + $0x790] sm:$0xff]
        %v4720 = vld [vmem:[%s454 + $0x798] sm:$0xff]
        %v4721 = vld [vmem:[%s454 + $0x7a0] sm:$0xff]
        %v4722 = vld [vmem:[%s454 + $0x7a8] sm:$0xff]
        %v4723 = vld [vmem:[%s454 + $0x7b0] sm:$0xff]
        %v4724 = vld [vmem:[%s454 + $0x7b8] sm:$0xff]
        %v4725 = vld [vmem:[%s454 + $0x7c0] sm:$0xff]
        %v4726 = vld [vmem:[%s454 + $0x7c8] sm:$0xff]
        %v4727 = vld [vmem:[%s454 + $0x7d0] sm:$0xff]
        %v4728 = vld [vmem:[%s454 + $0x7d8] sm:$0xff]
        %v4729 = vld [vmem:[%s454 + $0x7e0] sm:$0xff]
        %v4730 = vld [vmem:[%s454 + $0x7e8] sm:$0xff]
        %v4731 = vld [vmem:[%s454 + $0x7f0] sm:$0xff]
        %v4732 = vld [vmem:[%s454 + $0x7f8] sm:$0xff]
        %v4989 = vunpack.c.l.b16 %v4477
        %v4990 = vunpack.c.h.b16 %v4477
        %v4991 = vunpack.c.l.b16 %v4478
        %v4992 = vunpack.c.h.b16 %v4478
        %v4993 = vunpack.c.l.b16 %v4479
        %v4994 = vunpack.c.h.b16 %v4479
        %v4995 = vunpack.c.l.b16 %v4480
        %v4996 = vunpack.c.h.b16 %v4480
        %v4997 = vunpack.c.l.b16 %v4481
        %v4998 = vunpack.c.h.b16 %v4481
        %v4999 = vunpack.c.l.b16 %v4482
        %v5000 = vunpack.c.h.b16 %v4482
        %v5001 = vunpack.c.l.b16 %v4483
        %v5002 = vunpack.c.h.b16 %v4483
        %v5003 = vunpack.c.l.b16 %v4484
        %v5004 = vunpack.c.h.b16 %v4484
        %v5005 = vunpack.c.l.b16 %v4485
        %v5006 = vunpack.c.h.b16 %v4485
        %v5007 = vunpack.c.l.b16 %v4486
        %v5008 = vunpack.c.h.b16 %v4486
        %v5009 = vunpack.c.l.b16 %v4487
        %v5010 = vunpack.c.h.b16 %v4487
        %v5011 = vunpack.c.l.b16 %v4488
        %v5012 = vunpack.c.h.b16 %v4488
        %v5013 = vunpack.c.l.b16 %v4489
        %v5014 = vunpack.c.h.b16 %v4489
        %v5015 = vunpack.c.l.b16 %v4490
        %v5016 = vunpack.c.h.b16 %v4490
        %v5017 = vunpack.c.l.b16 %v4491
        %v5018 = vunpack.c.h.b16 %v4491
        %v5019 = vunpack.c.l.b16 %v4492
        %v5020 = vunpack.c.h.b16 %v4492
        %v5021 = vunpack.c.l.b16 %v4493
        %v5022 = vunpack.c.h.b16 %v4493
        %v5023 = vunpack.c.l.b16 %v4494
        %v5024 = vunpack.c.h.b16 %v4494
        %v5025 = vunpack.c.l.b16 %v4495
        %v5026 = vunpack.c.h.b16 %v4495
        %v5027 = vunpack.c.l.b16 %v4496
        %v5028 = vunpack.c.h.b16 %v4496
        %v5029 = vunpack.c.l.b16 %v4497
        %v5030 = vunpack.c.h.b16 %v4497
        %v5031 = vunpack.c.l.b16 %v4498
        %v5032 = vunpack.c.h.b16 %v4498
        %v5033 = vunpack.c.l.b16 %v4499
        %v5034 = vunpack.c.h.b16 %v4499
        %v5035 = vunpack.c.l.b16 %v4500
        %v5036 = vunpack.c.h.b16 %v4500
        %v5037 = vunpack.c.l.b16 %v4501
        %v5038 = vunpack.c.h.b16 %v4501
        %v5039 = vunpack.c.l.b16 %v4502
        %v5040 = vunpack.c.h.b16 %v4502
        %v5041 = vunpack.c.l.b16 %v4503
        %v5042 = vunpack.c.h.b16 %v4503
        %v5043 = vunpack.c.l.b16 %v4504
        %v5044 = vunpack.c.h.b16 %v4504
        %v5045 = vunpack.c.l.b16 %v4505
        %v5046 = vunpack.c.h.b16 %v4505
        %v5047 = vunpack.c.l.b16 %v4506
        %v5048 = vunpack.c.h.b16 %v4506
        %v5049 = vunpack.c.l.b16 %v4507
        %v5050 = vunpack.c.h.b16 %v4507
        %v5051 = vunpack.c.l.b16 %v4508
        %v5052 = vunpack.c.h.b16 %v4508
        %v5053 = vunpack.c.l.b16 %v4509
        %v5054 = vunpack.c.h.b16 %v4509
        %v5055 = vunpack.c.l.b16 %v4510
        %v5056 = vunpack.c.h.b16 %v4510
        %v5057 = vunpack.c.l.b16 %v4511
        %v5058 = vunpack.c.h.b16 %v4511
        %v5059 = vunpack.c.l.b16 %v4512
        %v5060 = vunpack.c.h.b16 %v4512
        %v5061 = vunpack.c.l.b16 %v4513
        %v5062 = vunpack.c.h.b16 %v4513
        %v5063 = vunpack.c.l.b16 %v4514
        %v5064 = vunpack.c.h.b16 %v4514
        %v5065 = vunpack.c.l.b16 %v4515
        %v5066 = vunpack.c.h.b16 %v4515
        %v5067 = vunpack.c.l.b16 %v4516
        %v5068 = vunpack.c.h.b16 %v4516
        %v5069 = vunpack.c.l.b16 %v4517
        %v5070 = vunpack.c.h.b16 %v4517
        %v5071 = vunpack.c.l.b16 %v4518
        %v5072 = vunpack.c.h.b16 %v4518
        %v5073 = vunpack.c.l.b16 %v4519
        %v5074 = vunpack.c.h.b16 %v4519
        %v5075 = vunpack.c.l.b16 %v4520
        %v5076 = vunpack.c.h.b16 %v4520
        %v5077 = vunpack.c.l.b16 %v4521
        %v5078 = vunpack.c.h.b16 %v4521
        %v5079 = vunpack.c.l.b16 %v4522
        %v5080 = vunpack.c.h.b16 %v4522
        %v5081 = vunpack.c.l.b16 %v4523
        %v5082 = vunpack.c.h.b16 %v4523
        %v5083 = vunpack.c.l.b16 %v4524
        %v5084 = vunpack.c.h.b16 %v4524
        %v5085 = vunpack.c.l.b16 %v4525
        %v5086 = vunpack.c.h.b16 %v4525
        %v5087 = vunpack.c.l.b16 %v4526
        %v5088 = vunpack.c.h.b16 %v4526
        %v5089 = vunpack.c.l.b16 %v4527
        %v5090 = vunpack.c.h.b16 %v4527
        %v5091 = vunpack.c.l.b16 %v4528
        %v5092 = vunpack.c.h.b16 %v4528
        %v5093 = vunpack.c.l.b16 %v4529
        %v5094 = vunpack.c.h.b16 %v4529
        %v5095 = vunpack.c.l.b16 %v4530
        %v5096 = vunpack.c.h.b16 %v4530
        %v5097 = vunpack.c.l.b16 %v4531
        %v5098 = vunpack.c.h.b16 %v4531
        %v5099 = vunpack.c.l.b16 %v4532
        %v5100 = vunpack.c.h.b16 %v4532
        %v5101 = vunpack.c.l.b16 %v4533
        %v5102 = vunpack.c.h.b16 %v4533
        %v5103 = vunpack.c.l.b16 %v4534
        %v5104 = vunpack.c.h.b16 %v4534
        %v5105 = vunpack.c.l.b16 %v4535
        %v5106 = vunpack.c.h.b16 %v4535
        %v5107 = vunpack.c.l.b16 %v4536
        %v5108 = vunpack.c.h.b16 %v4536
        %v5109 = vunpack.c.l.b16 %v4537
        %v5110 = vunpack.c.h.b16 %v4537
        %v5111 = vunpack.c.l.b16 %v4538
        %v5112 = vunpack.c.h.b16 %v4538
        %v5113 = vunpack.c.l.b16 %v4539
        %v5114 = vunpack.c.h.b16 %v4539
        %v5115 = vunpack.c.l.b16 %v4540
        %v5116 = vunpack.c.h.b16 %v4540
        %v5117 = vunpack.c.l.b16 %v4541
        %v5118 = vunpack.c.h.b16 %v4541
        %v5119 = vunpack.c.l.b16 %v4542
        %v5120 = vunpack.c.h.b16 %v4542
        %v5121 = vunpack.c.l.b16 %v4543
        %v5122 = vunpack.c.h.b16 %v4543
        %v5123 = vunpack.c.l.b16 %v4544
        %v5124 = vunpack.c.h.b16 %v4544
        %v5125 = vunpack.c.l.b16 %v4545
        %v5126 = vunpack.c.h.b16 %v4545
        %v5127 = vunpack.c.l.b16 %v4546
        %v5128 = vunpack.c.h.b16 %v4546
        %v5129 = vunpack.c.l.b16 %v4547
        %v5130 = vunpack.c.h.b16 %v4547
        %v5131 = vunpack.c.l.b16 %v4548
        %v5132 = vunpack.c.h.b16 %v4548
        %v5133 = vunpack.c.l.b16 %v4549
        %v5134 = vunpack.c.h.b16 %v4549
        %v5135 = vunpack.c.l.b16 %v4550
        %v5136 = vunpack.c.h.b16 %v4550
        %v5137 = vunpack.c.l.b16 %v4551
        %v5138 = vunpack.c.h.b16 %v4551
        %v5139 = vunpack.c.l.b16 %v4552
        %v5140 = vunpack.c.h.b16 %v4552
        %v5141 = vunpack.c.l.b16 %v4553
        %v5142 = vunpack.c.h.b16 %v4553
        %v5143 = vunpack.c.l.b16 %v4554
        %v5144 = vunpack.c.h.b16 %v4554
        %v5145 = vunpack.c.l.b16 %v4555
        %v5146 = vunpack.c.h.b16 %v4555
        %v5147 = vunpack.c.l.b16 %v4556
        %v5148 = vunpack.c.h.b16 %v4556
        %v5149 = vunpack.c.l.b16 %v4557
        %v5150 = vunpack.c.h.b16 %v4557
        %v5151 = vunpack.c.l.b16 %v4558
        %v5152 = vunpack.c.h.b16 %v4558
        %v5153 = vunpack.c.l.b16 %v4559
        %v5154 = vunpack.c.h.b16 %v4559
        %v5155 = vunpack.c.l.b16 %v4560
        %v5156 = vunpack.c.h.b16 %v4560
        %v5157 = vunpack.c.l.b16 %v4561
        %v5158 = vunpack.c.h.b16 %v4561
        %v5159 = vunpack.c.l.b16 %v4562
        %v5160 = vunpack.c.h.b16 %v4562
        %v5161 = vunpack.c.l.b16 %v4563
        %v5162 = vunpack.c.h.b16 %v4563
        %v5163 = vunpack.c.l.b16 %v4564
        %v5164 = vunpack.c.h.b16 %v4564
        %v5165 = vunpack.c.l.b16 %v4565
        %v5166 = vunpack.c.h.b16 %v4565
        %v5167 = vunpack.c.l.b16 %v4566
        %v5168 = vunpack.c.h.b16 %v4566
        %v5169 = vunpack.c.l.b16 %v4567
        %v5170 = vunpack.c.h.b16 %v4567
        %v5171 = vunpack.c.l.b16 %v4568
        %v5172 = vunpack.c.h.b16 %v4568
        %v5173 = vunpack.c.l.b16 %v4569
        %v5174 = vunpack.c.h.b16 %v4569
        %v5175 = vunpack.c.l.b16 %v4570
        %v5176 = vunpack.c.h.b16 %v4570
        %v5177 = vunpack.c.l.b16 %v4571
        %v5178 = vunpack.c.h.b16 %v4571
        %v5179 = vunpack.c.l.b16 %v4572
        %v5180 = vunpack.c.h.b16 %v4572
        %v5181 = vunpack.c.l.b16 %v4573
        %v5182 = vunpack.c.h.b16 %v4573
        %v5183 = vunpack.c.l.b16 %v4574
        %v5184 = vunpack.c.h.b16 %v4574
        %v5185 = vunpack.c.l.b16 %v4575
        %v5186 = vunpack.c.h.b16 %v4575
        %v5187 = vunpack.c.l.b16 %v4576
        %v5188 = vunpack.c.h.b16 %v4576
        %v5189 = vunpack.c.l.b16 %v4577
        %v5190 = vunpack.c.h.b16 %v4577
        %v5191 = vunpack.c.l.b16 %v4578
        %v5192 = vunpack.c.h.b16 %v4578
        %v5193 = vunpack.c.l.b16 %v4579
        %v5194 = vunpack.c.h.b16 %v4579
        %v5195 = vunpack.c.l.b16 %v4580
        %v5196 = vunpack.c.h.b16 %v4580
        %v5197 = vunpack.c.l.b16 %v4581
        %v5198 = vunpack.c.h.b16 %v4581
        %v5199 = vunpack.c.l.b16 %v4582
        %v5200 = vunpack.c.h.b16 %v4582
        %v5201 = vunpack.c.l.b16 %v4583
        %v5202 = vunpack.c.h.b16 %v4583
        %v5203 = vunpack.c.l.b16 %v4584
        %v5204 = vunpack.c.h.b16 %v4584
        %v5205 = vunpack.c.l.b16 %v4585
        %v5206 = vunpack.c.h.b16 %v4585
        %v5207 = vunpack.c.l.b16 %v4586
        %v5208 = vunpack.c.h.b16 %v4586
        %v5209 = vunpack.c.l.b16 %v4587
        %v5210 = vunpack.c.h.b16 %v4587
        %v5211 = vunpack.c.l.b16 %v4588
        %v5212 = vunpack.c.h.b16 %v4588
        %v5213 = vunpack.c.l.b16 %v4589
        %v5214 = vunpack.c.h.b16 %v4589
        %v5215 = vunpack.c.l.b16 %v4590
        %v5216 = vunpack.c.h.b16 %v4590
        %v5217 = vunpack.c.l.b16 %v4591
        %v5218 = vunpack.c.h.b16 %v4591
        %v5219 = vunpack.c.l.b16 %v4592
        %v5220 = vunpack.c.h.b16 %v4592
        %v5221 = vunpack.c.l.b16 %v4593
        %v5222 = vunpack.c.h.b16 %v4593
        %v5223 = vunpack.c.l.b16 %v4594
        %v5224 = vunpack.c.h.b16 %v4594
        %v5225 = vunpack.c.l.b16 %v4595
        %v5226 = vunpack.c.h.b16 %v4595
        %v5227 = vunpack.c.l.b16 %v4596
        %v5228 = vunpack.c.h.b16 %v4596
        %v5229 = vunpack.c.l.b16 %v4597
        %v5230 = vunpack.c.h.b16 %v4597
        %v5231 = vunpack.c.l.b16 %v4598
        %v5232 = vunpack.c.h.b16 %v4598
        %v5233 = vunpack.c.l.b16 %v4599
        %v5234 = vunpack.c.h.b16 %v4599
        %v5235 = vunpack.c.l.b16 %v4600
        %v5236 = vunpack.c.h.b16 %v4600
        %v5237 = vunpack.c.l.b16 %v4601
        %v5238 = vunpack.c.h.b16 %v4601
        %v5239 = vunpack.c.l.b16 %v4602
        %v5240 = vunpack.c.h.b16 %v4602
        %v5241 = vunpack.c.l.b16 %v4603
        %v5242 = vunpack.c.h.b16 %v4603
        %v5243 = vunpack.c.l.b16 %v4604
        %v5244 = vunpack.c.h.b16 %v4604
        %v5245 = vunpack.c.l.b16 %v4605
        %v5246 = vunpack.c.h.b16 %v4605
        %v5247 = vunpack.c.l.b16 %v4606
        %v5248 = vunpack.c.h.b16 %v4606
        %v5249 = vunpack.c.l.b16 %v4607
        %v5250 = vunpack.c.h.b16 %v4607
        %v5251 = vunpack.c.l.b16 %v4608
        %v5252 = vunpack.c.h.b16 %v4608
        %v5253 = vunpack.c.l.b16 %v4609
        %v5254 = vunpack.c.h.b16 %v4609
        %v5255 = vunpack.c.l.b16 %v4610
        %v5256 = vunpack.c.h.b16 %v4610
        %v5257 = vunpack.c.l.b16 %v4611
        %v5258 = vunpack.c.h.b16 %v4611
        %v5259 = vunpack.c.l.b16 %v4612
        %v5260 = vunpack.c.h.b16 %v4612
        %v5261 = vunpack.c.l.b16 %v4613
        %v5262 = vunpack.c.h.b16 %v4613
        %v5263 = vunpack.c.l.b16 %v4614
        %v5264 = vunpack.c.h.b16 %v4614
        %v5265 = vunpack.c.l.b16 %v4615
        %v5266 = vunpack.c.h.b16 %v4615
        %v5267 = vunpack.c.l.b16 %v4616
        %v5268 = vunpack.c.h.b16 %v4616
        %v5269 = vunpack.c.l.b16 %v4617
        %v5270 = vunpack.c.h.b16 %v4617
        %v5271 = vunpack.c.l.b16 %v4618
        %v5272 = vunpack.c.h.b16 %v4618
        %v5273 = vunpack.c.l.b16 %v4619
        %v5274 = vunpack.c.h.b16 %v4619
        %v5275 = vunpack.c.l.b16 %v4620
        %v5276 = vunpack.c.h.b16 %v4620
        %v5277 = vunpack.c.l.b16 %v4621
        %v5278 = vunpack.c.h.b16 %v4621
        %v5279 = vunpack.c.l.b16 %v4622
        %v5280 = vunpack.c.h.b16 %v4622
        %v5281 = vunpack.c.l.b16 %v4623
        %v5282 = vunpack.c.h.b16 %v4623
        %v5283 = vunpack.c.l.b16 %v4624
        %v5284 = vunpack.c.h.b16 %v4624
        %v5285 = vunpack.c.l.b16 %v4625
        %v5286 = vunpack.c.h.b16 %v4625
        %v5287 = vunpack.c.l.b16 %v4626
        %v5288 = vunpack.c.h.b16 %v4626
        %v5289 = vunpack.c.l.b16 %v4627
        %v5290 = vunpack.c.h.b16 %v4627
        %v5291 = vunpack.c.l.b16 %v4628
        %v5292 = vunpack.c.h.b16 %v4628
        %v5293 = vunpack.c.l.b16 %v4629
        %v5294 = vunpack.c.h.b16 %v4629
        %v5295 = vunpack.c.l.b16 %v4630
        %v5296 = vunpack.c.h.b16 %v4630
        %v5297 = vunpack.c.l.b16 %v4631
        %v5298 = vunpack.c.h.b16 %v4631
        %v5299 = vunpack.c.l.b16 %v4632
        %v5300 = vunpack.c.h.b16 %v4632
        %v5301 = vunpack.c.l.b16 %v4633
        %v5302 = vunpack.c.h.b16 %v4633
        %v5303 = vunpack.c.l.b16 %v4634
        %v5304 = vunpack.c.h.b16 %v4634
        %v5305 = vunpack.c.l.b16 %v4635
        %v5306 = vunpack.c.h.b16 %v4635
        %v5307 = vunpack.c.l.b16 %v4636
        %v5308 = vunpack.c.h.b16 %v4636
        %v5309 = vunpack.c.l.b16 %v4637
        %v5310 = vunpack.c.h.b16 %v4637
        %v5311 = vunpack.c.l.b16 %v4638
        %v5312 = vunpack.c.h.b16 %v4638
        %v5313 = vunpack.c.l.b16 %v4639
        %v5314 = vunpack.c.h.b16 %v4639
        %v5315 = vunpack.c.l.b16 %v4640
        %v5316 = vunpack.c.h.b16 %v4640
        %v5317 = vunpack.c.l.b16 %v4641
        %v5318 = vunpack.c.h.b16 %v4641
        %v5319 = vunpack.c.l.b16 %v4642
        %v5320 = vunpack.c.h.b16 %v4642
        %v5321 = vunpack.c.l.b16 %v4643
        %v5322 = vunpack.c.h.b16 %v4643
        %v5323 = vunpack.c.l.b16 %v4644
        %v5324 = vunpack.c.h.b16 %v4644
        %v5325 = vunpack.c.l.b16 %v4645
        %v5326 = vunpack.c.h.b16 %v4645
        %v5327 = vunpack.c.l.b16 %v4646
        %v5328 = vunpack.c.h.b16 %v4646
        %v5329 = vunpack.c.l.b16 %v4647
        %v5330 = vunpack.c.h.b16 %v4647
        %v5331 = vunpack.c.l.b16 %v4648
        %v5332 = vunpack.c.h.b16 %v4648
        %v5333 = vunpack.c.l.b16 %v4649
        %v5334 = vunpack.c.h.b16 %v4649
        %v5335 = vunpack.c.l.b16 %v4650
        %v5336 = vunpack.c.h.b16 %v4650
        %v5337 = vunpack.c.l.b16 %v4651
        %v5338 = vunpack.c.h.b16 %v4651
        %v5339 = vunpack.c.l.b16 %v4652
        %v5340 = vunpack.c.h.b16 %v4652
        %v5341 = vunpack.c.l.b16 %v4653
        %v5342 = vunpack.c.h.b16 %v4653
        %v5343 = vunpack.c.l.b16 %v4654
        %v5344 = vunpack.c.h.b16 %v4654
        %v5345 = vunpack.c.l.b16 %v4655
        %v5346 = vunpack.c.h.b16 %v4655
        %v5347 = vunpack.c.l.b16 %v4656
        %v5348 = vunpack.c.h.b16 %v4656
        %v5349 = vunpack.c.l.b16 %v4657
        %v5350 = vunpack.c.h.b16 %v4657
        %v5351 = vunpack.c.l.b16 %v4658
        %v5352 = vunpack.c.h.b16 %v4658
        %v5353 = vunpack.c.l.b16 %v4659
        %v5354 = vunpack.c.h.b16 %v4659
        %v5355 = vunpack.c.l.b16 %v4660
        %v5356 = vunpack.c.h.b16 %v4660
        %v5357 = vunpack.c.l.b16 %v4661
        %v5358 = vunpack.c.h.b16 %v4661
        %v5359 = vunpack.c.l.b16 %v4662
        %v5360 = vunpack.c.h.b16 %v4662
        %v5361 = vunpack.c.l.b16 %v4663
        %v5362 = vunpack.c.h.b16 %v4663
        %v5363 = vunpack.c.l.b16 %v4664
        %v5364 = vunpack.c.h.b16 %v4664
        %v5365 = vunpack.c.l.b16 %v4665
        %v5366 = vunpack.c.h.b16 %v4665
        %v5367 = vunpack.c.l.b16 %v4666
        %v5368 = vunpack.c.h.b16 %v4666
        %v5369 = vunpack.c.l.b16 %v4667
        %v5370 = vunpack.c.h.b16 %v4667
        %v5371 = vunpack.c.l.b16 %v4668
        %v5372 = vunpack.c.h.b16 %v4668
        %v5373 = vunpack.c.l.b16 %v4669
        %v5374 = vunpack.c.h.b16 %v4669
        %v5375 = vunpack.c.l.b16 %v4670
        %v5376 = vunpack.c.h.b16 %v4670
        %v5377 = vunpack.c.l.b16 %v4671
        %v5378 = vunpack.c.h.b16 %v4671
        %v5379 = vunpack.c.l.b16 %v4672
        %v5380 = vunpack.c.h.b16 %v4672
        %v5381 = vunpack.c.l.b16 %v4673
        %v5382 = vunpack.c.h.b16 %v4673
        %v5383 = vunpack.c.l.b16 %v4674
        %v5384 = vunpack.c.h.b16 %v4674
        %v5385 = vunpack.c.l.b16 %v4675
        %v5386 = vunpack.c.h.b16 %v4675
        %v5387 = vunpack.c.l.b16 %v4676
        %v5388 = vunpack.c.h.b16 %v4676
        %v5389 = vunpack.c.l.b16 %v4677
        %v5390 = vunpack.c.h.b16 %v4677
        %v5391 = vunpack.c.l.b16 %v4678
        %v5392 = vunpack.c.h.b16 %v4678
        %v5393 = vunpack.c.l.b16 %v4679
        %v5394 = vunpack.c.h.b16 %v4679
        %v5395 = vunpack.c.l.b16 %v4680
        %v5396 = vunpack.c.h.b16 %v4680
        %v5397 = vunpack.c.l.b16 %v4681
        %v5398 = vunpack.c.h.b16 %v4681
        %v5399 = vunpack.c.l.b16 %v4682
        %v5400 = vunpack.c.h.b16 %v4682
        %v5401 = vunpack.c.l.b16 %v4683
        %v5402 = vunpack.c.h.b16 %v4683
        %v5403 = vunpack.c.l.b16 %v4684
        %v5404 = vunpack.c.h.b16 %v4684
        %v5405 = vunpack.c.l.b16 %v4685
        %v5406 = vunpack.c.h.b16 %v4685
        %v5407 = vunpack.c.l.b16 %v4686
        %v5408 = vunpack.c.h.b16 %v4686
        %v5409 = vunpack.c.l.b16 %v4687
        %v5410 = vunpack.c.h.b16 %v4687
        %v5411 = vunpack.c.l.b16 %v4688
        %v5412 = vunpack.c.h.b16 %v4688
        %v5413 = vunpack.c.l.b16 %v4689
        %v5414 = vunpack.c.h.b16 %v4689
        %v5415 = vunpack.c.l.b16 %v4690
        %v5416 = vunpack.c.h.b16 %v4690
        %v5417 = vunpack.c.l.b16 %v4691
        %v5418 = vunpack.c.h.b16 %v4691
        %v5419 = vunpack.c.l.b16 %v4692
        %v5420 = vunpack.c.h.b16 %v4692
        %v5421 = vunpack.c.l.b16 %v4693
        %v5422 = vunpack.c.h.b16 %v4693
        %v5423 = vunpack.c.l.b16 %v4694
        %v5424 = vunpack.c.h.b16 %v4694
        %v5425 = vunpack.c.l.b16 %v4695
        %v5426 = vunpack.c.h.b16 %v4695
        %v5427 = vunpack.c.l.b16 %v4696
        %v5428 = vunpack.c.h.b16 %v4696
        %v5429 = vunpack.c.l.b16 %v4697
        %v5430 = vunpack.c.h.b16 %v4697
        %v5431 = vunpack.c.l.b16 %v4698
        %v5432 = vunpack.c.h.b16 %v4698
        %v5433 = vunpack.c.l.b16 %v4699
        %v5434 = vunpack.c.h.b16 %v4699
        %v5435 = vunpack.c.l.b16 %v4700
        %v5436 = vunpack.c.h.b16 %v4700
        %v5437 = vunpack.c.l.b16 %v4701
        %v5438 = vunpack.c.h.b16 %v4701
        %v5439 = vunpack.c.l.b16 %v4702
        %v5440 = vunpack.c.h.b16 %v4702
        %v5441 = vunpack.c.l.b16 %v4703
        %v5442 = vunpack.c.h.b16 %v4703
        %v5443 = vunpack.c.l.b16 %v4704
        %v5444 = vunpack.c.h.b16 %v4704
        %v5445 = vunpack.c.l.b16 %v4705
        %v5446 = vunpack.c.h.b16 %v4705
        %v5447 = vunpack.c.l.b16 %v4706
        %v5448 = vunpack.c.h.b16 %v4706
        %v5449 = vunpack.c.l.b16 %v4707
        %v5450 = vunpack.c.h.b16 %v4707
        %v5451 = vunpack.c.l.b16 %v4708
        %v5452 = vunpack.c.h.b16 %v4708
        %v5453 = vunpack.c.l.b16 %v4709
        %v5454 = vunpack.c.h.b16 %v4709
        %v5455 = vunpack.c.l.b16 %v4710
        %v5456 = vunpack.c.h.b16 %v4710
        %v5457 = vunpack.c.l.b16 %v4711
        %v5458 = vunpack.c.h.b16 %v4711
        %v5459 = vunpack.c.l.b16 %v4712
        %v5460 = vunpack.c.h.b16 %v4712
        %v5461 = vunpack.c.l.b16 %v4713
        %v5462 = vunpack.c.h.b16 %v4713
        %v5463 = vunpack.c.l.b16 %v4714
        %v5464 = vunpack.c.h.b16 %v4714
        %v5465 = vunpack.c.l.b16 %v4715
        %v5466 = vunpack.c.h.b16 %v4715
        %v5467 = vunpack.c.l.b16 %v4716
        %v5468 = vunpack.c.h.b16 %v4716
        %v5469 = vunpack.c.l.b16 %v4717
        %v5470 = vunpack.c.h.b16 %v4717
        %v5471 = vunpack.c.l.b16 %v4718
        %v5472 = vunpack.c.h.b16 %v4718
        %v5473 = vunpack.c.l.b16 %v4719
        %v5474 = vunpack.c.h.b16 %v4719
        %v5475 = vunpack.c.l.b16 %v4720
        %v5476 = vunpack.c.h.b16 %v4720
        %v5477 = vunpack.c.l.b16 %v4721
        %v5478 = vunpack.c.h.b16 %v4721
        %v5479 = vunpack.c.l.b16 %v4722
        %v5480 = vunpack.c.h.b16 %v4722
        %v5481 = vunpack.c.l.b16 %v4723
        %v5482 = vunpack.c.h.b16 %v4723
        %v5483 = vunpack.c.l.b16 %v4724
        %v5484 = vunpack.c.h.b16 %v4724
        %v5485 = vunpack.c.l.b16 %v4725
        %v5486 = vunpack.c.h.b16 %v4725
        %v5487 = vunpack.c.l.b16 %v4726
        %v5488 = vunpack.c.h.b16 %v4726
        %v5489 = vunpack.c.l.b16 %v4727
        %v5490 = vunpack.c.h.b16 %v4727
        %v5491 = vunpack.c.l.b16 %v4728
        %v5492 = vunpack.c.h.b16 %v4728
        %v5493 = vunpack.c.l.b16 %v4729
        %v5494 = vunpack.c.h.b16 %v4729
        %v5495 = vunpack.c.l.b16 %v4730
        %v5496 = vunpack.c.h.b16 %v4730
        %v5497 = vunpack.c.l.b16 %v4731
        %v5498 = vunpack.c.h.b16 %v4731
        %v5499 = vunpack.c.l.b16 %v4732
        %v5500 = vunpack.c.h.b16 %v4732
        %v5501 = vpack.c.b16 %v4997, %v4989
        %v5502 = vpack.c.b16 %v4998, %v4990
        %v5503 = vpack.c.b16 %v4999, %v4991
        %v5504 = vpack.c.b16 %v5000, %v4992
        %v5505 = vpack.c.b16 %v5001, %v4993
        %v5506 = vpack.c.b16 %v5002, %v4994
        %v5507 = vpack.c.b16 %v5003, %v4995
        %v5508 = vpack.c.b16 %v5004, %v4996
        %v5509 = vpack.c.b16 %v5013, %v5005
        %v5510 = vpack.c.b16 %v5014, %v5006
        %v5511 = vpack.c.b16 %v5015, %v5007
        %v5512 = vpack.c.b16 %v5016, %v5008
        %v5513 = vpack.c.b16 %v5017, %v5009
        %v5514 = vpack.c.b16 %v5018, %v5010
        %v5515 = vpack.c.b16 %v5019, %v5011
        %v5516 = vpack.c.b16 %v5020, %v5012
        %v5517 = vpack.c.b16 %v5029, %v5021
        %v5518 = vpack.c.b16 %v5030, %v5022
        %v5519 = vpack.c.b16 %v5031, %v5023
        %v5520 = vpack.c.b16 %v5032, %v5024
        %v5521 = vpack.c.b16 %v5033, %v5025
        %v5522 = vpack.c.b16 %v5034, %v5026
        %v5523 = vpack.c.b16 %v5035, %v5027
        %v5524 = vpack.c.b16 %v5036, %v5028
        %v5525 = vpack.c.b16 %v5045, %v5037
        %v5526 = vpack.c.b16 %v5046, %v5038
        %v5527 = vpack.c.b16 %v5047, %v5039
        %v5528 = vpack.c.b16 %v5048, %v5040
        %v5529 = vpack.c.b16 %v5049, %v5041
        %v5530 = vpack.c.b16 %v5050, %v5042
        %v5531 = vpack.c.b16 %v5051, %v5043
        %v5532 = vpack.c.b16 %v5052, %v5044
        %v5533 = vpack.c.b16 %v5061, %v5053
        %v5534 = vpack.c.b16 %v5062, %v5054
        %v5535 = vpack.c.b16 %v5063, %v5055
        %v5536 = vpack.c.b16 %v5064, %v5056
        %v5537 = vpack.c.b16 %v5065, %v5057
        %v5538 = vpack.c.b16 %v5066, %v5058
        %v5539 = vpack.c.b16 %v5067, %v5059
        %v5540 = vpack.c.b16 %v5068, %v5060
        %v5541 = vpack.c.b16 %v5077, %v5069
        %v5542 = vpack.c.b16 %v5078, %v5070
        %v5543 = vpack.c.b16 %v5079, %v5071
        %v5544 = vpack.c.b16 %v5080, %v5072
        %v5545 = vpack.c.b16 %v5081, %v5073
        %v5546 = vpack.c.b16 %v5082, %v5074
        %v5547 = vpack.c.b16 %v5083, %v5075
        %v5548 = vpack.c.b16 %v5084, %v5076
        %v5549 = vpack.c.b16 %v5093, %v5085
        %v5550 = vpack.c.b16 %v5094, %v5086
        %v5551 = vpack.c.b16 %v5095, %v5087
        %v5552 = vpack.c.b16 %v5096, %v5088
        %v5553 = vpack.c.b16 %v5097, %v5089
        %v5554 = vpack.c.b16 %v5098, %v5090
        %v5555 = vpack.c.b16 %v5099, %v5091
        %v5556 = vpack.c.b16 %v5100, %v5092
        %v5557 = vpack.c.b16 %v5109, %v5101
        %v5558 = vpack.c.b16 %v5110, %v5102
        %v5559 = vpack.c.b16 %v5111, %v5103
        %v5560 = vpack.c.b16 %v5112, %v5104
        %v5561 = vpack.c.b16 %v5113, %v5105
        %v5562 = vpack.c.b16 %v5114, %v5106
        %v5563 = vpack.c.b16 %v5115, %v5107
        %v5564 = vpack.c.b16 %v5116, %v5108
        %v5565 = vpack.c.b16 %v5125, %v5117
        %v5566 = vpack.c.b16 %v5126, %v5118
        %v5567 = vpack.c.b16 %v5127, %v5119
        %v5568 = vpack.c.b16 %v5128, %v5120
        %v5569 = vpack.c.b16 %v5129, %v5121
        %v5570 = vpack.c.b16 %v5130, %v5122
        %v5571 = vpack.c.b16 %v5131, %v5123
        %v5572 = vpack.c.b16 %v5132, %v5124
        %v5573 = vpack.c.b16 %v5141, %v5133
        %v5574 = vpack.c.b16 %v5142, %v5134
        %v5575 = vpack.c.b16 %v5143, %v5135
        %v5576 = vpack.c.b16 %v5144, %v5136
        %v5577 = vpack.c.b16 %v5145, %v5137
        %v5578 = vpack.c.b16 %v5146, %v5138
        %v5579 = vpack.c.b16 %v5147, %v5139
        %v5580 = vpack.c.b16 %v5148, %v5140
        %v5581 = vpack.c.b16 %v5157, %v5149
        %v5582 = vpack.c.b16 %v5158, %v5150
        %v5583 = vpack.c.b16 %v5159, %v5151
        %v5584 = vpack.c.b16 %v5160, %v5152
        %v5585 = vpack.c.b16 %v5161, %v5153
        %v5586 = vpack.c.b16 %v5162, %v5154
        %v5587 = vpack.c.b16 %v5163, %v5155
        %v5588 = vpack.c.b16 %v5164, %v5156
        %v5589 = vpack.c.b16 %v5173, %v5165
        %v5590 = vpack.c.b16 %v5174, %v5166
        %v5591 = vpack.c.b16 %v5175, %v5167
        %v5592 = vpack.c.b16 %v5176, %v5168
        %v5593 = vpack.c.b16 %v5177, %v5169
        %v5594 = vpack.c.b16 %v5178, %v5170
        %v5595 = vpack.c.b16 %v5179, %v5171
        %v5596 = vpack.c.b16 %v5180, %v5172
        %v5597 = vpack.c.b16 %v5189, %v5181
        %v5598 = vpack.c.b16 %v5190, %v5182
        %v5599 = vpack.c.b16 %v5191, %v5183
        %v5600 = vpack.c.b16 %v5192, %v5184
        %v5601 = vpack.c.b16 %v5193, %v5185
        %v5602 = vpack.c.b16 %v5194, %v5186
        %v5603 = vpack.c.b16 %v5195, %v5187
        %v5604 = vpack.c.b16 %v5196, %v5188
        %v5605 = vpack.c.b16 %v5205, %v5197
        %v5606 = vpack.c.b16 %v5206, %v5198
        %v5607 = vpack.c.b16 %v5207, %v5199
        %v5608 = vpack.c.b16 %v5208, %v5200
        %v5609 = vpack.c.b16 %v5209, %v5201
        %v5610 = vpack.c.b16 %v5210, %v5202
        %v5611 = vpack.c.b16 %v5211, %v5203
        %v5612 = vpack.c.b16 %v5212, %v5204
        %v5613 = vpack.c.b16 %v5221, %v5213
        %v5614 = vpack.c.b16 %v5222, %v5214
        %v5615 = vpack.c.b16 %v5223, %v5215
        %v5616 = vpack.c.b16 %v5224, %v5216
        %v5617 = vpack.c.b16 %v5225, %v5217
        %v5618 = vpack.c.b16 %v5226, %v5218
        %v5619 = vpack.c.b16 %v5227, %v5219
        %v5620 = vpack.c.b16 %v5228, %v5220
        %v5621 = vpack.c.b16 %v5237, %v5229
        %v5622 = vpack.c.b16 %v5238, %v5230
        %v5623 = vpack.c.b16 %v5239, %v5231
        %v5624 = vpack.c.b16 %v5240, %v5232
        %v5625 = vpack.c.b16 %v5241, %v5233
        %v5626 = vpack.c.b16 %v5242, %v5234
        %v5627 = vpack.c.b16 %v5243, %v5235
        %v5628 = vpack.c.b16 %v5244, %v5236
        %v5629 = vpack.c.b16 %v5253, %v5245
        %v5630 = vpack.c.b16 %v5254, %v5246
        %v5631 = vpack.c.b16 %v5255, %v5247
        %v5632 = vpack.c.b16 %v5256, %v5248
        %v5633 = vpack.c.b16 %v5257, %v5249
        %v5634 = vpack.c.b16 %v5258, %v5250
        %v5635 = vpack.c.b16 %v5259, %v5251
        %v5636 = vpack.c.b16 %v5260, %v5252
        %v5637 = vpack.c.b16 %v5269, %v5261
        %v5638 = vpack.c.b16 %v5270, %v5262
        %v5639 = vpack.c.b16 %v5271, %v5263
        %v5640 = vpack.c.b16 %v5272, %v5264
        %v5641 = vpack.c.b16 %v5273, %v5265
        %v5642 = vpack.c.b16 %v5274, %v5266
        %v5643 = vpack.c.b16 %v5275, %v5267
        %v5644 = vpack.c.b16 %v5276, %v5268
        %v5645 = vpack.c.b16 %v5285, %v5277
        %v5646 = vpack.c.b16 %v5286, %v5278
        %v5647 = vpack.c.b16 %v5287, %v5279
        %v5648 = vpack.c.b16 %v5288, %v5280
        %v5649 = vpack.c.b16 %v5289, %v5281
        %v5650 = vpack.c.b16 %v5290, %v5282
        %v5651 = vpack.c.b16 %v5291, %v5283
        %v5652 = vpack.c.b16 %v5292, %v5284
        %v5653 = vpack.c.b16 %v5301, %v5293
        %v5654 = vpack.c.b16 %v5302, %v5294
        %v5655 = vpack.c.b16 %v5303, %v5295
        %v5656 = vpack.c.b16 %v5304, %v5296
        %v5657 = vpack.c.b16 %v5305, %v5297
        %v5658 = vpack.c.b16 %v5306, %v5298
        %v5659 = vpack.c.b16 %v5307, %v5299
        %v5660 = vpack.c.b16 %v5308, %v5300
        %v5661 = vpack.c.b16 %v5317, %v5309
        %v5662 = vpack.c.b16 %v5318, %v5310
        %v5663 = vpack.c.b16 %v5319, %v5311
        %v5664 = vpack.c.b16 %v5320, %v5312
        %v5665 = vpack.c.b16 %v5321, %v5313
        %v5666 = vpack.c.b16 %v5322, %v5314
        %v5667 = vpack.c.b16 %v5323, %v5315
        %v5668 = vpack.c.b16 %v5324, %v5316
        %v5669 = vpack.c.b16 %v5333, %v5325
        %v5670 = vpack.c.b16 %v5334, %v5326
        %v5671 = vpack.c.b16 %v5335, %v5327
        %v5672 = vpack.c.b16 %v5336, %v5328
        %v5673 = vpack.c.b16 %v5337, %v5329
        %v5674 = vpack.c.b16 %v5338, %v5330
        %v5675 = vpack.c.b16 %v5339, %v5331
        %v5676 = vpack.c.b16 %v5340, %v5332
        %v5677 = vpack.c.b16 %v5349, %v5341
        %v5678 = vpack.c.b16 %v5350, %v5342
        %v5679 = vpack.c.b16 %v5351, %v5343
        %v5680 = vpack.c.b16 %v5352, %v5344
        %v5681 = vpack.c.b16 %v5353, %v5345
        %v5682 = vpack.c.b16 %v5354, %v5346
        %v5683 = vpack.c.b16 %v5355, %v5347
        %v5684 = vpack.c.b16 %v5356, %v5348
        %v5685 = vpack.c.b16 %v5365, %v5357
        %v5686 = vpack.c.b16 %v5366, %v5358
        %v5687 = vpack.c.b16 %v5367, %v5359
        %v5688 = vpack.c.b16 %v5368, %v5360
        %v5689 = vpack.c.b16 %v5369, %v5361
        %v5690 = vpack.c.b16 %v5370, %v5362
        %v5691 = vpack.c.b16 %v5371, %v5363
        %v5692 = vpack.c.b16 %v5372, %v5364
        %v5693 = vpack.c.b16 %v5381, %v5373
        %v5694 = vpack.c.b16 %v5382, %v5374
        %v5695 = vpack.c.b16 %v5383, %v5375
        %v5696 = vpack.c.b16 %v5384, %v5376
        %v5697 = vpack.c.b16 %v5385, %v5377
        %v5698 = vpack.c.b16 %v5386, %v5378
        %v5699 = vpack.c.b16 %v5387, %v5379
        %v5700 = vpack.c.b16 %v5388, %v5380
        %v5701 = vpack.c.b16 %v5397, %v5389
        %v5702 = vpack.c.b16 %v5398, %v5390
        %v5703 = vpack.c.b16 %v5399, %v5391
        %v5704 = vpack.c.b16 %v5400, %v5392
        %v5705 = vpack.c.b16 %v5401, %v5393
        %v5706 = vpack.c.b16 %v5402, %v5394
        %v5707 = vpack.c.b16 %v5403, %v5395
        %v5708 = vpack.c.b16 %v5404, %v5396
        %v5709 = vpack.c.b16 %v5413, %v5405
        %v5710 = vpack.c.b16 %v5414, %v5406
        %v5711 = vpack.c.b16 %v5415, %v5407
        %v5712 = vpack.c.b16 %v5416, %v5408
        %v5713 = vpack.c.b16 %v5417, %v5409
        %v5714 = vpack.c.b16 %v5418, %v5410
        %v5715 = vpack.c.b16 %v5419, %v5411
        %v5716 = vpack.c.b16 %v5420, %v5412
        %v5717 = vpack.c.b16 %v5429, %v5421
        %v5718 = vpack.c.b16 %v5430, %v5422
        %v5719 = vpack.c.b16 %v5431, %v5423
        %v5720 = vpack.c.b16 %v5432, %v5424
        %v5721 = vpack.c.b16 %v5433, %v5425
        %v5722 = vpack.c.b16 %v5434, %v5426
        %v5723 = vpack.c.b16 %v5435, %v5427
        %v5724 = vpack.c.b16 %v5436, %v5428
        %v5725 = vpack.c.b16 %v5445, %v5437
        %v5726 = vpack.c.b16 %v5446, %v5438
        %v5727 = vpack.c.b16 %v5447, %v5439
        %v5728 = vpack.c.b16 %v5448, %v5440
        %v5729 = vpack.c.b16 %v5449, %v5441
        %v5730 = vpack.c.b16 %v5450, %v5442
        %v5731 = vpack.c.b16 %v5451, %v5443
        %v5732 = vpack.c.b16 %v5452, %v5444
        %v5733 = vpack.c.b16 %v5461, %v5453
        %v5734 = vpack.c.b16 %v5462, %v5454
        %v5735 = vpack.c.b16 %v5463, %v5455
        %v5736 = vpack.c.b16 %v5464, %v5456
        %v5737 = vpack.c.b16 %v5465, %v5457
        %v5738 = vpack.c.b16 %v5466, %v5458
        %v5739 = vpack.c.b16 %v5467, %v5459
        %v5740 = vpack.c.b16 %v5468, %v5460
        %v5741 = vpack.c.b16 %v5477, %v5469
        %v5742 = vpack.c.b16 %v5478, %v5470
        %v5743 = vpack.c.b16 %v5479, %v5471
        %v5744 = vpack.c.b16 %v5480, %v5472
        %v5745 = vpack.c.b16 %v5481, %v5473
        %v5746 = vpack.c.b16 %v5482, %v5474
        %v5747 = vpack.c.b16 %v5483, %v5475
        %v5748 = vpack.c.b16 %v5484, %v5476
        %v5749 = vpack.c.b16 %v5493, %v5485
        %v5750 = vpack.c.b16 %v5494, %v5486
        %v5751 = vpack.c.b16 %v5495, %v5487
        %v5752 = vpack.c.b16 %v5496, %v5488
        %v5753 = vpack.c.b16 %v5497, %v5489
        %v5754 = vpack.c.b16 %v5498, %v5490
        %v5755 = vpack.c.b16 %v5499, %v5491
        %v5756 = vpack.c.b16 %v5500, %v5492
        %6013 = vmatprep.subr.bf16.mxu0 %v5558
        %6014 = vmatpush1.bf16.msra.mxu0 %v5557
        %6015 = vmatprep.subr.bf16.mxu0 %v5550
        %6016 = vmatpush1.bf16.msra.mxu0 %v5549
        %6017 = vmatprep.subr.bf16.mxu0 %v5542
        %6018 = vmatpush1.bf16.msra.mxu0 %v5541
        %6019 = vmatprep.subr.bf16.mxu0 %v5534
        %6020 = vmatpush1.bf16.msra.mxu0 %v5533
        %6021 = vmatprep.subr.bf16.mxu0 %v5526
        %6022 = vmatpush1.bf16.msra.mxu0 %v5525
        %6023 = vmatprep.subr.bf16.mxu0 %v5518
        %6024 = vmatpush1.bf16.msra.mxu0 %v5517
        %6025 = vmatprep.subr.bf16.mxu0 %v5510
        %6026 = vmatpush1.bf16.msra.mxu0 %v5509
        %6027 = vmatprep.subr.bf16.mxu0 %v5502
        %6028 = vmatpush1.bf16.msra.mxu0 %v5501
        %6029 = vmatprep.subr.bf16.mxu0 %v5622
        %6030 = vmatpush2.bf16.msra.mxu0 %v5621
        %6031 = vmatprep.subr.bf16.mxu0 %v5614
        %6032 = vmatpush2.bf16.msra.mxu0 %v5613
        %6033 = vmatprep.subr.bf16.mxu0 %v5606
        %6034 = vmatpush2.bf16.msra.mxu0 %v5605
        %6035 = vmatprep.subr.bf16.mxu0 %v5598
        %6036 = vmatpush2.bf16.msra.mxu0 %v5597
        %6037 = vmatprep.subr.bf16.mxu0 %v5590
        %6038 = vmatpush2.bf16.msra.mxu0 %v5589
        %6039 = vmatprep.subr.bf16.mxu0 %v5582
        %6040 = vmatpush2.bf16.msra.mxu0 %v5581
        %6041 = vmatprep.subr.bf16.mxu0 %v5574
        %6042 = vmatpush2.bf16.msra.mxu0 %v5573
        %6043 = vmatprep.subr.bf16.mxu0 %v5566
        %6044 = vmatpush2.bf16.msra.mxu0 %v5565
        %6045 = vmatprep.mubr.bf16.mxu0 %v4474
        %6046 = vmatmul.mubr.bf16.gmra.mxu0 %v4473
        %v6047 = vpop.f32.mrf.mxu0
        %v6048 = vadd.f32 0.0, %v6047
        %v6049 = vpop.f32.mrf.mxu0
        %v6050 = vadd.f32 0.0, %v6049
        %v6051 = vpop.f32.mrf.mxu0
        %v6052 = vpop.f32.mrf.mxu0
        %6053 = vdwg.mxu0
        %6054 = vmatprep.subr.bf16.mxu0 %v5686
        %6055 = vmatpush1.bf16.msra.mxu0 %v5685
        %6056 = vmatprep.subr.bf16.mxu0 %v5678
        %6057 = vmatpush1.bf16.msra.mxu0 %v5677
        %6058 = vmatprep.subr.bf16.mxu0 %v5670
        %6059 = vmatpush1.bf16.msra.mxu0 %v5669
        %6060 = vmatprep.subr.bf16.mxu0 %v5662
        %6061 = vmatpush1.bf16.msra.mxu0 %v5661
        %6062 = vmatprep.subr.bf16.mxu0 %v5654
        %6063 = vmatpush1.bf16.msra.mxu0 %v5653
        %6064 = vmatprep.subr.bf16.mxu0 %v5646
        %6065 = vmatpush1.bf16.msra.mxu0 %v5645
        %6066 = vmatprep.subr.bf16.mxu0 %v5638
        %6067 = vmatpush1.bf16.msra.mxu0 %v5637
        %6068 = vmatprep.subr.bf16.mxu0 %v5630
        %6069 = vmatpush1.bf16.msra.mxu0 %v5629
        %6070 = vmatprep.subr.bf16.mxu0 %v5750
        %6071 = vmatpush2.bf16.msra.mxu0 %v5749
        %6072 = vmatprep.subr.bf16.mxu0 %v5742
        %6073 = vmatpush2.bf16.msra.mxu0 %v5741
        %6074 = vmatprep.subr.bf16.mxu0 %v5734
        %6075 = vmatpush2.bf16.msra.mxu0 %v5733
        %6076 = vmatprep.subr.bf16.mxu0 %v5726
        %6077 = vmatpush2.bf16.msra.mxu0 %v5725
        %6078 = vmatprep.subr.bf16.mxu0 %v5718
        %6079 = vmatpush2.bf16.msra.mxu0 %v5717
        %6080 = vmatprep.subr.bf16.mxu0 %v5710
        %6081 = vmatpush2.bf16.msra.mxu0 %v5709
        %6082 = vmatprep.subr.bf16.mxu0 %v5702
        %6083 = vmatpush2.bf16.msra.mxu0 %v5701
        %6084 = vmatprep.subr.bf16.mxu0 %v5694
        %6085 = vmatpush2.bf16.msra.mxu0 %v5693
        %6086 = vmatprep.mubr.bf16.mxu0 %v4476
        %6087 = vmatmul.mubr.bf16.gmra.mxu0 %v4475
        %v6088 = vpop.f32.mrf.mxu0
        %v6089 = vadd.f32 %v6048, %v6088
        %v6090 = vpop.f32.mrf.mxu0
        %v6091 = vadd.f32 %v6050, %v6090
        %v6092 = vpop.f32.mrf.mxu0
        %v6093 = vpop.f32.mrf.mxu0
        %6094 = vdwg.mxu0
        %6095 = vmatprep.subr.bf16.mxu0 %v5560
        %6096 = vmatpush1.bf16.msra.mxu0 %v5559
        %6097 = vmatprep.subr.bf16.mxu0 %v5552
        %6098 = vmatpush1.bf16.msra.mxu0 %v5551
        %6099 = vmatprep.subr.bf16.mxu0 %v5544
        %6100 = vmatpush1.bf16.msra.mxu0 %v5543
        %6101 = vmatprep.subr.bf16.mxu0 %v5536
        %6102 = vmatpush1.bf16.msra.mxu0 %v5535
        %6103 = vmatprep.subr.bf16.mxu0 %v5528
        %6104 = vmatpush1.bf16.msra.mxu0 %v5527
        %6105 = vmatprep.subr.bf16.mxu0 %v5520
        %6106 = vmatpush1.bf16.msra.mxu0 %v5519
        %6107 = vmatprep.subr.bf16.mxu0 %v5512
        %6108 = vmatpush1.bf16.msra.mxu0 %v5511
        %6109 = vmatprep.subr.bf16.mxu0 %v5504
        %6110 = vmatpush1.bf16.msra.mxu0 %v5503
        %6111 = vmatprep.subr.bf16.mxu0 %v5624
        %6112 = vmatpush2.bf16.msra.mxu0 %v5623
        %6113 = vmatprep.subr.bf16.mxu0 %v5616
        %6114 = vmatpush2.bf16.msra.mxu0 %v5615
        %6115 = vmatprep.subr.bf16.mxu0 %v5608
        %6116 = vmatpush2.bf16.msra.mxu0 %v5607
        %6117 = vmatprep.subr.bf16.mxu0 %v5600
        %6118 = vmatpush2.bf16.msra.mxu0 %v5599
        %6119 = vmatprep.subr.bf16.mxu0 %v5592
        %6120 = vmatpush2.bf16.msra.mxu0 %v5591
        %6121 = vmatprep.subr.bf16.mxu0 %v5584
        %6122 = vmatpush2.bf16.msra.mxu0 %v5583
        %6123 = vmatprep.subr.bf16.mxu0 %v5576
        %6124 = vmatpush2.bf16.msra.mxu0 %v5575
        %6125 = vmatprep.subr.bf16.mxu0 %v5568
        %6126 = vmatpush2.bf16.msra.mxu0 %v5567
        %6127 = vmatprep.mubr.bf16.mxu0 %v4474
        %6128 = vmatmul.mubr.bf16.gmra.mxu0 %v4473
        %v6129 = vpop.f32.mrf.mxu0
        %v6130 = vadd.f32 0.0, %v6129
        %v6131 = vpop.f32.mrf.mxu0
        %v6132 = vadd.f32 0.0, %v6131
        %v6133 = vpop.f32.mrf.mxu0
        %v6134 = vpop.f32.mrf.mxu0
        %6135 = vdwg.mxu0
        %6136 = vmatprep.subr.bf16.mxu0 %v5688
        %6137 = vmatpush1.bf16.msra.mxu0 %v5687
        %6138 = vmatprep.subr.bf16.mxu0 %v5680
        %6139 = vmatpush1.bf16.msra.mxu0 %v5679
        %6140 = vmatprep.subr.bf16.mxu0 %v5672
        %6141 = vmatpush1.bf16.msra.mxu0 %v5671
        %6142 = vmatprep.subr.bf16.mxu0 %v5664
        %6143 = vmatpush1.bf16.msra.mxu0 %v5663
        %6144 = vmatprep.subr.bf16.mxu0 %v5656
        %6145 = vmatpush1.bf16.msra.mxu0 %v5655
        %6146 = vmatprep.subr.bf16.mxu0 %v5648
        %6147 = vmatpush1.bf16.msra.mxu0 %v5647
        %6148 = vmatprep.subr.bf16.mxu0 %v5640
        %6149 = vmatpush1.bf16.msra.mxu0 %v5639
        %6150 = vmatprep.subr.bf16.mxu0 %v5632
        %6151 = vmatpush1.bf16.msra.mxu0 %v5631
        %6152 = vmatprep.subr.bf16.mxu0 %v5752
        %6153 = vmatpush2.bf16.msra.mxu0 %v5751
        %6154 = vmatprep.subr.bf16.mxu0 %v5744
        %6155 = vmatpush2.bf16.msra.mxu0 %v5743
        %6156 = vmatprep.subr.bf16.mxu0 %v5736
        %6157 = vmatpush2.bf16.msra.mxu0 %v5735
        %6158 = vmatprep.subr.bf16.mxu0 %v5728
        %6159 = vmatpush2.bf16.msra.mxu0 %v5727
        %6160 = vmatprep.subr.bf16.mxu0 %v5720
        %6161 = vmatpush2.bf16.msra.mxu0 %v5719
        %6162 = vmatprep.subr.bf16.mxu0 %v5712
        %6163 = vmatpush2.bf16.msra.mxu0 %v5711
        %6164 = vmatprep.subr.bf16.mxu0 %v5704
        %6165 = vmatpush2.bf16.msra.mxu0 %v5703
        %6166 = vmatprep.subr.bf16.mxu0 %v5696
        %6167 = vmatpush2.bf16.msra.mxu0 %v5695
        %6168 = vmatprep.mubr.bf16.mxu0 %v4476
        %6169 = vmatmul.mubr.bf16.gmra.mxu0 %v4475
        %v6170 = vpop.f32.mrf.mxu0
        %v6171 = vadd.f32 %v6130, %v6170
        %v6172 = vpop.f32.mrf.mxu0
        %v6173 = vadd.f32 %v6132, %v6172
        %v6174 = vpop.f32.mrf.mxu0
        %v6175 = vpop.f32.mrf.mxu0
        %6176 = vdwg.mxu0
        %6177 = vmatprep.subr.bf16.mxu0 %v5562
        %6178 = vmatpush1.bf16.msra.mxu0 %v5561
        %6179 = vmatprep.subr.bf16.mxu0 %v5554
        %6180 = vmatpush1.bf16.msra.mxu0 %v5553
        %6181 = vmatprep.subr.bf16.mxu0 %v5546
        %6182 = vmatpush1.bf16.msra.mxu0 %v5545
        %6183 = vmatprep.subr.bf16.mxu0 %v5538
        %6184 = vmatpush1.bf16.msra.mxu0 %v5537
        %6185 = vmatprep.subr.bf16.mxu0 %v5530
        %6186 = vmatpush1.bf16.msra.mxu0 %v5529
        %6187 = vmatprep.subr.bf16.mxu0 %v5522
        %6188 = vmatpush1.bf16.msra.mxu0 %v5521
        %6189 = vmatprep.subr.bf16.mxu0 %v5514
        %6190 = vmatpush1.bf16.msra.mxu0 %v5513
        %6191 = vmatprep.subr.bf16.mxu0 %v5506
        %6192 = vmatpush1.bf16.msra.mxu0 %v5505
        %6193 = vmatprep.subr.bf16.mxu0 %v5626
        %6194 = vmatpush2.bf16.msra.mxu0 %v5625
        %6195 = vmatprep.subr.bf16.mxu0 %v5618
        %6196 = vmatpush2.bf16.msra.mxu0 %v5617
        %6197 = vmatprep.subr.bf16.mxu0 %v5610
        %6198 = vmatpush2.bf16.msra.mxu0 %v5609
        %6199 = vmatprep.subr.bf16.mxu0 %v5602
        %6200 = vmatpush2.bf16.msra.mxu0 %v5601
        %6201 = vmatprep.subr.bf16.mxu0 %v5594
        %6202 = vmatpush2.bf16.msra.mxu0 %v5593
        %6203 = vmatprep.subr.bf16.mxu0 %v5586
        %6204 = vmatpush2.bf16.msra.mxu0 %v5585
        %6205 = vmatprep.subr.bf16.mxu0 %v5578
        %6206 = vmatpush2.bf16.msra.mxu0 %v5577
        %6207 = vmatprep.subr.bf16.mxu0 %v5570
        %6208 = vmatpush2.bf16.msra.mxu0 %v5569
        %6209 = vmatprep.mubr.bf16.mxu0 %v4474
        %6210 = vmatmul.mubr.bf16.gmra.mxu0 %v4473
        %v6211 = vpop.f32.mrf.mxu0
        %v6212 = vadd.f32 0.0, %v6211
        %v6213 = vpop.f32.mrf.mxu0
        %v6214 = vadd.f32 0.0, %v6213
        %v6215 = vpop.f32.mrf.mxu0
        %v6216 = vpop.f32.mrf.mxu0
        %6217 = vdwg.mxu0
        %6218 = vmatprep.subr.bf16.mxu0 %v5690
        %6219 = vmatpush1.bf16.msra.mxu0 %v5689
        %6220 = vmatprep.subr.bf16.mxu0 %v5682
        %6221 = vmatpush1.bf16.msra.mxu0 %v5681
        %6222 = vmatprep.subr.bf16.mxu0 %v5674
        %6223 = vmatpush1.bf16.msra.mxu0 %v5673
        %6224 = vmatprep.subr.bf16.mxu0 %v5666
        %6225 = vmatpush1.bf16.msra.mxu0 %v5665
        %6226 = vmatprep.subr.bf16.mxu0 %v5658
        %6227 = vmatpush1.bf16.msra.mxu0 %v5657
        %6228 = vmatprep.subr.bf16.mxu0 %v5650
        %6229 = vmatpush1.bf16.msra.mxu0 %v5649
        %6230 = vmatprep.subr.bf16.mxu0 %v5642
        %6231 = vmatpush1.bf16.msra.mxu0 %v5641
        %6232 = vmatprep.subr.bf16.mxu0 %v5634
        %6233 = vmatpush1.bf16.msra.mxu0 %v5633
        %6234 = vmatprep.subr.bf16.mxu0 %v5754
        %6235 = vmatpush2.bf16.msra.mxu0 %v5753
        %6236 = vmatprep.subr.bf16.mxu0 %v5746
        %6237 = vmatpush2.bf16.msra.mxu0 %v5745
        %6238 = vmatprep.subr.bf16.mxu0 %v5738
        %6239 = vmatpush2.bf16.msra.mxu0 %v5737
        %6240 = vmatprep.subr.bf16.mxu0 %v5730
        %6241 = vmatpush2.bf16.msra.mxu0 %v5729
        %6242 = vmatprep.subr.bf16.mxu0 %v5722
        %6243 = vmatpush2.bf16.msra.mxu0 %v5721
        %6244 = vmatprep.subr.bf16.mxu0 %v5714
        %6245 = vmatpush2.bf16.msra.mxu0 %v5713
        %6246 = vmatprep.subr.bf16.mxu0 %v5706
        %6247 = vmatpush2.bf16.msra.mxu0 %v5705
        %6248 = vmatprep.subr.bf16.mxu0 %v5698
        %6249 = vmatpush2.bf16.msra.mxu0 %v5697
        %6250 = vmatprep.mubr.bf16.mxu0 %v4476
        %6251 = vmatmul.mubr.bf16.gmra.mxu0 %v4475
        %v6252 = vpop.f32.mrf.mxu0
        %v6253 = vadd.f32 %v6212, %v6252
        %v6254 = vpop.f32.mrf.mxu0
        %v6255 = vadd.f32 %v6214, %v6254
        %v6256 = vpop.f32.mrf.mxu0
        %v6257 = vpop.f32.mrf.mxu0
        %6258 = vdwg.mxu0
        %6259 = vmatprep.subr.bf16.mxu0 %v5564
        %6260 = vmatpush1.bf16.msra.mxu0 %v5563
        %6261 = vmatprep.subr.bf16.mxu0 %v5556
        %6262 = vmatpush1.bf16.msra.mxu0 %v5555
        %6263 = vmatprep.subr.bf16.mxu0 %v5548
        %6264 = vmatpush1.bf16.msra.mxu0 %v5547
        %6265 = vmatprep.subr.bf16.mxu0 %v5540
        %6266 = vmatpush1.bf16.msra.mxu0 %v5539
        %6267 = vmatprep.subr.bf16.mxu0 %v5532
        %6268 = vmatpush1.bf16.msra.mxu0 %v5531
        %6269 = vmatprep.subr.bf16.mxu0 %v5524
        %6270 = vmatpush1.bf16.msra.mxu0 %v5523
        %6271 = vmatprep.subr.bf16.mxu0 %v5516
        %6272 = vmatpush1.bf16.msra.mxu0 %v5515
        %6273 = vmatprep.subr.bf16.mxu0 %v5508
        %6274 = vmatpush1.bf16.msra.mxu0 %v5507
        %6275 = vmatprep.subr.bf16.mxu0 %v5628
        %6276 = vmatpush2.bf16.msra.mxu0 %v5627
        %6277 = vmatprep.subr.bf16.mxu0 %v5620
        %6278 = vmatpush2.bf16.msra.mxu0 %v5619
        %6279 = vmatprep.subr.bf16.mxu0 %v5612
        %6280 = vmatpush2.bf16.msra.mxu0 %v5611
        %6281 = vmatprep.subr.bf16.mxu0 %v5604
        %6282 = vmatpush2.bf16.msra.mxu0 %v5603
        %6283 = vmatprep.subr.bf16.mxu0 %v5596
        %6284 = vmatpush2.bf16.msra.mxu0 %v5595
        %6285 = vmatprep.subr.bf16.mxu0 %v5588
        %6286 = vmatpush2.bf16.msra.mxu0 %v5587
        %6287 = vmatprep.subr.bf16.mxu0 %v5580
        %6288 = vmatpush2.bf16.msra.mxu0 %v5579
        %6289 = vmatprep.subr.bf16.mxu0 %v5572
        %6290 = vmatpush2.bf16.msra.mxu0 %v5571
        %6291 = vmatprep.mubr.bf16.mxu0 %v4474
        %6292 = vmatmul.mubr.bf16.gmra.mxu0 %v4473
        %v6293 = vpop.f32.mrf.mxu0
        %v6294 = vadd.f32 0.0, %v6293
        %v6295 = vpop.f32.mrf.mxu0
        %v6296 = vadd.f32 0.0, %v6295
        %v6297 = vpop.f32.mrf.mxu0
        %v6298 = vpop.f32.mrf.mxu0
        %6299 = vdwg.mxu0
        %6300 = vmatprep.subr.bf16.mxu0 %v5692
        %6301 = vmatpush1.bf16.msra.mxu0 %v5691
        %6302 = vmatprep.subr.bf16.mxu0 %v5684
        %6303 = vmatpush1.bf16.msra.mxu0 %v5683
        %6304 = vmatprep.subr.bf16.mxu0 %v5676
        %6305 = vmatpush1.bf16.msra.mxu0 %v5675
        %6306 = vmatprep.subr.bf16.mxu0 %v5668
        %6307 = vmatpush1.bf16.msra.mxu0 %v5667
        %6308 = vmatprep.subr.bf16.mxu0 %v5660
        %6309 = vmatpush1.bf16.msra.mxu0 %v5659
        %6310 = vmatprep.subr.bf16.mxu0 %v5652
        %6311 = vmatpush1.bf16.msra.mxu0 %v5651
        %6312 = vmatprep.subr.bf16.mxu0 %v5644
        %6313 = vmatpush1.bf16.msra.mxu0 %v5643
        %6314 = vmatprep.subr.bf16.mxu0 %v5636
        %6315 = vmatpush1.bf16.msra.mxu0 %v5635
        %6316 = vmatprep.subr.bf16.mxu0 %v5756
        %6317 = vmatpush2.bf16.msra.mxu0 %v5755
        %6318 = vmatprep.subr.bf16.mxu0 %v5748
        %6319 = vmatpush2.bf16.msra.mxu0 %v5747
        %6320 = vmatprep.subr.bf16.mxu0 %v5740
        %6321 = vmatpush2.bf16.msra.mxu0 %v5739
        %6322 = vmatprep.subr.bf16.mxu0 %v5732
        %6323 = vmatpush2.bf16.msra.mxu0 %v5731
        %6324 = vmatprep.subr.bf16.mxu0 %v5724
        %6325 = vmatpush2.bf16.msra.mxu0 %v5723
        %6326 = vmatprep.subr.bf16.mxu0 %v5716
        %6327 = vmatpush2.bf16.msra.mxu0 %v5715
        %6328 = vmatprep.subr.bf16.mxu0 %v5708
        %6329 = vmatpush2.bf16.msra.mxu0 %v5707
        %6330 = vmatprep.subr.bf16.mxu0 %v5700
        %6331 = vmatpush2.bf16.msra.mxu0 %v5699
        %6332 = vmatprep.mubr.bf16.mxu0 %v4476
        %6333 = vmatmul.mubr.bf16.gmra.mxu0 %v4475
        %v6334 = vpop.f32.mrf.mxu0
        %v6335 = vadd.f32 %v6294, %v6334
        %v6336 = vpop.f32.mrf.mxu0
        %v6337 = vadd.f32 %v6296, %v6336
        %v6338 = vpop.f32.mrf.mxu0
        %v6339 = vpop.f32.mrf.mxu0
        %6340 = vdwg.mxu0
        %p6341 = scmp.eq.s32.totalorder %s30, 0
        // Predicated region
        $region93: #{tpu_custom_call.1} parent=55 // pred_check
          %p6342 = pneg %p6341
        $region94: #{tpu_custom_call.1} parent=55 // pred_check_branch
          %6344 = sbr.rel (%p6342) target = $region96
        $region95: #{tpu_custom_call.1} parent=55 // pred_region
          %6345 = vst [vmem:[#allocation2] sm:$0xff] %v6089
          %6346 = vst [vmem:[#allocation2 + $0x8] sm:$0xff] %v6091
          %6347 = vst [vmem:[#allocation2 + $0x10] sm:$0xff] %v6171
          %6348 = vst [vmem:[#allocation2 + $0x18] sm:$0xff] %v6173
          %6349 = vst [vmem:[#allocation2 + $0x20] sm:$0xff] %v6253
          %6350 = vst [vmem:[#allocation2 + $0x28] sm:$0xff] %v6255
          %6351 = vst [vmem:[#allocation2 + $0x30] sm:$0xff] %v6335
          %6352 = vst [vmem:[#allocation2 + $0x38] sm:$0xff] %v6337
        $region96: #{tpu_custom_call.1} parent=55 // pred_fallthru
          _
        %p6353 = scmp.gt.s32.totalorder %s30, 0
        // Predicated region
        $region97: #{tpu_custom_call.1} parent=55 // pred_check
          %p6354 = pneg %p6353
        $region98: #{tpu_custom_call.1} parent=55 // pred_check_branch
          %6356 = sbr.rel (%p6354) target = $region100
        $region99: #{tpu_custom_call.1} parent=55 // pred_region
          %v6357 = vld [vmem:[#allocation2] sm:$0xff]
          %v6358 = vld [vmem:[#allocation2 + $0x8] sm:$0xff]
          %v6359 = vld [vmem:[#allocation2 + $0x10] sm:$0xff]
          %v6360 = vld [vmem:[#allocation2 + $0x18] sm:$0xff]
          %v6361 = vld [vmem:[#allocation2 + $0x20] sm:$0xff]
          %v6362 = vld [vmem:[#allocation2 + $0x28] sm:$0xff]
          %v6363 = vld [vmem:[#allocation2 + $0x30] sm:$0xff]
          %v6364 = vld [vmem:[#allocation2 + $0x38] sm:$0xff]
          %v6365 = vadd.f32 %v6357, %v6089
          %v6366 = vadd.f32 %v6358, %v6091
          %v6367 = vadd.f32 %v6359, %v6171
          %v6368 = vadd.f32 %v6360, %v6173
          %v6369 = vadd.f32 %v6361, %v6253
          %v6370 = vadd.f32 %v6362, %v6255
          %v6371 = vadd.f32 %v6363, %v6335
          %v6372 = vadd.f32 %v6364, %v6337
          %6373 = vst [vmem:[#allocation2] sm:$0xff] %v6365
          %6374 = vst [vmem:[#allocation2 + $0x8] sm:$0xff] %v6366
          %6375 = vst [vmem:[#allocation2 + $0x10] sm:$0xff] %v6367
          %6376 = vst [vmem:[#allocation2 + $0x18] sm:$0xff] %v6368
          %6377 = vst [vmem:[#allocation2 + $0x20] sm:$0xff] %v6369
          %6378 = vst [vmem:[#allocation2 + $0x28] sm:$0xff] %v6370
          %6379 = vst [vmem:[#allocation2 + $0x30] sm:$0xff] %v6371
          %6380 = vst [vmem:[#allocation2 + $0x38] sm:$0xff] %v6372
        $region100: #{tpu_custom_call.1} parent=55 // pred_fallthru
          _
        %p6381 = scmp.eq.s32.totalorder %s30, 1
        // Predicated region
        $region101: #{tpu_custom_call.1} parent=55 // pred_check
          %p6382 = pneg %p6381
        $region102: #{tpu_custom_call.1} parent=55 // pred_check_branch
          %6384 = sbr.rel (%p6382) target = $region104
        $region103: #{tpu_custom_call.1} parent=55 // pred_region
          %v6385 = vld [vmem:[#allocation2] sm:$0xff]
          %v6386 = vld [vmem:[#allocation2 + $0x8] sm:$0xff]
          %v6387 = vld [vmem:[#allocation2 + $0x10] sm:$0xff]
          %v6388 = vld [vmem:[#allocation2 + $0x18] sm:$0xff]
          %v6389 = vld [vmem:[#allocation2 + $0x20] sm:$0xff]
          %v6390 = vld [vmem:[#allocation2 + $0x28] sm:$0xff]
          %v6391 = vld [vmem:[#allocation2 + $0x30] sm:$0xff]
          %v6392 = vld [vmem:[#allocation2 + $0x38] sm:$0xff]
          %v6393 = vld [vmem:[#allocation12] sm:$0xff]
          %v6394 = vld [vmem:[#allocation14] sm:$0xff]
          %v6395 = vrot.slane %v6385, 4
          %v6396 = vadd.f32 %v6385, %v6395
          %v6397 = vrot.slane %v6396, 2
          %v6398 = vadd.f32 %v6396, %v6397
          %v6399 = vrot.slane %v6398, 1
          %v6400 = vadd.f32 %v6398, %v6399
          %v6401 = vrot.slane %v6386, 4
          %v6402 = vadd.f32 %v6386, %v6401
          %v6403 = vrot.slane %v6402, 2
          %v6404 = vadd.f32 %v6402, %v6403
          %v6405 = vrot.slane %v6404, 1
          %v6406 = vadd.f32 %v6404, %v6405
          %v6407 = vrot.slane %v6387, 4
          %v6408 = vadd.f32 %v6387, %v6407
          %v6409 = vrot.slane %v6408, 2
          %v6410 = vadd.f32 %v6408, %v6409
          %v6411 = vrot.slane %v6410, 1
          %v6412 = vadd.f32 %v6410, %v6411
          %v6413 = vrot.slane %v6388, 4
          %v6414 = vadd.f32 %v6388, %v6413
          %v6415 = vrot.slane %v6414, 2
          %v6416 = vadd.f32 %v6414, %v6415
          %v6417 = vrot.slane %v6416, 1
          %v6418 = vadd.f32 %v6416, %v6417
          %v6419 = vrot.slane %v6389, 4
          %v6420 = vadd.f32 %v6389, %v6419
          %v6421 = vrot.slane %v6420, 2
          %v6422 = vadd.f32 %v6420, %v6421
          %v6423 = vrot.slane %v6422, 1
          %v6424 = vadd.f32 %v6422, %v6423
          %v6425 = vrot.slane %v6390, 4
          %v6426 = vadd.f32 %v6390, %v6425
          %v6427 = vrot.slane %v6426, 2
          %v6428 = vadd.f32 %v6426, %v6427
          %v6429 = vrot.slane %v6428, 1
          %v6430 = vadd.f32 %v6428, %v6429
          %v6431 = vrot.slane %v6391, 4
          %v6432 = vadd.f32 %v6391, %v6431
          %v6433 = vrot.slane %v6432, 2
          %v6434 = vadd.f32 %v6432, %v6433
          %v6435 = vrot.slane %v6434, 1
          %v6436 = vadd.f32 %v6434, %v6435
          %v6437 = vrot.slane %v6392, 4
          %v6438 = vadd.f32 %v6392, %v6437
          %v6439 = vrot.slane %v6438, 2
          %v6440 = vadd.f32 %v6438, %v6439
          %v6441 = vrot.slane %v6440, 1
          %v6442 = vadd.f32 %v6440, %v6441
          %v6443 = vmul.f32 %v6400, %v4306
          %v6444 = vmul.f32 %v6406, %v4306
          %v6445 = vmul.f32 %v6412, %v4306
          %v6446 = vmul.f32 %v6418, %v4306
          %v6447 = vmul.f32 %v6424, %v4306
          %v6448 = vmul.f32 %v6430, %v4306
          %v6449 = vmul.f32 %v6436, %v4306
          %v6450 = vmul.f32 %v6442, %v4306
          %v6451 = vsub.f32 %v6385, %v6443
          %v6452 = vsub.f32 %v6386, %v6444
          %v6453 = vsub.f32 %v6387, %v6445
          %v6454 = vsub.f32 %v6388, %v6446
          %v6455 = vsub.f32 %v6389, %v6447
          %v6456 = vsub.f32 %v6390, %v6448
          %v6457 = vsub.f32 %v6391, %v6449
          %v6458 = vsub.f32 %v6392, %v6450
          %v6459 = vmul.f32 %v6451, %v6451
          %v6460 = vmul.f32 %v6452, %v6452
          %v6461 = vmul.f32 %v6453, %v6453
          %v6462 = vmul.f32 %v6454, %v6454
          %v6463 = vmul.f32 %v6455, %v6455
          %v6464 = vmul.f32 %v6456, %v6456
          %v6465 = vmul.f32 %v6457, %v6457
          %v6466 = vmul.f32 %v6458, %v6458
          %v6467 = vrot.slane %v6459, 4
          %v6468 = vadd.f32 %v6459, %v6467
          %v6469 = vrot.slane %v6468, 2
          %v6470 = vadd.f32 %v6468, %v6469
          %v6471 = vrot.slane %v6470, 1
          %v6472 = vadd.f32 %v6470, %v6471
          %v6473 = vrot.slane %v6460, 4
          %v6474 = vadd.f32 %v6460, %v6473
          %v6475 = vrot.slane %v6474, 2
          %v6476 = vadd.f32 %v6474, %v6475
          %v6477 = vrot.slane %v6476, 1
          %v6478 = vadd.f32 %v6476, %v6477
          %v6479 = vrot.slane %v6461, 4
          %v6480 = vadd.f32 %v6461, %v6479
          %v6481 = vrot.slane %v6480, 2
          %v6482 = vadd.f32 %v6480, %v6481
          %v6483 = vrot.slane %v6482, 1
          %v6484 = vadd.f32 %v6482, %v6483
          %v6485 = vrot.slane %v6462, 4
          %v6486 = vadd.f32 %v6462, %v6485
          %v6487 = vrot.slane %v6486, 2
          %v6488 = vadd.f32 %v6486, %v6487
          %v6489 = vrot.slane %v6488, 1
          %v6490 = vadd.f32 %v6488, %v6489
          %v6491 = vrot.slane %v6463, 4
          %v6492 = vadd.f32 %v6463, %v6491
          %v6493 = vrot.slane %v6492, 2
          %v6494 = vadd.f32 %v6492, %v6493
          %v6495 = vrot.slane %v6494, 1
          %v6496 = vadd.f32 %v6494, %v6495
          %v6497 = vrot.slane %v6464, 4
          %v6498 = vadd.f32 %v6464, %v6497
          %v6499 = vrot.slane %v6498, 2
          %v6500 = vadd.f32 %v6498, %v6499
          %v6501 = vrot.slane %v6500, 1
          %v6502 = vadd.f32 %v6500, %v6501
          %v6503 = vrot.slane %v6465, 4
          %v6504 = vadd.f32 %v6465, %v6503
          %v6505 = vrot.slane %v6504, 2
          %v6506 = vadd.f32 %v6504, %v6505
          %v6507 = vrot.slane %v6506, 1
          %v6508 = vadd.f32 %v6506, %v6507
          %v6509 = vrot.slane %v6466, 4
          %v6510 = vadd.f32 %v6466, %v6509
          %v6511 = vrot.slane %v6510, 2
          %v6512 = vadd.f32 %v6510, %v6511
          %v6513 = vrot.slane %v6512, 1
          %v6514 = vadd.f32 %v6512, %v6513
          %v6515 = vmul.f32 %v6472, %v4306
          %v6516 = vmul.f32 %v6478, %v4306
          %v6517 = vmul.f32 %v6484, %v4306
          %v6518 = vmul.f32 %v6490, %v4306
          %v6519 = vmul.f32 %v6496, %v4306
          %v6520 = vmul.f32 %v6502, %v4306
          %v6521 = vmul.f32 %v6508, %v4306
          %v6522 = vmul.f32 %v6514, %v4306
          %v6523 = vadd.f32 %v6515, 1e-05
          %v6524 = vadd.f32 %v6516, 1e-05
          %v6525 = vadd.f32 %v6517, 1e-05
          %v6526 = vadd.f32 %v6518, 1e-05
          %v6527 = vadd.f32 %v6519, 1e-05
          %v6528 = vadd.f32 %v6520, 1e-05
          %v6529 = vadd.f32 %v6521, 1e-05
          %v6530 = vadd.f32 %v6522, 1e-05
          %v6531 = vrsqrt.pop %v6523
          %v6532 = vrsqrt.pop %v6524
          %v6533 = vrsqrt.pop %v6525
          %v6534 = vrsqrt.pop %v6526
          %v6535 = vrsqrt.pop %v6527
          %v6536 = vrsqrt.pop %v6528
          %v6537 = vrsqrt.pop %v6529
          %v6538 = vrsqrt.pop %v6530
          %v6547 = vcombine.low %v6531, %v6532
          %v6548 = vcombine.low %v6533, %v6534
          %v6549 = vcombine.low %v6535, %v6536
          %v6550 = vcombine.low %v6537, %v6538
          %v6552 = vunpack.c.l.s4 1966171168
          %v6553 = vunpack.c.0.s8 %v6552
          %v6554 = vlaneseq
          %v6555 = vshrl.u32 %v6554, 7
          %v6556 = vsub.s32 %v6553, %v6555
          %v6557 = vrot.slane %v6547, %v6556
          %v6559 = vunpack.c.l.s4 1966171168
          %v6560 = vunpack.c.0.s8 %v6559
          %v6561 = vlaneseq
          %v6562 = vshrl.u32 %v6561, 7
          %v6563 = vsub.s32 %v6560, %v6562
          %v6564 = vrot.slane %v6548, %v6563
          %v6566 = vunpack.c.l.s4 1966171168
          %v6567 = vunpack.c.0.s8 %v6566
          %v6568 = vlaneseq
          %v6569 = vshrl.u32 %v6568, 7
          %v6570 = vsub.s32 %v6567, %v6569
          %v6571 = vrot.slane %v6549, %v6570
          %v6573 = vunpack.c.l.s4 1966171168
          %v6574 = vunpack.c.0.s8 %v6573
          %v6575 = vlaneseq
          %v6576 = vshrl.u32 %v6575, 7
          %v6577 = vsub.s32 %v6574, %v6576
          %v6578 = vrot.slane %v6550, %v6577
          %v6579 = vcombine.low %v6557, %v6564
          %v6580 = vcombine.low %v6571, %v6578
          %v6582 = vunpack.c.l.s4 1966171168
          %v6583 = vunpack.c.0.s8 %v6582
          %v6584 = vlaneseq
          %v6585 = vshrl.u32 %v6584, 7
          %v6586 = vsub.s32 %v6583, %v6585
          %v6587 = vrot.slane %v6579, %v6586
          %v6589 = vunpack.c.l.s4 1966171168
          %v6590 = vunpack.c.0.s8 %v6589
          %v6591 = vlaneseq
          %v6592 = vshrl.u32 %v6591, 7
          %v6593 = vsub.s32 %v6590, %v6592
          %v6594 = vrot.slane %v6580, %v6593
          %v6595 = vcombine.low %v6587, %v6594
          %v6597 = vmul.f32 %v6393, %v6595
          %v6599 = vlaneseq
          %v6600 = vshrl.u32 %v6599, 7
          %v6601 = vsub.s32 0, %v6600
          %v6602 = vrot.slane %v6597, %v6601
          %v6603 = vlaneseq
          %v6604 = vshrl.u32 %v6603, 7
          %v6605 = vsub.s32 1, %v6604
          %v6606 = vrot.slane %v6597, %v6605
          %v6607 = vlaneseq
          %v6608 = vshrl.u32 %v6607, 7
          %v6609 = vsub.s32 2, %v6608
          %v6610 = vrot.slane %v6597, %v6609
          %v6611 = vlaneseq
          %v6612 = vshrl.u32 %v6611, 7
          %v6613 = vsub.s32 3, %v6612
          %v6614 = vrot.slane %v6597, %v6613
          %v6615 = vlaneseq
          %v6616 = vshrl.u32 %v6615, 7
          %v6617 = vsub.s32 4, %v6616
          %v6618 = vrot.slane %v6597, %v6617
          %v6619 = vlaneseq
          %v6620 = vshrl.u32 %v6619, 7
          %v6621 = vsub.s32 5, %v6620
          %v6622 = vrot.slane %v6597, %v6621
          %v6623 = vlaneseq
          %v6624 = vshrl.u32 %v6623, 7
          %v6625 = vsub.s32 6, %v6624
          %v6626 = vrot.slane %v6597, %v6625
          %v6627 = vlaneseq
          %v6628 = vshrl.u32 %v6627, 7
          %v6629 = vsub.s32 7, %v6628
          %v6630 = vrot.slane %v6597, %v6629
          %v6639 = vmul.f32 %v6443, %v6602
          %v6640 = vmul.f32 %v6444, %v6606
          %v6641 = vmul.f32 %v6445, %v6610
          %v6642 = vmul.f32 %v6446, %v6614
          %v6643 = vmul.f32 %v6447, %v6618
          %v6644 = vmul.f32 %v6448, %v6622
          %v6645 = vmul.f32 %v6449, %v6626
          %v6646 = vmul.f32 %v6450, %v6630
          %v6655 = vcombine.low %v6639, %v6640
          %v6656 = vcombine.low %v6641, %v6642
          %v6657 = vcombine.low %v6643, %v6644
          %v6658 = vcombine.low %v6645, %v6646
          %v6660 = vunpack.c.l.s4 1966171168
          %v6661 = vunpack.c.0.s8 %v6660
          %v6662 = vlaneseq
          %v6663 = vshrl.u32 %v6662, 7
          %v6664 = vsub.s32 %v6661, %v6663
          %v6665 = vrot.slane %v6655, %v6664
          %v6667 = vunpack.c.l.s4 1966171168
          %v6668 = vunpack.c.0.s8 %v6667
          %v6669 = vlaneseq
          %v6670 = vshrl.u32 %v6669, 7
          %v6671 = vsub.s32 %v6668, %v6670
          %v6672 = vrot.slane %v6656, %v6671
          %v6674 = vunpack.c.l.s4 1966171168
          %v6675 = vunpack.c.0.s8 %v6674
          %v6676 = vlaneseq
          %v6677 = vshrl.u32 %v6676, 7
          %v6678 = vsub.s32 %v6675, %v6677
          %v6679 = vrot.slane %v6657, %v6678
          %v6681 = vunpack.c.l.s4 1966171168
          %v6682 = vunpack.c.0.s8 %v6681
          %v6683 = vlaneseq
          %v6684 = vshrl.u32 %v6683, 7
          %v6685 = vsub.s32 %v6682, %v6684
          %v6686 = vrot.slane %v6658, %v6685
          %v6687 = vcombine.low %v6665, %v6672
          %v6688 = vcombine.low %v6679, %v6686
          %v6690 = vunpack.c.l.s4 1966171168
          %v6691 = vunpack.c.0.s8 %v6690
          %v6692 = vlaneseq
          %v6693 = vshrl.u32 %v6692, 7
          %v6694 = vsub.s32 %v6691, %v6693
          %v6695 = vrot.slane %v6687, %v6694
          %v6697 = vunpack.c.l.s4 1966171168
          %v6698 = vunpack.c.0.s8 %v6697
          %v6699 = vlaneseq
          %v6700 = vshrl.u32 %v6699, 7
          %v6701 = vsub.s32 %v6698, %v6700
          %v6702 = vrot.slane %v6688, %v6701
          %v6703 = vcombine.low %v6695, %v6702
          %v6705 = vsub.f32 %v6394, %v6703
          %v6706 = vmul.f32 %v6385, %v6602
          %v6707 = vmul.f32 %v6386, %v6606
          %v6708 = vmul.f32 %v6387, %v6610
          %v6709 = vmul.f32 %v6388, %v6614
          %v6710 = vmul.f32 %v6389, %v6618
          %v6711 = vmul.f32 %v6390, %v6622
          %v6712 = vmul.f32 %v6391, %v6626
          %v6713 = vmul.f32 %v6392, %v6630
          %v6715 = vlaneseq
          %v6716 = vshrl.u32 %v6715, 7
          %v6717 = vsub.s32 0, %v6716
          %v6718 = vrot.slane %v6705, %v6717
          %v6719 = vlaneseq
          %v6720 = vshrl.u32 %v6719, 7
          %v6721 = vsub.s32 1, %v6720
          %v6722 = vrot.slane %v6705, %v6721
          %v6723 = vlaneseq
          %v6724 = vshrl.u32 %v6723, 7
          %v6725 = vsub.s32 2, %v6724
          %v6726 = vrot.slane %v6705, %v6725
          %v6727 = vlaneseq
          %v6728 = vshrl.u32 %v6727, 7
          %v6729 = vsub.s32 3, %v6728
          %v6730 = vrot.slane %v6705, %v6729
          %v6731 = vlaneseq
          %v6732 = vshrl.u32 %v6731, 7
          %v6733 = vsub.s32 4, %v6732
          %v6734 = vrot.slane %v6705, %v6733
          %v6735 = vlaneseq
          %v6736 = vshrl.u32 %v6735, 7
          %v6737 = vsub.s32 5, %v6736
          %v6738 = vrot.slane %v6705, %v6737
          %v6739 = vlaneseq
          %v6740 = vshrl.u32 %v6739, 7
          %v6741 = vsub.s32 6, %v6740
          %v6742 = vrot.slane %v6705, %v6741
          %v6743 = vlaneseq
          %v6744 = vshrl.u32 %v6743, 7
          %v6745 = vsub.s32 7, %v6744
          %v6746 = vrot.slane %v6705, %v6745
          %v6755 = vadd.f32 %v6706, %v6718
          %v6756 = vadd.f32 %v6707, %v6722
          %v6757 = vadd.f32 %v6708, %v6726
          %v6758 = vadd.f32 %v6709, %v6730
          %v6759 = vadd.f32 %v6710, %v6734
          %v6760 = vadd.f32 %v6711, %v6738
          %v6761 = vadd.f32 %v6712, %v6742
          %v6762 = vadd.f32 %v6713, %v6746
          %v6763 = vmax.f32 %v6755, 0.0
          %v6764 = vmax.f32 %v6756, 0.0
          %v6765 = vmax.f32 %v6757, 0.0
          %v6766 = vmax.f32 %v6758, 0.0
          %v6767 = vmax.f32 %v6759, 0.0
          %v6768 = vmax.f32 %v6760, 0.0
          %v6769 = vmax.f32 %v6761, 0.0
          %v6770 = vmax.f32 %v6762, 0.0
          %v6771 = vpack.c.bf16 %v6763, %v6763
          %v6772 = vpack.c.bf16 %v6764, %v6764
          %v6773 = vpack.c.bf16 %v6765, %v6765
          %v6774 = vpack.c.bf16 %v6766, %v6766
          %v6775 = vpack.c.bf16 %v6767, %v6767
          %v6776 = vpack.c.bf16 %v6768, %v6768
          %v6777 = vpack.c.bf16 %v6769, %v6769
          %v6778 = vpack.c.bf16 %v6770, %v6770
          %v6779 = vld [vmem:[#allocation15] sm:$0xf]
          %v6780 = vld [vmem:[#allocation15 + $0x4] sm:$0xf]
          %v6781 = vld [vmem:[#allocation15 + $0x8] sm:$0xf]
          %v6782 = vld [vmem:[#allocation15 + $0xc] sm:$0xf]
          %v6783 = vld [vmem:[#allocation15 + $0x10] sm:$0xf]
          %v6784 = vld [vmem:[#allocation15 + $0x14] sm:$0xf]
          %v6785 = vld [vmem:[#allocation15 + $0x18] sm:$0xf]
          %v6786 = vld [vmem:[#allocation15 + $0x1c] sm:$0xf]
          %v6787 = vld [vmem:[#allocation15 + $0x20] sm:$0xf]
          %v6788 = vld [vmem:[#allocation15 + $0x24] sm:$0xf]
          %v6789 = vld [vmem:[#allocation15 + $0x28] sm:$0xf]
          %v6790 = vld [vmem:[#allocation15 + $0x2c] sm:$0xf]
          %v6791 = vld [vmem:[#allocation15 + $0x30] sm:$0xf]
          %v6792 = vld [vmem:[#allocation15 + $0x34] sm:$0xf]
          %v6793 = vld [vmem:[#allocation15 + $0x38] sm:$0xf]
          %v6794 = vld [vmem:[#allocation15 + $0x3c] sm:$0xf]
          %v6795 = vld [vmem:[#allocation15 + $0x40] sm:$0xf]
          %v6796 = vld [vmem:[#allocation15 + $0x44] sm:$0xf]
          %v6797 = vld [vmem:[#allocation15 + $0x48] sm:$0xf]
          %v6798 = vld [vmem:[#allocation15 + $0x4c] sm:$0xf]
          %v6799 = vld [vmem:[#allocation15 + $0x50] sm:$0xf]
          %v6800 = vld [vmem:[#allocation15 + $0x54] sm:$0xf]
          %v6801 = vld [vmem:[#allocation15 + $0x58] sm:$0xf]
          %v6802 = vld [vmem:[#allocation15 + $0x5c] sm:$0xf]
          %v6803 = vld [vmem:[#allocation15 + $0x60] sm:$0xf]
          %v6804 = vld [vmem:[#allocation15 + $0x64] sm:$0xf]
          %v6805 = vld [vmem:[#allocation15 + $0x68] sm:$0xf]
          %v6806 = vld [vmem:[#allocation15 + $0x6c] sm:$0xf]
          %v6807 = vld [vmem:[#allocation15 + $0x70] sm:$0xf]
          %v6808 = vld [vmem:[#allocation15 + $0x74] sm:$0xf]
          %v6809 = vld [vmem:[#allocation15 + $0x78] sm:$0xf]
          %v6810 = vld [vmem:[#allocation15 + $0x7c] sm:$0xf]
          %v6811 = vld [vmem:[#allocation15 + $0x80] sm:$0xf]
          %v6812 = vld [vmem:[#allocation15 + $0x84] sm:$0xf]
          %v6813 = vld [vmem:[#allocation15 + $0x88] sm:$0xf]
          %v6814 = vld [vmem:[#allocation15 + $0x8c] sm:$0xf]
          %v6815 = vld [vmem:[#allocation15 + $0x90] sm:$0xf]
          %v6816 = vld [vmem:[#allocation15 + $0x94] sm:$0xf]
          %v6817 = vld [vmem:[#allocation15 + $0x98] sm:$0xf]
          %v6818 = vld [vmem:[#allocation15 + $0x9c] sm:$0xf]
          %v6819 = vld [vmem:[#allocation15 + $0xa0] sm:$0xf]
          %v6820 = vld [vmem:[#allocation15 + $0xa4] sm:$0xf]
          %v6821 = vld [vmem:[#allocation15 + $0xa8] sm:$0xf]
          %v6822 = vld [vmem:[#allocation15 + $0xac] sm:$0xf]
          %v6823 = vld [vmem:[#allocation15 + $0xb0] sm:$0xf]
          %v6824 = vld [vmem:[#allocation15 + $0xb4] sm:$0xf]
          %v6825 = vld [vmem:[#allocation15 + $0xb8] sm:$0xf]
          %v6826 = vld [vmem:[#allocation15 + $0xbc] sm:$0xf]
          %v6827 = vld [vmem:[#allocation15 + $0xc0] sm:$0xf]
          %v6828 = vld [vmem:[#allocation15 + $0xc4] sm:$0xf]
          %v6829 = vld [vmem:[#allocation15 + $0xc8] sm:$0xf]
          %v6830 = vld [vmem:[#allocation15 + $0xcc] sm:$0xf]
          %v6831 = vld [vmem:[#allocation15 + $0xd0] sm:$0xf]
          %v6832 = vld [vmem:[#allocation15 + $0xd4] sm:$0xf]
          %v6833 = vld [vmem:[#allocation15 + $0xd8] sm:$0xf]
          %v6834 = vld [vmem:[#allocation15 + $0xdc] sm:$0xf]
          %v6835 = vld [vmem:[#allocation15 + $0xe0] sm:$0xf]
          %v6836 = vld [vmem:[#allocation15 + $0xe4] sm:$0xf]
          %v6837 = vld [vmem:[#allocation15 + $0xe8] sm:$0xf]
          %v6838 = vld [vmem:[#allocation15 + $0xec] sm:$0xf]
          %v6839 = vld [vmem:[#allocation15 + $0xf0] sm:$0xf]
          %v6840 = vld [vmem:[#allocation15 + $0xf4] sm:$0xf]
          %v6841 = vld [vmem:[#allocation15 + $0xf8] sm:$0xf]
          %v6842 = vld [vmem:[#allocation15 + $0xfc] sm:$0xf]
          %v6843 = vld [vmem:[#allocation15 + $0x100] sm:$0xf]
          %v6844 = vld [vmem:[#allocation15 + $0x104] sm:$0xf]
          %v6845 = vld [vmem:[#allocation15 + $0x108] sm:$0xf]
          %v6846 = vld [vmem:[#allocation15 + $0x10c] sm:$0xf]
          %v6847 = vld [vmem:[#allocation15 + $0x110] sm:$0xf]
          %v6848 = vld [vmem:[#allocation15 + $0x114] sm:$0xf]
          %v6849 = vld [vmem:[#allocation15 + $0x118] sm:$0xf]
          %v6850 = vld [vmem:[#allocation15 + $0x11c] sm:$0xf]
          %v6851 = vld [vmem:[#allocation15 + $0x120] sm:$0xf]
          %v6852 = vld [vmem:[#allocation15 + $0x124] sm:$0xf]
          %v6853 = vld [vmem:[#allocation15 + $0x128] sm:$0xf]
          %v6854 = vld [vmem:[#allocation15 + $0x12c] sm:$0xf]
          %v6855 = vld [vmem:[#allocation15 + $0x130] sm:$0xf]
          %v6856 = vld [vmem:[#allocation15 + $0x134] sm:$0xf]
          %v6857 = vld [vmem:[#allocation15 + $0x138] sm:$0xf]
          %v6858 = vld [vmem:[#allocation15 + $0x13c] sm:$0xf]
          %v6859 = vld [vmem:[#allocation15 + $0x140] sm:$0xf]
          %v6860 = vld [vmem:[#allocation15 + $0x144] sm:$0xf]
          %v6861 = vld [vmem:[#allocation15 + $0x148] sm:$0xf]
          %v6862 = vld [vmem:[#allocation15 + $0x14c] sm:$0xf]
          %v6863 = vld [vmem:[#allocation15 + $0x150] sm:$0xf]
          %v6864 = vld [vmem:[#allocation15 + $0x154] sm:$0xf]
          %v6865 = vld [vmem:[#allocation15 + $0x158] sm:$0xf]
          %v6866 = vld [vmem:[#allocation15 + $0x15c] sm:$0xf]
          %v6867 = vld [vmem:[#allocation15 + $0x160] sm:$0xf]
          %v6868 = vld [vmem:[#allocation15 + $0x164] sm:$0xf]
          %v6869 = vld [vmem:[#allocation15 + $0x168] sm:$0xf]
          %v6870 = vld [vmem:[#allocation15 + $0x16c] sm:$0xf]
          %v6871 = vld [vmem:[#allocation15 + $0x170] sm:$0xf]
          %v6872 = vld [vmem:[#allocation15 + $0x174] sm:$0xf]
          %v6873 = vld [vmem:[#allocation15 + $0x178] sm:$0xf]
          %v6874 = vld [vmem:[#allocation15 + $0x17c] sm:$0xf]
          %v6875 = vld [vmem:[#allocation15 + $0x180] sm:$0xf]
          %v6876 = vld [vmem:[#allocation15 + $0x184] sm:$0xf]
          %v6877 = vld [vmem:[#allocation15 + $0x188] sm:$0xf]
          %v6878 = vld [vmem:[#allocation15 + $0x18c] sm:$0xf]
          %v6879 = vld [vmem:[#allocation15 + $0x190] sm:$0xf]
          %v6880 = vld [vmem:[#allocation15 + $0x194] sm:$0xf]
          %v6881 = vld [vmem:[#allocation15 + $0x198] sm:$0xf]
          %v6882 = vld [vmem:[#allocation15 + $0x19c] sm:$0xf]
          %v6883 = vld [vmem:[#allocation15 + $0x1a0] sm:$0xf]
          %v6884 = vld [vmem:[#allocation15 + $0x1a4] sm:$0xf]
          %v6885 = vld [vmem:[#allocation15 + $0x1a8] sm:$0xf]
          %v6886 = vld [vmem:[#allocation15 + $0x1ac] sm:$0xf]
          %v6887 = vld [vmem:[#allocation15 + $0x1b0] sm:$0xf]
          %v6888 = vld [vmem:[#allocation15 + $0x1b4] sm:$0xf]
          %v6889 = vld [vmem:[#allocation15 + $0x1b8] sm:$0xf]
          %v6890 = vld [vmem:[#allocation15 + $0x1bc] sm:$0xf]
          %v6891 = vld [vmem:[#allocation15 + $0x1c0] sm:$0xf]
          %v6892 = vld [vmem:[#allocation15 + $0x1c4] sm:$0xf]
          %v6893 = vld [vmem:[#allocation15 + $0x1c8] sm:$0xf]
          %v6894 = vld [vmem:[#allocation15 + $0x1cc] sm:$0xf]
          %v6895 = vld [vmem:[#allocation15 + $0x1d0] sm:$0xf]
          %v6896 = vld [vmem:[#allocation15 + $0x1d4] sm:$0xf]
          %v6897 = vld [vmem:[#allocation15 + $0x1d8] sm:$0xf]
          %v6898 = vld [vmem:[#allocation15 + $0x1dc] sm:$0xf]
          %v6899 = vld [vmem:[#allocation15 + $0x1e0] sm:$0xf]
          %v6900 = vld [vmem:[#allocation15 + $0x1e4] sm:$0xf]
          %v6901 = vld [vmem:[#allocation15 + $0x1e8] sm:$0xf]
          %v6902 = vld [vmem:[#allocation15 + $0x1ec] sm:$0xf]
          %v6903 = vld [vmem:[#allocation15 + $0x1f0] sm:$0xf]
          %v6904 = vld [vmem:[#allocation15 + $0x1f4] sm:$0xf]
          %v6905 = vld [vmem:[#allocation15 + $0x1f8] sm:$0xf]
          %v6906 = vld [vmem:[#allocation15 + $0x1fc] sm:$0xf]
          %v6907 = vld [vmem:[#allocation17] sm:$0x1]
          %v6909 = vlaneseq
          %v6910 = vshrl.u32 %v6909, 7
          %v6911 = vsub.s32 0, %v6910
          %v6912 = vrot.slane %v6907, %v6911
          %v7042 = vunpack.c.l.b16 %v6779
          %v7043 = vunpack.c.l.b16 %v6780
          %v7044 = vunpack.c.l.b16 %v6781
          %v7045 = vunpack.c.l.b16 %v6782
          %v7046 = vunpack.c.l.b16 %v6783
          %v7047 = vunpack.c.l.b16 %v6784
          %v7048 = vunpack.c.l.b16 %v6785
          %v7049 = vunpack.c.l.b16 %v6786
          %v7050 = vunpack.c.l.b16 %v6787
          %v7051 = vunpack.c.l.b16 %v6788
          %v7052 = vunpack.c.l.b16 %v6789
          %v7053 = vunpack.c.l.b16 %v6790
          %v7054 = vunpack.c.l.b16 %v6791
          %v7055 = vunpack.c.l.b16 %v6792
          %v7056 = vunpack.c.l.b16 %v6793
          %v7057 = vunpack.c.l.b16 %v6794
          %v7058 = vunpack.c.l.b16 %v6795
          %v7059 = vunpack.c.l.b16 %v6796
          %v7060 = vunpack.c.l.b16 %v6797
          %v7061 = vunpack.c.l.b16 %v6798
          %v7062 = vunpack.c.l.b16 %v6799
          %v7063 = vunpack.c.l.b16 %v6800
          %v7064 = vunpack.c.l.b16 %v6801
          %v7065 = vunpack.c.l.b16 %v6802
          %v7066 = vunpack.c.l.b16 %v6803
          %v7067 = vunpack.c.l.b16 %v6804
          %v7068 = vunpack.c.l.b16 %v6805
          %v7069 = vunpack.c.l.b16 %v6806
          %v7070 = vunpack.c.l.b16 %v6807
          %v7071 = vunpack.c.l.b16 %v6808
          %v7072 = vunpack.c.l.b16 %v6809
          %v7073 = vunpack.c.l.b16 %v6810
          %v7074 = vunpack.c.l.b16 %v6811
          %v7075 = vunpack.c.l.b16 %v6812
          %v7076 = vunpack.c.l.b16 %v6813
          %v7077 = vunpack.c.l.b16 %v6814
          %v7078 = vunpack.c.l.b16 %v6815
          %v7079 = vunpack.c.l.b16 %v6816
          %v7080 = vunpack.c.l.b16 %v6817
          %v7081 = vunpack.c.l.b16 %v6818
          %v7082 = vunpack.c.l.b16 %v6819
          %v7083 = vunpack.c.l.b16 %v6820
          %v7084 = vunpack.c.l.b16 %v6821
          %v7085 = vunpack.c.l.b16 %v6822
          %v7086 = vunpack.c.l.b16 %v6823
          %v7087 = vunpack.c.l.b16 %v6824
          %v7088 = vunpack.c.l.b16 %v6825
          %v7089 = vunpack.c.l.b16 %v6826
          %v7090 = vunpack.c.l.b16 %v6827
          %v7091 = vunpack.c.l.b16 %v6828
          %v7092 = vunpack.c.l.b16 %v6829
          %v7093 = vunpack.c.l.b16 %v6830
          %v7094 = vunpack.c.l.b16 %v6831
          %v7095 = vunpack.c.l.b16 %v6832
          %v7096 = vunpack.c.l.b16 %v6833
          %v7097 = vunpack.c.l.b16 %v6834
          %v7098 = vunpack.c.l.b16 %v6835
          %v7099 = vunpack.c.l.b16 %v6836
          %v7100 = vunpack.c.l.b16 %v6837
          %v7101 = vunpack.c.l.b16 %v6838
          %v7102 = vunpack.c.l.b16 %v6839
          %v7103 = vunpack.c.l.b16 %v6840
          %v7104 = vunpack.c.l.b16 %v6841
          %v7105 = vunpack.c.l.b16 %v6842
          %v7106 = vunpack.c.l.b16 %v6843
          %v7107 = vunpack.c.l.b16 %v6844
          %v7108 = vunpack.c.l.b16 %v6845
          %v7109 = vunpack.c.l.b16 %v6846
          %v7110 = vunpack.c.l.b16 %v6847
          %v7111 = vunpack.c.l.b16 %v6848
          %v7112 = vunpack.c.l.b16 %v6849
          %v7113 = vunpack.c.l.b16 %v6850
          %v7114 = vunpack.c.l.b16 %v6851
          %v7115 = vunpack.c.l.b16 %v6852
          %v7116 = vunpack.c.l.b16 %v6853
          %v7117 = vunpack.c.l.b16 %v6854
          %v7118 = vunpack.c.l.b16 %v6855
          %v7119 = vunpack.c.l.b16 %v6856
          %v7120 = vunpack.c.l.b16 %v6857
          %v7121 = vunpack.c.l.b16 %v6858
          %v7122 = vunpack.c.l.b16 %v6859
          %v7123 = vunpack.c.l.b16 %v6860
          %v7124 = vunpack.c.l.b16 %v6861
          %v7125 = vunpack.c.l.b16 %v6862
          %v7126 = vunpack.c.l.b16 %v6863
          %v7127 = vunpack.c.l.b16 %v6864
          %v7128 = vunpack.c.l.b16 %v6865
          %v7129 = vunpack.c.l.b16 %v6866
          %v7130 = vunpack.c.l.b16 %v6867
          %v7131 = vunpack.c.l.b16 %v6868
          %v7132 = vunpack.c.l.b16 %v6869
          %v7133 = vunpack.c.l.b16 %v6870
          %v7134 = vunpack.c.l.b16 %v6871
          %v7135 = vunpack.c.l.b16 %v6872
          %v7136 = vunpack.c.l.b16 %v6873
          %v7137 = vunpack.c.l.b16 %v6874
          %v7138 = vunpack.c.l.b16 %v6875
          %v7139 = vunpack.c.l.b16 %v6876
          %v7140 = vunpack.c.l.b16 %v6877
          %v7141 = vunpack.c.l.b16 %v6878
          %v7142 = vunpack.c.l.b16 %v6879
          %v7143 = vunpack.c.l.b16 %v6880
          %v7144 = vunpack.c.l.b16 %v6881
          %v7145 = vunpack.c.l.b16 %v6882
          %v7146 = vunpack.c.l.b16 %v6883
          %v7147 = vunpack.c.l.b16 %v6884
          %v7148 = vunpack.c.l.b16 %v6885
          %v7149 = vunpack.c.l.b16 %v6886
          %v7150 = vunpack.c.l.b16 %v6887
          %v7151 = vunpack.c.l.b16 %v6888
          %v7152 = vunpack.c.l.b16 %v6889
          %v7153 = vunpack.c.l.b16 %v6890
          %v7154 = vunpack.c.l.b16 %v6891
          %v7155 = vunpack.c.l.b16 %v6892
          %v7156 = vunpack.c.l.b16 %v6893
          %v7157 = vunpack.c.l.b16 %v6894
          %v7158 = vunpack.c.l.b16 %v6895
          %v7159 = vunpack.c.l.b16 %v6896
          %v7160 = vunpack.c.l.b16 %v6897
          %v7161 = vunpack.c.l.b16 %v6898
          %v7162 = vunpack.c.l.b16 %v6899
          %v7163 = vunpack.c.l.b16 %v6900
          %v7164 = vunpack.c.l.b16 %v6901
          %v7165 = vunpack.c.l.b16 %v6902
          %v7166 = vunpack.c.l.b16 %v6903
          %v7167 = vunpack.c.l.b16 %v6904
          %v7168 = vunpack.c.l.b16 %v6905
          %v7169 = vunpack.c.l.b16 %v6906
          %v7170 = vpack.c.b16 %v7043, %v7042
          %v7171 = vpack.c.b16 %v7045, %v7044
          %v7172 = vpack.c.b16 %v7047, %v7046
          %v7173 = vpack.c.b16 %v7049, %v7048
          %v7174 = vpack.c.b16 %v7051, %v7050
          %v7175 = vpack.c.b16 %v7053, %v7052
          %v7176 = vpack.c.b16 %v7055, %v7054
          %v7177 = vpack.c.b16 %v7057, %v7056
          %v7178 = vpack.c.b16 %v7059, %v7058
          %v7179 = vpack.c.b16 %v7061, %v7060
          %v7180 = vpack.c.b16 %v7063, %v7062
          %v7181 = vpack.c.b16 %v7065, %v7064
          %v7182 = vpack.c.b16 %v7067, %v7066
          %v7183 = vpack.c.b16 %v7069, %v7068
          %v7184 = vpack.c.b16 %v7071, %v7070
          %v7185 = vpack.c.b16 %v7073, %v7072
          %v7186 = vpack.c.b16 %v7075, %v7074
          %v7187 = vpack.c.b16 %v7077, %v7076
          %v7188 = vpack.c.b16 %v7079, %v7078
          %v7189 = vpack.c.b16 %v7081, %v7080
          %v7190 = vpack.c.b16 %v7083, %v7082
          %v7191 = vpack.c.b16 %v7085, %v7084
          %v7192 = vpack.c.b16 %v7087, %v7086
          %v7193 = vpack.c.b16 %v7089, %v7088
          %v7194 = vpack.c.b16 %v7091, %v7090
          %v7195 = vpack.c.b16 %v7093, %v7092
          %v7196 = vpack.c.b16 %v7095, %v7094
          %v7197 = vpack.c.b16 %v7097, %v7096
          %v7198 = vpack.c.b16 %v7099, %v7098
          %v7199 = vpack.c.b16 %v7101, %v7100
          %v7200 = vpack.c.b16 %v7103, %v7102
          %v7201 = vpack.c.b16 %v7105, %v7104
          %v7202 = vpack.c.b16 %v7107, %v7106
          %v7203 = vpack.c.b16 %v7109, %v7108
          %v7204 = vpack.c.b16 %v7111, %v7110
          %v7205 = vpack.c.b16 %v7113, %v7112
          %v7206 = vpack.c.b16 %v7115, %v7114
          %v7207 = vpack.c.b16 %v7117, %v7116
          %v7208 = vpack.c.b16 %v7119, %v7118
          %v7209 = vpack.c.b16 %v7121, %v7120
          %v7210 = vpack.c.b16 %v7123, %v7122
          %v7211 = vpack.c.b16 %v7125, %v7124
          %v7212 = vpack.c.b16 %v7127, %v7126
          %v7213 = vpack.c.b16 %v7129, %v7128
          %v7214 = vpack.c.b16 %v7131, %v7130
          %v7215 = vpack.c.b16 %v7133, %v7132
          %v7216 = vpack.c.b16 %v7135, %v7134
          %v7217 = vpack.c.b16 %v7137, %v7136
          %v7218 = vpack.c.b16 %v7139, %v7138
          %v7219 = vpack.c.b16 %v7141, %v7140
          %v7220 = vpack.c.b16 %v7143, %v7142
          %v7221 = vpack.c.b16 %v7145, %v7144
          %v7222 = vpack.c.b16 %v7147, %v7146
          %v7223 = vpack.c.b16 %v7149, %v7148
          %v7224 = vpack.c.b16 %v7151, %v7150
          %v7225 = vpack.c.b16 %v7153, %v7152
          %v7226 = vpack.c.b16 %v7155, %v7154
          %v7227 = vpack.c.b16 %v7157, %v7156
          %v7228 = vpack.c.b16 %v7159, %v7158
          %v7229 = vpack.c.b16 %v7161, %v7160
          %v7230 = vpack.c.b16 %v7163, %v7162
          %v7231 = vpack.c.b16 %v7165, %v7164
          %v7232 = vpack.c.b16 %v7167, %v7166
          %v7233 = vpack.c.b16 %v7169, %v7168
          %7298 = vmatprep.subr.bf16.mxu0 0
          %7299 = vmatpush1.bf16.msra.mxu0 %v7177
          %7300 = vmatprep.subr.bf16.mxu0 0
          %7301 = vmatpush1.bf16.msra.mxu0 %v7176
          %7302 = vmatprep.subr.bf16.mxu0 0
          %7303 = vmatpush1.bf16.msra.mxu0 %v7175
          %7304 = vmatprep.subr.bf16.mxu0 0
          %7305 = vmatpush1.bf16.msra.mxu0 %v7174
          %7306 = vmatprep.subr.bf16.mxu0 0
          %7307 = vmatpush1.bf16.msra.mxu0 %v7173
          %7308 = vmatprep.subr.bf16.mxu0 0
          %7309 = vmatpush1.bf16.msra.mxu0 %v7172
          %7310 = vmatprep.subr.bf16.mxu0 0
          %7311 = vmatpush1.bf16.msra.mxu0 %v7171
          %7312 = vmatprep.subr.bf16.mxu0 0
          %7313 = vmatpush1.bf16.msra.mxu0 %v7170
          %7314 = vmatprep.subr.bf16.mxu0 0
          %7315 = vmatpush2.bf16.msra.mxu0 %v7185
          %7316 = vmatprep.subr.bf16.mxu0 0
          %7317 = vmatpush2.bf16.msra.mxu0 %v7184
          %7318 = vmatprep.subr.bf16.mxu0 0
          %7319 = vmatpush2.bf16.msra.mxu0 %v7183
          %7320 = vmatprep.subr.bf16.mxu0 0
          %7321 = vmatpush2.bf16.msra.mxu0 %v7182
          %7322 = vmatprep.subr.bf16.mxu0 0
          %7323 = vmatpush2.bf16.msra.mxu0 %v7181
          %7324 = vmatprep.subr.bf16.mxu0 0
          %7325 = vmatpush2.bf16.msra.mxu0 %v7180
          %7326 = vmatprep.subr.bf16.mxu0 0
          %7327 = vmatpush2.bf16.msra.mxu0 %v7179
          %7328 = vmatprep.subr.bf16.mxu0 0
          %7329 = vmatpush2.bf16.msra.mxu0 %v7178
          %7330 = vmatprep.mubr.bf16.mxu0 %v6772
          %7331 = vmatmul.mubr.bf16.gmra.mxu0 %v6771
          %v7332 = vpop.f32.mrf.mxu0
          %v7333 = vadd.f32 %v6912, %v7332
          %v7334 = vpop.f32.mrf.mxu0
          %v7335 = vpop.f32.mrf.mxu0
          %v7336 = vpop.f32.mrf.mxu0
          %7337 = vdwg.mxu0
          %7338 = vmatprep.subr.bf16.mxu0 0
          %7339 = vmatpush1.bf16.msra.mxu0 %v7193
          %7340 = vmatprep.subr.bf16.mxu0 0
          %7341 = vmatpush1.bf16.msra.mxu0 %v7192
          %7342 = vmatprep.subr.bf16.mxu0 0
          %7343 = vmatpush1.bf16.msra.mxu0 %v7191
          %7344 = vmatprep.subr.bf16.mxu0 0
          %7345 = vmatpush1.bf16.msra.mxu0 %v7190
          %7346 = vmatprep.subr.bf16.mxu0 0
          %7347 = vmatpush1.bf16.msra.mxu0 %v7189
          %7348 = vmatprep.subr.bf16.mxu0 0
          %7349 = vmatpush1.bf16.msra.mxu0 %v7188
          %7350 = vmatprep.subr.bf16.mxu0 0
          %7351 = vmatpush1.bf16.msra.mxu0 %v7187
          %7352 = vmatprep.subr.bf16.mxu0 0
          %7353 = vmatpush1.bf16.msra.mxu0 %v7186
          %7354 = vmatprep.subr.bf16.mxu0 0
          %7355 = vmatpush2.bf16.msra.mxu0 %v7201
          %7356 = vmatprep.subr.bf16.mxu0 0
          %7357 = vmatpush2.bf16.msra.mxu0 %v7200
          %7358 = vmatprep.subr.bf16.mxu0 0
          %7359 = vmatpush2.bf16.msra.mxu0 %v7199
          %7360 = vmatprep.subr.bf16.mxu0 0
          %7361 = vmatpush2.bf16.msra.mxu0 %v7198
          %7362 = vmatprep.subr.bf16.mxu0 0
          %7363 = vmatpush2.bf16.msra.mxu0 %v7197
          %7364 = vmatprep.subr.bf16.mxu0 0
          %7365 = vmatpush2.bf16.msra.mxu0 %v7196
          %7366 = vmatprep.subr.bf16.mxu0 0
          %7367 = vmatpush2.bf16.msra.mxu0 %v7195
          %7368 = vmatprep.subr.bf16.mxu0 0
          %7369 = vmatpush2.bf16.msra.mxu0 %v7194
          %7370 = vmatprep.mubr.bf16.mxu0 %v6774
          %7371 = vmatmul.mubr.bf16.gmra.mxu0 %v6773
          %v7372 = vpop.f32.mrf.mxu0
          %v7373 = vadd.f32 %v7333, %v7372
          %v7374 = vpop.f32.mrf.mxu0
          %v7375 = vpop.f32.mrf.mxu0
          %v7376 = vpop.f32.mrf.mxu0
          %7377 = vdwg.mxu0
          %7378 = vmatprep.subr.bf16.mxu0 0
          %7379 = vmatpush1.bf16.msra.mxu0 %v7209
          %7380 = vmatprep.subr.bf16.mxu0 0
          %7381 = vmatpush1.bf16.msra.mxu0 %v7208
          %7382 = vmatprep.subr.bf16.mxu0 0
          %7383 = vmatpush1.bf16.msra.mxu0 %v7207
          %7384 = vmatprep.subr.bf16.mxu0 0
          %7385 = vmatpush1.bf16.msra.mxu0 %v7206
          %7386 = vmatprep.subr.bf16.mxu0 0
          %7387 = vmatpush1.bf16.msra.mxu0 %v7205
          %7388 = vmatprep.subr.bf16.mxu0 0
          %7389 = vmatpush1.bf16.msra.mxu0 %v7204
          %7390 = vmatprep.subr.bf16.mxu0 0
          %7391 = vmatpush1.bf16.msra.mxu0 %v7203
          %7392 = vmatprep.subr.bf16.mxu0 0
          %7393 = vmatpush1.bf16.msra.mxu0 %v7202
          %7394 = vmatprep.subr.bf16.mxu0 0
          %7395 = vmatpush2.bf16.msra.mxu0 %v7217
          %7396 = vmatprep.subr.bf16.mxu0 0
          %7397 = vmatpush2.bf16.msra.mxu0 %v7216
          %7398 = vmatprep.subr.bf16.mxu0 0
          %7399 = vmatpush2.bf16.msra.mxu0 %v7215
          %7400 = vmatprep.subr.bf16.mxu0 0
          %7401 = vmatpush2.bf16.msra.mxu0 %v7214
          %7402 = vmatprep.subr.bf16.mxu0 0
          %7403 = vmatpush2.bf16.msra.mxu0 %v7213
          %7404 = vmatprep.subr.bf16.mxu0 0
          %7405 = vmatpush2.bf16.msra.mxu0 %v7212
          %7406 = vmatprep.subr.bf16.mxu0 0
          %7407 = vmatpush2.bf16.msra.mxu0 %v7211
          %7408 = vmatprep.subr.bf16.mxu0 0
          %7409 = vmatpush2.bf16.msra.mxu0 %v7210
          %7410 = vmatprep.mubr.bf16.mxu0 %v6776
          %7411 = vmatmul.mubr.bf16.gmra.mxu0 %v6775
          %v7412 = vpop.f32.mrf.mxu0
          %v7413 = vadd.f32 %v7373, %v7412
          %v7414 = vpop.f32.mrf.mxu0
          %v7415 = vpop.f32.mrf.mxu0
          %v7416 = vpop.f32.mrf.mxu0
          %7417 = vdwg.mxu0
          %7418 = vmatprep.subr.bf16.mxu0 0
          %7419 = vmatpush1.bf16.msra.mxu0 %v7225
          %7420 = vmatprep.subr.bf16.mxu0 0
          %7421 = vmatpush1.bf16.msra.mxu0 %v7224
          %7422 = vmatprep.subr.bf16.mxu0 0
          %7423 = vmatpush1.bf16.msra.mxu0 %v7223
          %7424 = vmatprep.subr.bf16.mxu0 0
          %7425 = vmatpush1.bf16.msra.mxu0 %v7222
          %7426 = vmatprep.subr.bf16.mxu0 0
          %7427 = vmatpush1.bf16.msra.mxu0 %v7221
          %7428 = vmatprep.subr.bf16.mxu0 0
          %7429 = vmatpush1.bf16.msra.mxu0 %v7220
          %7430 = vmatprep.subr.bf16.mxu0 0
          %7431 = vmatpush1.bf16.msra.mxu0 %v7219
          %7432 = vmatprep.subr.bf16.mxu0 0
          %7433 = vmatpush1.bf16.msra.mxu0 %v7218
          %7434 = vmatprep.subr.bf16.mxu0 0
          %7435 = vmatpush2.bf16.msra.mxu0 %v7233
          %7436 = vmatprep.subr.bf16.mxu0 0
          %7437 = vmatpush2.bf16.msra.mxu0 %v7232
          %7438 = vmatprep.subr.bf16.mxu0 0
          %7439 = vmatpush2.bf16.msra.mxu0 %v7231
          %7440 = vmatprep.subr.bf16.mxu0 0
          %7441 = vmatpush2.bf16.msra.mxu0 %v7230
          %7442 = vmatprep.subr.bf16.mxu0 0
          %7443 = vmatpush2.bf16.msra.mxu0 %v7229
          %7444 = vmatprep.subr.bf16.mxu0 0
          %7445 = vmatpush2.bf16.msra.mxu0 %v7228
          %7446 = vmatprep.subr.bf16.mxu0 0
          %7447 = vmatpush2.bf16.msra.mxu0 %v7227
          %7448 = vmatprep.subr.bf16.mxu0 0
          %7449 = vmatpush2.bf16.msra.mxu0 %v7226
          %7450 = vmatprep.mubr.bf16.mxu0 %v6778
          %7451 = vmatmul.mubr.bf16.gmra.mxu0 %v6777
          %v7452 = vpop.f32.mrf.mxu0
          %v7453 = vadd.f32 %v7413, %v7452
          %v7454 = vpop.f32.mrf.mxu0
          %v7455 = vpop.f32.mrf.mxu0
          %v7456 = vpop.f32.mrf.mxu0
          %7457 = vdwg.mxu0
          %7458 = vst [vmem:[#allocation18] sm:$0xff] %v7453
        $region104: #{tpu_custom_call.1} parent=55 // pred_fallthru
          _
        // Predicated region
        $region105: #{tpu_custom_call.1} parent=55 // pred_check
          %p7459 = pneg %p252
        $region106: #{tpu_custom_call.1} parent=55 // pred_check_branch
          %7461 = sbr.rel (%p7459) target = $region108
        $region107: #{tpu_custom_call.1} parent=55 // pred_region
          %s7463 = ssub.s32 128, 128
          %7464 = vsyncadd [#allocation5], %s7463
          %s7466 = sshll.u32 [#allocation18], 4
          %s7467 = int_to_ptr.vmem [resolvable:$true] %s7466
          %7469 = dma.vmem_to_hbm [thread:$0]  %s7467, 128, %s9, [#allocation5]
        $region108: #{tpu_custom_call.1} parent=55 // pred_fallthru
          _
        // Predicated region
        $region109: #{tpu_custom_call.1} parent=55 // pred_check
          %p7470 = pneg %p252
        $region110: #{tpu_custom_call.1} parent=55 // pred_check_branch
          %7472 = sbr.rel (%p7470) target = $region112
        $region111: #{tpu_custom_call.1} parent=55 // pred_region
          %7473 = dma.done [#allocation5], 128
        $region112: #{tpu_custom_call.1} parent=55 // pred_fallthru
          _
      $region56: #{tpu_custom_call.1} parent=5 // pred_fallthru
        _
      %p7474 = scmp.le.s32.totalorder 2, %s25
      // Predicated region
      $region113: #{tpu_custom_call.1} parent=5 // pred_check
        %p7475 = pneg %p7474
      $region114: #{tpu_custom_call.1} parent=5 // pred_check_branch
        %7477 = sbr.rel (%p7475) target = $region116
      $region115: #{tpu_custom_call.1} parent=5 // pred_region
        %s7478 = ssub.s32 %s25, 2
      $region116: #{tpu_custom_call.1} parent=5 // pred_fallthru
        _
    $region6: #{tpu_custom_call.1} parent=1 // loop_footer
      %s29 = sadd.s32 1, %s25
    $region7: #{tpu_custom_call.1} parent=1 // loop_footer_branch
      %24 = sbr.rel target = $region3
    $region8: #{tpu_custom_call.1} parent=1 // loop_exit
      _
    %7479 = vsyncpa [#allocation4], 1
    %s7480 = scalar_lea.sflag [#allocation4], 1
    %7481 = vsyncpa %s7480, 1
    %7482 = vsyncpa [#allocation7], 1
    %s7483 = scalar_lea.sflag [#allocation7], 1
    %7484 = vsyncpa %s7483, 1
    %7485 = vsyncpa [#allocation10], 1
    %s7486 = scalar_lea.sflag [#allocation10], 1
    %7487 = vsyncpa %s7486, 1
    %7488 = vsyncpa [#allocation13], 1
    %7489 = vsyncpa [#allocation16], 1
    %7490 = vsyncpa [#allocation5], 1
    %s7491 = scalar_lea.sflag [#allocation5], 1
    %7492 = vsyncpa %s7491, 1

</llo_original>
